<compile_context>
chip_gen: v6e
topology: v6e:2x2x1
jax: 0.10.0
libtpu: 0.0.40
codegen_flags: <defaults>
</compile_context>

<pallas_src>
import functools

import numpy as np

import jax
import jax.numpy as jnp
from jax.experimental import pallas as pl
from jax.experimental.pallas import tpu as pltpu


# ----------------------------------------------------------------------------
# Fixed geometry implied by the PyTorch module (input must be (N, 3, 32, 32)).
# ----------------------------------------------------------------------------
H0, W0, C0 = 32, 32, 3
K = 5
C1 = 6
H1, W1 = H0 - K + 1, W0 - K + 1          # 28, 28   (conv1 output)
H1P, W1P = H1 // 2, W1 // 2              # 14, 14   (pool1 output)
C2 = 16
H2, W2 = H1P - K + 1, W1P - K + 1        # 10, 10   (conv2 output)
H2P, W2P = H2 // 2, W2 // 2              # 5, 5     (pool2 output)
F1_IN, F1_OUT = C2 * H2P * W2P, 250      # 400, 250
F2_OUT, F3_OUT = 160, 100

_ARG_ORDER = ("w1t", "b1", "he1", "ho1", "se1", "so1",
              "w2t", "b2", "he2", "ho2", "se2", "so2",
              "f1w", "f1b", "f2w", "f2b", "f3w", "f3b")


# ----------------------------------------------------------------------------
# Fused Pallas kernel: one grid step == one image, everything VMEM-resident.
# ----------------------------------------------------------------------------
def _net_kernel(x_ref,
                w1t_ref, b1_ref, he1_ref, ho1_ref, se1_ref, so1_ref,
                w2t_ref, b2_ref, he2_ref, ho2_ref, se2_ref, so2_ref,
                f1w_ref, f1b_ref, f2w_ref, f2b_ref, f3w_ref, f3b_ref,
                o_ref):
    dot = functools.partial(jnp.dot, preferred_element_type=jnp.float32)

    x = x_ref[0]                                        # (32, 96)  lanes = w*3+c

    # ---- conv1 + bias + ReLU: K row-shifted Toeplitz matmuls --------------
    a1 = dot(x[0:H1, :], w1t_ref[0])
    for di in range(1, K):
        a1 = a1 + dot(x[di:di + H1, :], w1t_ref[di])
    a1 = jnp.maximum(a1 + b1_ref[...], 0.0)             # (28, 168)

    # ---- pool1 (2x2, stride 2): exact 0/1-selection matmuls + max ---------
    ph = jnp.maximum(dot(he1_ref[...], a1), dot(ho1_ref[...], a1))   # (14, 168)
    p1 = jnp.maximum(dot(ph, se1_ref[...]), dot(ph, so1_ref[...]))   # (14, 84)

    # ---- conv2 + bias + ReLU ----------------------------------------------
    a2 = dot(p1[0:H2, :], w2t_ref[0])
    for di in range(1, K):
        a2 = a2 + dot(p1[di:di + H2, :], w2t_ref[di])
    a2 = jnp.maximum(a2 + b2_ref[...], 0.0)             # (10, 160)

    # ---- pool2 --------------------------------------------------------------
    qh = jnp.maximum(dot(he2_ref[...], a2), dot(ho2_ref[...], a2))   # (5, 160)
    p2 = jnp.maximum(dot(qh, se2_ref[...]), dot(qh, so2_ref[...]))   # (5, 80)

    # ---- fc1: contract over (h, w, c) as H2P row-matmuls (no reshape) ------
    z = dot(p2[0:1, :], f1w_ref[0])
    for h in range(1, H2P):
        z = z + dot(p2[h:h + 1, :], f1w_ref[h])
    z = jnp.maximum(z + f1b_ref[...], 0.0)              # (1, 250)

    # ---- fc2 / fc3 chained in the same kernel ------------------------------
    z = jnp.maximum(dot(z, f2w_ref[...]) + f2b_ref[...], 0.0)        # (1, 160)
    z = dot(z, f3w_ref[...]) + f3b_ref[...]                          # (1, 100)

    o_ref[0] = z


# ----------------------------------------------------------------------------
# One-time (outside jit) repack of PyTorch-layout params into kernel operands.
# ----------------------------------------------------------------------------
def _conv_toeplitz(w, w_in):
    """w: (Cout, Cin, K, K) -> (K, w_in*Cin, (w_in-K+1)*Cout) block-Toeplitz.

    T[di, wi*Cin + ci, wo*Cout + co] = w[co, ci, di, wi - wo] (0 <= wi-wo < K).
    """
    w = np.asarray(w, np.float32)
    cout, cin, k, _ = w.shape
    wo_n = w_in - k + 1
    p = np.arange(w_in * cin)
    q = np.arange(wo_n * cout)
    wi, ci = p // cin, p % cin
    wo, co = q // cout, q % cout
    dj = wi[:, None] - wo[None, :]
    valid = ((dj >= 0) & (dj < k)).astype(np.float32)
    djc = np.clip(dj, 0, k - 1)
    w_perm = np.transpose(w, (2, 3, 1, 0))               # (di, dj, ci, co)
    t = w_perm[:, djc, ci[:, None], co[None, :]] * valid[None]
    return jnp.asarray(t)


def _row_sel(n_out, parity):
    """(n_out, 2*n_out) 0/1 matrix selecting rows 2*i+parity."""
    m = np.zeros((n_out, 2 * n_out), np.float32)
    m[np.arange(n_out), 2 * np.arange(n_out) + parity] = 1.0
    return jnp.asarray(m)


def _lane_sel(w_out, c, parity):
    """(2*w_out*c, w_out*c) 0/1 matrix selecting lane blocks (2*wp+parity)."""
    m = np.zeros((2 * w_out * c, w_out * c), np.float32)
    wp = np.repeat(np.arange(w_out), c)
    cc = np.tile(np.arange(c), w_out)
    m[(2 * wp + parity) * c + cc, wp * c + cc] = 1.0
    return jnp.asarray(m)


def prepare_params(params):
    # fc1 weight is stored with input index k = c*25 + h*5 + w (PyTorch's
    # NCHW flatten order); permute it to our (h, w*16+c) lane layout and split
    # by h so fc1 becomes H2P row-matmuls.
    f1 = np.asarray(params["fc1_w"], np.float32)         # (400, 250)
    f1k = (f1.reshape(C2, H2P, W2P, F1_OUT)
             .transpose(1, 2, 0, 3)
             .reshape(H2P, W2P * C2, F1_OUT))
    return dict(
        w1t=_conv_toeplitz(params["conv1_w"], W0),
        b1=jnp.tile(jnp.asarray(params["conv1_b"]), W1).reshape(1, W1 * C1),
        he1=_row_sel(H1P, 0), ho1=_row_sel(H1P, 1),
        se1=_lane_sel(W1P, C1, 0), so1=_lane_sel(W1P, C1, 1),
        w2t=_conv_toeplitz(params["conv2_w"], W1P),
        b2=jnp.tile(jnp.asarray(params["conv2_b"]), W2).reshape(1, W2 * C2),
        he2=_row_sel(H2P, 0), ho2=_row_sel(H2P, 1),
        se2=_lane_sel(W2P, C2, 0), so2=_lane_sel(W2P, C2, 1),
        f1w=jnp.asarray(f1k),
        f1b=jnp.asarray(params["fc1_b"]).reshape(1, F1_OUT),
        f2w=jnp.asarray(params["fc2_w"]),
        f2b=jnp.asarray(params["fc2_b"]).reshape(1, F2_OUT),
        f3w=jnp.asarray(params["fc3_w"]),
        f3b=jnp.asarray(params["fc3_b"]).reshape(1, F3_OUT),
    )


# ----------------------------------------------------------------------------
# Forward pass: one fused pallas_call, grid over the batch.
# ----------------------------------------------------------------------------
def net_forward(prep, x):
    n = x.shape[0]
    # Only boundary layout op: NCHW -> (N, H, W*C) channels-last, lane-dense.
    xl = jnp.transpose(x, (0, 2, 3, 1)).reshape(n, H0, W0 * C0).astype(jnp.float32)

    ops = [prep[k] for k in _ARG_ORDER]

    def _const_map(nd):
        return lambda i: (0,) * nd

    in_specs = [pl.BlockSpec((1, H0, W0 * C0), lambda i: (i, 0, 0))]
    in_specs += [pl.BlockSpec(op.shape, _const_map(op.ndim)) for op in ops]

    out = pl.pallas_call(
        _net_kernel,
        grid=(n,),
        in_specs=in_specs,
        out_specs=pl.BlockSpec((1, 1, F3_OUT), lambda i: (i, 0, 0)),
        out_shape=jax.ShapeDtypeStruct((n, 1, F3_OUT), jnp.float32),
        compiler_params=pltpu.CompilerParams(
            dimension_semantics=("parallel",)),
    )(xl, *ops)
    return out.reshape(n, F3_OUT)


# ----------------------------------------------------------------------------
# Parameters (deterministic, PyTorch-default-style uniform init).
# fc weights stored as (in, out) so y = x @ W + b (== PyTorch x @ W.T).
# ----------------------------------------------------------------------------
def init_params(key):
    def uniform(k, shape, fan_in):
        bound = 1.0 / float(fan_in) ** 0.5
        return jax.random.uniform(k, shape, jnp.float32, -bound, bound)

    ks = jax.random.split(key, 10)
    return {
        "conv1_w": uniform(ks[0], (C1, C0, K, K), C0 * K * K),
        "conv1_b": uniform(ks[1], (C1,), C0 * K * K),
        "conv2_w": uniform(ks[2], (C2, C1, K, K), C1 * K * K),
        "conv2_b": uniform(ks[3], (C2,), C1 * K * K),
        "fc1_w": uniform(ks[4], (F1_IN, F1_OUT), F1_IN),
        "fc1_b": uniform(ks[5], (F1_OUT,), F1_IN),
        "fc2_w": uniform(ks[6], (F1_OUT, F2_OUT), F1_OUT),
        "fc2_b": uniform(ks[7], (F2_OUT,), F1_OUT),
        "fc3_w": uniform(ks[8], (F2_OUT, F3_OUT), F2_OUT),
        "fc3_b": uniform(ks[9], (F3_OUT,), F2_OUT),
    }


# ----------------------------------------------------------------------------
# Plain-JAX reference (mirrors Net.forward) for a correctness sanity check.
# ----------------------------------------------------------------------------
def reference_forward(params, x):
    hp = jax.lax.Precision.HIGHEST
    dn = ("NCHW", "OIHW", "NCHW")
    y = jax.lax.conv_general_dilated(x, params["conv1_w"], (1, 1), "VALID",
                                     dimension_numbers=dn, precision=hp)
    y = jnp.maximum(y + params["conv1_b"][None, :, None, None], 0.0)
    y = jax.lax.reduce_window(y, -jnp.inf, jax.lax.max,
                              (1, 1, 2, 2), (1, 1, 2, 2), "VALID")
    y = jax.lax.conv_general_dilated(y, params["conv2_w"], (1, 1), "VALID",
                                     dimension_numbers=dn, precision=hp)
    y = jnp.maximum(y + params["conv2_b"][None, :, None, None], 0.0)
    y = jax.lax.reduce_window(y, -jnp.inf, jax.lax.max,
                              (1, 1, 2, 2), (1, 1, 2, 2), "VALID")
    y = y.reshape(y.shape[0], F1_IN)
    y = jnp.maximum(jnp.dot(y, params["fc1_w"], precision=hp) + params["fc1_b"], 0.0)
    y = jnp.maximum(jnp.dot(y, params["fc2_w"], precision=hp) + params["fc2_b"], 0.0)
    return jnp.dot(y, params["fc3_w"], precision=hp) + params["fc3_b"]


if __name__ == "__main__":
    key = jax.random.PRNGKey(0)
    pkey, xkey = jax.random.split(key)
    params = init_params(pkey)
    prep = prepare_params(params)          # one-time repack, outside jit

    # Input must be (N, 3, 32, 32) for the view(-1, 400) to hold.
    x = jax.random.normal(xkey, (2, 3, 32, 32), jnp.float32)

    fwd = jax.jit(net_forward)
    out = jax.block_until_ready(fwd(prep, x))
    assert out.shape == (2, F3_OUT), out.shape
    assert bool(jnp.all(jnp.isfinite(out)))

    ref = jax.block_until_ready(reference_forward(params, x))
    err = float(jnp.max(jnp.abs(out - ref)))
    assert jnp.allclose(out, ref, rtol=2e-2, atol=2e-2), err

    print("KERNEL_OK")
</pallas_src>

<mosaic_0001>
module attributes {stable_mosaic.version = 11 : i64} {
  func.func @_net_kernel(%arg0: i32, %arg1: memref<1x32x96xf32, #tpu.memory_space<vmem>>, %arg2: memref<5x96x168xf32, #tpu.memory_space<vmem>>, %arg3: memref<1x168xf32, #tpu.memory_space<vmem>>, %arg4: memref<14x28xf32, #tpu.memory_space<vmem>>, %arg5: memref<14x28xf32, #tpu.memory_space<vmem>>, %arg6: memref<168x84xf32, #tpu.memory_space<vmem>>, %arg7: memref<168x84xf32, #tpu.memory_space<vmem>>, %arg8: memref<5x84x160xf32, #tpu.memory_space<vmem>>, %arg9: memref<1x160xf32, #tpu.memory_space<vmem>>, %arg10: memref<5x10xf32, #tpu.memory_space<vmem>>, %arg11: memref<5x10xf32, #tpu.memory_space<vmem>>, %arg12: memref<160x80xf32, #tpu.memory_space<vmem>>, %arg13: memref<160x80xf32, #tpu.memory_space<vmem>>, %arg14: memref<5x80x250xf32, #tpu.memory_space<vmem>>, %arg15: memref<1x250xf32, #tpu.memory_space<vmem>>, %arg16: memref<250x160xf32, #tpu.memory_space<vmem>>, %arg17: memref<1x160xf32, #tpu.memory_space<vmem>>, %arg18: memref<160x100xf32, #tpu.memory_space<vmem>>, %arg19: memref<1x100xf32, #tpu.memory_space<vmem>>, %arg20: memref<1x1x100xf32, #tpu.memory_space<vmem>>) attributes {dimension_semantics = [#tpu.dimension_semantics<parallel>], iteration_bounds = array<i64: 2>, scalar_prefetch = 0 : i64, scratch_operands = 0 : i64, tpu.core_type = #tpu.core_type<tc>, window_params = [{transform_indices = @transform_0, window_bounds = array<i64: 1, 32, 96>}, {pipeline_mode = #tpu.pipeline_mode<synchronous>, transform_indices = @transform_1, window_bounds = array<i64: 5, 96, 168>}, {pipeline_mode = #tpu.pipeline_mode<synchronous>, transform_indices = @transform_2, window_bounds = array<i64: 1, 168>}, {pipeline_mode = #tpu.pipeline_mode<synchronous>, transform_indices = @transform_3, window_bounds = array<i64: 14, 28>}, {pipeline_mode = #tpu.pipeline_mode<synchronous>, transform_indices = @transform_4, window_bounds = array<i64: 14, 28>}, {pipeline_mode = #tpu.pipeline_mode<synchronous>, transform_indices = @transform_5, window_bounds = array<i64: 168, 84>}, {pipeline_mode = #tpu.pipeline_mode<synchronous>, transform_indices = @transform_6, window_bounds = array<i64: 168, 84>}, {pipeline_mode = #tpu.pipeline_mode<synchronous>, transform_indices = @transform_7, window_bounds = array<i64: 5, 84, 160>}, {pipeline_mode = #tpu.pipeline_mode<synchronous>, transform_indices = @transform_8, window_bounds = array<i64: 1, 160>}, {pipeline_mode = #tpu.pipeline_mode<synchronous>, transform_indices = @transform_9, window_bounds = array<i64: 5, 10>}, {pipeline_mode = #tpu.pipeline_mode<synchronous>, transform_indices = @transform_10, window_bounds = array<i64: 5, 10>}, {pipeline_mode = #tpu.pipeline_mode<synchronous>, transform_indices = @transform_11, window_bounds = array<i64: 160, 80>}, {pipeline_mode = #tpu.pipeline_mode<synchronous>, transform_indices = @transform_12, window_bounds = array<i64: 160, 80>}, {pipeline_mode = #tpu.pipeline_mode<synchronous>, transform_indices = @transform_13, window_bounds = array<i64: 5, 80, 250>}, {pipeline_mode = #tpu.pipeline_mode<synchronous>, transform_indices = @transform_14, window_bounds = array<i64: 1, 250>}, {pipeline_mode = #tpu.pipeline_mode<synchronous>, transform_indices = @transform_15, window_bounds = array<i64: 250, 160>}, {pipeline_mode = #tpu.pipeline_mode<synchronous>, transform_indices = @transform_16, window_bounds = array<i64: 1, 160>}, {pipeline_mode = #tpu.pipeline_mode<synchronous>, transform_indices = @transform_17, window_bounds = array<i64: 160, 100>}, {pipeline_mode = #tpu.pipeline_mode<synchronous>, transform_indices = @transform_18, window_bounds = array<i64: 1, 100>}, {transform_indices = @transform_19, window_bounds = array<i64: 1, 1, 100>}]} {
    %c0 = arith.constant 0 : index
    %c0_0 = arith.constant 0 : index
    %c0_1 = arith.constant 0 : index
    %0 = vector.load %arg1[%c0, %c0_0, %c0_1] : memref<1x32x96xf32, #tpu.memory_space<vmem>>, vector<1x32x96xf32>
    %1 = vector.shape_cast %0 : vector<1x32x96xf32> to vector<32x96xf32>
    %2 = vector.extract_strided_slice %1 {offsets = [0, 0], sizes = [28, 96], strides = [1, 1]} : vector<32x96xf32> to vector<28x96xf32>
    %c0_2 = arith.constant 0 : index
    %c0_3 = arith.constant 0 : index
    %c0_4 = arith.constant 0 : index
    %3 = vector.load %arg2[%c0_2, %c0_3, %c0_4] : memref<5x96x168xf32, #tpu.memory_space<vmem>>, vector<1x96x168xf32>
    %4 = vector.shape_cast %3 : vector<1x96x168xf32> to vector<96x168xf32>
    %cst = arith.constant dense<0.000000e+00> : vector<28x168xf32>
    %5 = tpu.matmul %2, %4, %cst {dimension_numbers = #tpu.dot_dimension_numbers<[1], [0], [0], [1], [0, 0, 1, 1], [], []>} : vector<28x96xf32>, vector<96x168xf32>, vector<28x168xf32> -> vector<28x168xf32>
    %6 = vector.extract_strided_slice %1 {offsets = [1, 0], sizes = [28, 96], strides = [1, 1]} : vector<32x96xf32> to vector<28x96xf32>
    %c1 = arith.constant 1 : index
    %c0_5 = arith.constant 0 : index
    %c0_6 = arith.constant 0 : index
    %7 = vector.load %arg2[%c1, %c0_5, %c0_6] : memref<5x96x168xf32, #tpu.memory_space<vmem>>, vector<1x96x168xf32>
    %8 = vector.shape_cast %7 : vector<1x96x168xf32> to vector<96x168xf32>
    %cst_7 = arith.constant dense<0.000000e+00> : vector<28x168xf32>
    %9 = tpu.matmul %6, %8, %cst_7 {dimension_numbers = #tpu.dot_dimension_numbers<[1], [0], [0], [1], [0, 0, 1, 1], [], []>} : vector<28x96xf32>, vector<96x168xf32>, vector<28x168xf32> -> vector<28x168xf32>
    %10 = arith.addf %5, %9 : vector<28x168xf32>
    %11 = vector.extract_strided_slice %1 {offsets = [2, 0], sizes = [28, 96], strides = [1, 1]} : vector<32x96xf32> to vector<28x96xf32>
    %c2 = arith.constant 2 : index
    %c0_8 = arith.constant 0 : index
    %c0_9 = arith.constant 0 : index
    %12 = vector.load %arg2[%c2, %c0_8, %c0_9] : memref<5x96x168xf32, #tpu.memory_space<vmem>>, vector<1x96x168xf32>
    %13 = vector.shape_cast %12 : vector<1x96x168xf32> to vector<96x168xf32>
    %cst_10 = arith.constant dense<0.000000e+00> : vector<28x168xf32>
    %14 = tpu.matmul %11, %13, %cst_10 {dimension_numbers = #tpu.dot_dimension_numbers<[1], [0], [0], [1], [0, 0, 1, 1], [], []>} : vector<28x96xf32>, vector<96x168xf32>, vector<28x168xf32> -> vector<28x168xf32>
    %15 = arith.addf %10, %14 : vector<28x168xf32>
    %16 = vector.extract_strided_slice %1 {offsets = [3, 0], sizes = [28, 96], strides = [1, 1]} : vector<32x96xf32> to vector<28x96xf32>
    %c3 = arith.constant 3 : index
    %c0_11 = arith.constant 0 : index
    %c0_12 = arith.constant 0 : index
    %17 = vector.load %arg2[%c3, %c0_11, %c0_12] : memref<5x96x168xf32, #tpu.memory_space<vmem>>, vector<1x96x168xf32>
    %18 = vector.shape_cast %17 : vector<1x96x168xf32> to vector<96x168xf32>
    %cst_13 = arith.constant dense<0.000000e+00> : vector<28x168xf32>
    %19 = tpu.matmul %16, %18, %cst_13 {dimension_numbers = #tpu.dot_dimension_numbers<[1], [0], [0], [1], [0, 0, 1, 1], [], []>} : vector<28x96xf32>, vector<96x168xf32>, vector<28x168xf32> -> vector<28x168xf32>
    %20 = arith.addf %15, %19 : vector<28x168xf32>
    %21 = vector.extract_strided_slice %1 {offsets = [4, 0], sizes = [28, 96], strides = [1, 1]} : vector<32x96xf32> to vector<28x96xf32>
    %c4 = arith.constant 4 : index
    %c0_14 = arith.constant 0 : index
    %c0_15 = arith.constant 0 : index
    %22 = vector.load %arg2[%c4, %c0_14, %c0_15] : memref<5x96x168xf32, #tpu.memory_space<vmem>>, vector<1x96x168xf32>
    %23 = vector.shape_cast %22 : vector<1x96x168xf32> to vector<96x168xf32>
    %cst_16 = arith.constant dense<0.000000e+00> : vector<28x168xf32>
    %24 = tpu.matmul %21, %23, %cst_16 {dimension_numbers = #tpu.dot_dimension_numbers<[1], [0], [0], [1], [0, 0, 1, 1], [], []>} : vector<28x96xf32>, vector<96x168xf32>, vector<28x168xf32> -> vector<28x168xf32>
    %25 = arith.addf %20, %24 : vector<28x168xf32>
    %c0_17 = arith.constant 0 : index
    %c0_18 = arith.constant 0 : index
    %26 = vector.load %arg3[%c0_17, %c0_18] : memref<1x168xf32, #tpu.memory_space<vmem>>, vector<1x168xf32>
    %27 = vector.broadcast %26 : vector<1x168xf32> to vector<28x168xf32>
    %28 = arith.addf %25, %27 : vector<28x168xf32>
    %cst_19 = arith.constant 0.000000e+00 : f32
    %29 = vector.broadcast %cst_19 : f32 to vector<28x168xf32>
    %30 = arith.maximumf %28, %29 : vector<28x168xf32>
    %c0_20 = arith.constant 0 : index
    %c0_21 = arith.constant 0 : index
    %31 = vector.load %arg4[%c0_20, %c0_21] : memref<14x28xf32, #tpu.memory_space<vmem>>, vector<14x28xf32>
    %cst_22 = arith.constant dense<0.000000e+00> : vector<14x168xf32>
    %32 = tpu.matmul %31, %30, %cst_22 {dimension_numbers = #tpu.dot_dimension_numbers<[1], [0], [0], [1], [0, 0, 1, 1], [], []>} : vector<14x28xf32>, vector<28x168xf32>, vector<14x168xf32> -> vector<14x168xf32>
    %c0_23 = arith.constant 0 : index
    %c0_24 = arith.constant 0 : index
    %33 = vector.load %arg5[%c0_23, %c0_24] : memref<14x28xf32, #tpu.memory_space<vmem>>, vector<14x28xf32>
    %cst_25 = arith.constant dense<0.000000e+00> : vector<14x168xf32>
    %34 = tpu.matmul %33, %30, %cst_25 {dimension_numbers = #tpu.dot_dimension_numbers<[1], [0], [0], [1], [0, 0, 1, 1], [], []>} : vector<14x28xf32>, vector<28x168xf32>, vector<14x168xf32> -> vector<14x168xf32>
    %35 = arith.maximumf %32, %34 : vector<14x168xf32>
    %c0_26 = arith.constant 0 : index
    %c0_27 = arith.constant 0 : index
    %36 = vector.load %arg6[%c0_26, %c0_27] : memref<168x84xf32, #tpu.memory_space<vmem>>, vector<168x84xf32>
    %cst_28 = arith.constant dense<0.000000e+00> : vector<14x84xf32>
    %37 = tpu.matmul %35, %36, %cst_28 {dimension_numbers = #tpu.dot_dimension_numbers<[1], [0], [0], [1], [0, 0, 1, 1], [], []>} : vector<14x168xf32>, vector<168x84xf32>, vector<14x84xf32> -> vector<14x84xf32>
    %c0_29 = arith.constant 0 : index
    %c0_30 = arith.constant 0 : index
    %38 = vector.load %arg7[%c0_29, %c0_30] : memref<168x84xf32, #tpu.memory_space<vmem>>, vector<168x84xf32>
    %cst_31 = arith.constant dense<0.000000e+00> : vector<14x84xf32>
    %39 = tpu.matmul %35, %38, %cst_31 {dimension_numbers = #tpu.dot_dimension_numbers<[1], [0], [0], [1], [0, 0, 1, 1], [], []>} : vector<14x168xf32>, vector<168x84xf32>, vector<14x84xf32> -> vector<14x84xf32>
    %40 = arith.maximumf %37, %39 : vector<14x84xf32>
    %41 = vector.extract_strided_slice %40 {offsets = [0, 0], sizes = [10, 84], strides = [1, 1]} : vector<14x84xf32> to vector<10x84xf32>
    %c0_32 = arith.constant 0 : index
    %c0_33 = arith.constant 0 : index
    %c0_34 = arith.constant 0 : index
    %42 = vector.load %arg8[%c0_32, %c0_33, %c0_34] : memref<5x84x160xf32, #tpu.memory_space<vmem>>, vector<1x84x160xf32>
    %43 = vector.shape_cast %42 : vector<1x84x160xf32> to vector<84x160xf32>
    %cst_35 = arith.constant dense<0.000000e+00> : vector<10x160xf32>
    %44 = tpu.matmul %41, %43, %cst_35 {dimension_numbers = #tpu.dot_dimension_numbers<[1], [0], [0], [1], [0, 0, 1, 1], [], []>} : vector<10x84xf32>, vector<84x160xf32>, vector<10x160xf32> -> vector<10x160xf32>
    %45 = vector.extract_strided_slice %40 {offsets = [1, 0], sizes = [10, 84], strides = [1, 1]} : vector<14x84xf32> to vector<10x84xf32>
    %c1_36 = arith.constant 1 : index
    %c0_37 = arith.constant 0 : index
    %c0_38 = arith.constant 0 : index
    %46 = vector.load %arg8[%c1_36, %c0_37, %c0_38] : memref<5x84x160xf32, #tpu.memory_space<vmem>>, vector<1x84x160xf32>
    %47 = vector.shape_cast %46 : vector<1x84x160xf32> to vector<84x160xf32>
    %cst_39 = arith.constant dense<0.000000e+00> : vector<10x160xf32>
    %48 = tpu.matmul %45, %47, %cst_39 {dimension_numbers = #tpu.dot_dimension_numbers<[1], [0], [0], [1], [0, 0, 1, 1], [], []>} : vector<10x84xf32>, vector<84x160xf32>, vector<10x160xf32> -> vector<10x160xf32>
    %49 = arith.addf %44, %48 : vector<10x160xf32>
    %50 = vector.extract_strided_slice %40 {offsets = [2, 0], sizes = [10, 84], strides = [1, 1]} : vector<14x84xf32> to vector<10x84xf32>
    %c2_40 = arith.constant 2 : index
    %c0_41 = arith.constant 0 : index
    %c0_42 = arith.constant 0 : index
    %51 = vector.load %arg8[%c2_40, %c0_41, %c0_42] : memref<5x84x160xf32, #tpu.memory_space<vmem>>, vector<1x84x160xf32>
    %52 = vector.shape_cast %51 : vector<1x84x160xf32> to vector<84x160xf32>
    %cst_43 = arith.constant dense<0.000000e+00> : vector<10x160xf32>
    %53 = tpu.matmul %50, %52, %cst_43 {dimension_numbers = #tpu.dot_dimension_numbers<[1], [0], [0], [1], [0, 0, 1, 1], [], []>} : vector<10x84xf32>, vector<84x160xf32>, vector<10x160xf32> -> vector<10x160xf32>
    %54 = arith.addf %49, %53 : vector<10x160xf32>
    %55 = vector.extract_strided_slice %40 {offsets = [3, 0], sizes = [10, 84], strides = [1, 1]} : vector<14x84xf32> to vector<10x84xf32>
    %c3_44 = arith.constant 3 : index
    %c0_45 = arith.constant 0 : index
    %c0_46 = arith.constant 0 : index
    %56 = vector.load %arg8[%c3_44, %c0_45, %c0_46] : memref<5x84x160xf32, #tpu.memory_space<vmem>>, vector<1x84x160xf32>
    %57 = vector.shape_cast %56 : vector<1x84x160xf32> to vector<84x160xf32>
    %cst_47 = arith.constant dense<0.000000e+00> : vector<10x160xf32>
    %58 = tpu.matmul %55, %57, %cst_47 {dimension_numbers = #tpu.dot_dimension_numbers<[1], [0], [0], [1], [0, 0, 1, 1], [], []>} : vector<10x84xf32>, vector<84x160xf32>, vector<10x160xf32> -> vector<10x160xf32>
    %59 = arith.addf %54, %58 : vector<10x160xf32>
    %60 = vector.extract_strided_slice %40 {offsets = [4, 0], sizes = [10, 84], strides = [1, 1]} : vector<14x84xf32> to vector<10x84xf32>
    %c4_48 = arith.constant 4 : index
    %c0_49 = arith.constant 0 : index
    %c0_50 = arith.constant 0 : index
    %61 = vector.load %arg8[%c4_48, %c0_49, %c0_50] : memref<5x84x160xf32, #tpu.memory_space<vmem>>, vector<1x84x160xf32>
    %62 = vector.shape_cast %61 : vector<1x84x160xf32> to vector<84x160xf32>
    %cst_51 = arith.constant dense<0.000000e+00> : vector<10x160xf32>
    %63 = tpu.matmul %60, %62, %cst_51 {dimension_numbers = #tpu.dot_dimension_numbers<[1], [0], [0], [1], [0, 0, 1, 1], [], []>} : vector<10x84xf32>, vector<84x160xf32>, vector<10x160xf32> -> vector<10x160xf32>
    %64 = arith.addf %59, %63 : vector<10x160xf32>
    %c0_52 = arith.constant 0 : index
    %c0_53 = arith.constant 0 : index
    %65 = vector.load %arg9[%c0_52, %c0_53] : memref<1x160xf32, #tpu.memory_space<vmem>>, vector<1x160xf32>
    %66 = vector.broadcast %65 : vector<1x160xf32> to vector<10x160xf32>
    %67 = arith.addf %64, %66 : vector<10x160xf32>
    %cst_54 = arith.constant 0.000000e+00 : f32
    %68 = vector.broadcast %cst_54 : f32 to vector<10x160xf32>
    %69 = arith.maximumf %67, %68 : vector<10x160xf32>
    %c0_55 = arith.constant 0 : index
    %c0_56 = arith.constant 0 : index
    %70 = vector.load %arg10[%c0_55, %c0_56] : memref<5x10xf32, #tpu.memory_space<vmem>>, vector<5x10xf32>
    %cst_57 = arith.constant dense<0.000000e+00> : vector<5x160xf32>
    %71 = tpu.matmul %70, %69, %cst_57 {dimension_numbers = #tpu.dot_dimension_numbers<[1], [0], [0], [1], [0, 0, 1, 1], [], []>} : vector<5x10xf32>, vector<10x160xf32>, vector<5x160xf32> -> vector<5x160xf32>
    %c0_58 = arith.constant 0 : index
    %c0_59 = arith.constant 0 : index
    %72 = vector.load %arg11[%c0_58, %c0_59] : memref<5x10xf32, #tpu.memory_space<vmem>>, vector<5x10xf32>
    %cst_60 = arith.constant dense<0.000000e+00> : vector<5x160xf32>
    %73 = tpu.matmul %72, %69, %cst_60 {dimension_numbers = #tpu.dot_dimension_numbers<[1], [0], [0], [1], [0, 0, 1, 1], [], []>} : vector<5x10xf32>, vector<10x160xf32>, vector<5x160xf32> -> vector<5x160xf32>
    %74 = arith.maximumf %71, %73 : vector<5x160xf32>
    %c0_61 = arith.constant 0 : index
    %c0_62 = arith.constant 0 : index
    %75 = vector.load %arg12[%c0_61, %c0_62] : memref<160x80xf32, #tpu.memory_space<vmem>>, vector<160x80xf32>
    %cst_63 = arith.constant dense<0.000000e+00> : vector<5x80xf32>
    %76 = tpu.matmul %74, %75, %cst_63 {dimension_numbers = #tpu.dot_dimension_numbers<[1], [0], [0], [1], [0, 0, 1, 1], [], []>} : vector<5x160xf32>, vector<160x80xf32>, vector<5x80xf32> -> vector<5x80xf32>
    %c0_64 = arith.constant 0 : index
    %c0_65 = arith.constant 0 : index
    %77 = vector.load %arg13[%c0_64, %c0_65] : memref<160x80xf32, #tpu.memory_space<vmem>>, vector<160x80xf32>
    %cst_66 = arith.constant dense<0.000000e+00> : vector<5x80xf32>
    %78 = tpu.matmul %74, %77, %cst_66 {dimension_numbers = #tpu.dot_dimension_numbers<[1], [0], [0], [1], [0, 0, 1, 1], [], []>} : vector<5x160xf32>, vector<160x80xf32>, vector<5x80xf32> -> vector<5x80xf32>
    %79 = arith.maximumf %76, %78 : vector<5x80xf32>
    %80 = vector.extract_strided_slice %79 {offsets = [0, 0], sizes = [1, 80], strides = [1, 1]} : vector<5x80xf32> to vector<1x80xf32>
    %c0_67 = arith.constant 0 : index
    %c0_68 = arith.constant 0 : index
    %c0_69 = arith.constant 0 : index
    %81 = vector.load %arg14[%c0_67, %c0_68, %c0_69] : memref<5x80x250xf32, #tpu.memory_space<vmem>>, vector<1x80x250xf32>
    %82 = vector.shape_cast %81 : vector<1x80x250xf32> to vector<80x250xf32>
    %cst_70 = arith.constant dense<0.000000e+00> : vector<1x250xf32>
    %83 = tpu.matmul %80, %82, %cst_70 {dimension_numbers = #tpu.dot_dimension_numbers<[1], [0], [0], [1], [0, 0, 1, 1], [], []>} : vector<1x80xf32>, vector<80x250xf32>, vector<1x250xf32> -> vector<1x250xf32>
    %84 = vector.extract_strided_slice %79 {offsets = [1, 0], sizes = [1, 80], strides = [1, 1]} : vector<5x80xf32> to vector<1x80xf32>
    %c1_71 = arith.constant 1 : index
    %c0_72 = arith.constant 0 : index
    %c0_73 = arith.constant 0 : index
    %85 = vector.load %arg14[%c1_71, %c0_72, %c0_73] : memref<5x80x250xf32, #tpu.memory_space<vmem>>, vector<1x80x250xf32>
    %86 = vector.shape_cast %85 : vector<1x80x250xf32> to vector<80x250xf32>
    %cst_74 = arith.constant dense<0.000000e+00> : vector<1x250xf32>
    %87 = tpu.matmul %84, %86, %cst_74 {dimension_numbers = #tpu.dot_dimension_numbers<[1], [0], [0], [1], [0, 0, 1, 1], [], []>} : vector<1x80xf32>, vector<80x250xf32>, vector<1x250xf32> -> vector<1x250xf32>
    %88 = arith.addf %83, %87 : vector<1x250xf32>
    %89 = vector.extract_strided_slice %79 {offsets = [2, 0], sizes = [1, 80], strides = [1, 1]} : vector<5x80xf32> to vector<1x80xf32>
    %c2_75 = arith.constant 2 : index
    %c0_76 = arith.constant 0 : index
    %c0_77 = arith.constant 0 : index
    %90 = vector.load %arg14[%c2_75, %c0_76, %c0_77] : memref<5x80x250xf32, #tpu.memory_space<vmem>>, vector<1x80x250xf32>
    %91 = vector.shape_cast %90 : vector<1x80x250xf32> to vector<80x250xf32>
    %cst_78 = arith.constant dense<0.000000e+00> : vector<1x250xf32>
    %92 = tpu.matmul %89, %91, %cst_78 {dimension_numbers = #tpu.dot_dimension_numbers<[1], [0], [0], [1], [0, 0, 1, 1], [], []>} : vector<1x80xf32>, vector<80x250xf32>, vector<1x250xf32> -> vector<1x250xf32>
    %93 = arith.addf %88, %92 : vector<1x250xf32>
    %94 = vector.extract_strided_slice %79 {offsets = [3, 0], sizes = [1, 80], strides = [1, 1]} : vector<5x80xf32> to vector<1x80xf32>
    %c3_79 = arith.constant 3 : index
    %c0_80 = arith.constant 0 : index
    %c0_81 = arith.constant 0 : index
    %95 = vector.load %arg14[%c3_79, %c0_80, %c0_81] : memref<5x80x250xf32, #tpu.memory_space<vmem>>, vector<1x80x250xf32>
    %96 = vector.shape_cast %95 : vector<1x80x250xf32> to vector<80x250xf32>
    %cst_82 = arith.constant dense<0.000000e+00> : vector<1x250xf32>
    %97 = tpu.matmul %94, %96, %cst_82 {dimension_numbers = #tpu.dot_dimension_numbers<[1], [0], [0], [1], [0, 0, 1, 1], [], []>} : vector<1x80xf32>, vector<80x250xf32>, vector<1x250xf32> -> vector<1x250xf32>
    %98 = arith.addf %93, %97 : vector<1x250xf32>
    %99 = vector.extract_strided_slice %79 {offsets = [4, 0], sizes = [1, 80], strides = [1, 1]} : vector<5x80xf32> to vector<1x80xf32>
    %c4_83 = arith.constant 4 : index
    %c0_84 = arith.constant 0 : index
    %c0_85 = arith.constant 0 : index
    %100 = vector.load %arg14[%c4_83, %c0_84, %c0_85] : memref<5x80x250xf32, #tpu.memory_space<vmem>>, vector<1x80x250xf32>
    %101 = vector.shape_cast %100 : vector<1x80x250xf32> to vector<80x250xf32>
    %cst_86 = arith.constant dense<0.000000e+00> : vector<1x250xf32>
    %102 = tpu.matmul %99, %101, %cst_86 {dimension_numbers = #tpu.dot_dimension_numbers<[1], [0], [0], [1], [0, 0, 1, 1], [], []>} : vector<1x80xf32>, vector<80x250xf32>, vector<1x250xf32> -> vector<1x250xf32>
    %103 = arith.addf %98, %102 : vector<1x250xf32>
    %c0_87 = arith.constant 0 : index
    %c0_88 = arith.constant 0 : index
    %104 = vector.load %arg15[%c0_87, %c0_88] : memref<1x250xf32, #tpu.memory_space<vmem>>, vector<1x250xf32>
    %105 = arith.addf %103, %104 : vector<1x250xf32>
    %cst_89 = arith.constant 0.000000e+00 : f32
    %106 = vector.broadcast %cst_89 : f32 to vector<1x250xf32>
    %107 = arith.maximumf %105, %106 : vector<1x250xf32>
    %c0_90 = arith.constant 0 : index
    %c0_91 = arith.constant 0 : index
    %108 = vector.load %arg16[%c0_90, %c0_91] : memref<250x160xf32, #tpu.memory_space<vmem>>, vector<250x160xf32>
    %cst_92 = arith.constant dense<0.000000e+00> : vector<1x160xf32>
    %109 = tpu.matmul %107, %108, %cst_92 {dimension_numbers = #tpu.dot_dimension_numbers<[1], [0], [0], [1], [0, 0, 1, 1], [], []>} : vector<1x250xf32>, vector<250x160xf32>, vector<1x160xf32> -> vector<1x160xf32>
    %c0_93 = arith.constant 0 : index
    %c0_94 = arith.constant 0 : index
    %110 = vector.load %arg17[%c0_93, %c0_94] : memref<1x160xf32, #tpu.memory_space<vmem>>, vector<1x160xf32>
    %111 = arith.addf %109, %110 : vector<1x160xf32>
    %cst_95 = arith.constant 0.000000e+00 : f32
    %112 = vector.broadcast %cst_95 : f32 to vector<1x160xf32>
    %113 = arith.maximumf %111, %112 : vector<1x160xf32>
    %c0_96 = arith.constant 0 : index
    %c0_97 = arith.constant 0 : index
    %114 = vector.load %arg18[%c0_96, %c0_97] : memref<160x100xf32, #tpu.memory_space<vmem>>, vector<160x100xf32>
    %cst_98 = arith.constant dense<0.000000e+00> : vector<1x100xf32>
    %115 = tpu.matmul %113, %114, %cst_98 {dimension_numbers = #tpu.dot_dimension_numbers<[1], [0], [0], [1], [0, 0, 1, 1], [], []>} : vector<1x160xf32>, vector<160x100xf32>, vector<1x100xf32> -> vector<1x100xf32>
    %c0_99 = arith.constant 0 : index
    %c0_100 = arith.constant 0 : index
    %116 = vector.load %arg19[%c0_99, %c0_100] : memref<1x100xf32, #tpu.memory_space<vmem>>, vector<1x100xf32>
    %117 = arith.addf %115, %116 : vector<1x100xf32>
    %c0_101 = arith.constant 0 : index
    %c0_102 = arith.constant 0 : index
    %c0_103 = arith.constant 0 : index
    %118 = vector.load %arg20[%c0_101, %c0_102, %c0_103] : memref<1x1x100xf32, #tpu.memory_space<vmem>>, vector<1x1x100xf32>
    %119 = vector.shape_cast %118 : vector<1x1x100xf32> to vector<1x100xf32>
    %120 = vector.shape_cast %117 : vector<1x100xf32> to vector<1x1x100xf32>
    tpu.vector_store %arg20[%c0_101, %c0_102, %c0_103], %120 {strides = array<i32>} : memref<1x1x100xf32, #tpu.memory_space<vmem>>, vector<1x1x100xf32>,
    return
  }
  func.func @transform_0(%arg0: i32) -> (i32, i32, i32) {
    %c0_i32 = arith.constant 0 : i32
    %c0_i32_0 = arith.constant 0 : i32
    %c0_i32_1 = arith.constant 0 : i32
    return %arg0, %c0_i32, %c0_i32_0 : i32, i32, i32
  }
  func.func @transform_1(%arg0: i32) -> (i32, i32, i32) {
    %c0_i32 = arith.constant 0 : i32
    %c0_i32_0 = arith.constant 0 : i32
    %c0_i32_1 = arith.constant 0 : i32
    %c0_i32_2 = arith.constant 0 : i32
    return %c0_i32, %c0_i32_0, %c0_i32_1 : i32, i32, i32
  }
  func.func @transform_2(%arg0: i32) -> (i32, i32) {
    %c0_i32 = arith.constant 0 : i32
    %c0_i32_0 = arith.constant 0 : i32
    %c0_i32_1 = arith.constant 0 : i32
    return %c0_i32, %c0_i32_0 : i32, i32
  }
  func.func @transform_3(%arg0: i32) -> (i32, i32) {
    %c0_i32 = arith.constant 0 : i32
    %c0_i32_0 = arith.constant 0 : i32
    %c0_i32_1 = arith.constant 0 : i32
    return %c0_i32, %c0_i32_0 : i32, i32
  }
  func.func @transform_4(%arg0: i32) -> (i32, i32) {
    %c0_i32 = arith.constant 0 : i32
    %c0_i32_0 = arith.constant 0 : i32
    %c0_i32_1 = arith.constant 0 : i32
    return %c0_i32, %c0_i32_0 : i32, i32
  }
  func.func @transform_5(%arg0: i32) -> (i32, i32) {
    %c0_i32 = arith.constant 0 : i32
    %c0_i32_0 = arith.constant 0 : i32
    %c0_i32_1 = arith.constant 0 : i32
    return %c0_i32, %c0_i32_0 : i32, i32
  }
  func.func @transform_6(%arg0: i32) -> (i32, i32) {
    %c0_i32 = arith.constant 0 : i32
    %c0_i32_0 = arith.constant 0 : i32
    %c0_i32_1 = arith.constant 0 : i32
    return %c0_i32, %c0_i32_0 : i32, i32
  }
  func.func @transform_7(%arg0: i32) -> (i32, i32, i32) {
    %c0_i32 = arith.constant 0 : i32
    %c0_i32_0 = arith.constant 0 : i32
    %c0_i32_1 = arith.constant 0 : i32
    %c0_i32_2 = arith.constant 0 : i32
    return %c0_i32, %c0_i32_0, %c0_i32_1 : i32, i32, i32
  }
  func.func @transform_8(%arg0: i32) -> (i32, i32) {
    %c0_i32 = arith.constant 0 : i32
    %c0_i32_0 = arith.constant 0 : i32
    %c0_i32_1 = arith.constant 0 : i32
    return %c0_i32, %c0_i32_0 : i32, i32
  }
  func.func @transform_9(%arg0: i32) -> (i32, i32) {
    %c0_i32 = arith.constant 0 : i32
    %c0_i32_0 = arith.constant 0 : i32
    %c0_i32_1 = arith.constant 0 : i32
    return %c0_i32, %c0_i32_0 : i32, i32
  }
  func.func @transform_10(%arg0: i32) -> (i32, i32) {
    %c0_i32 = arith.constant 0 : i32
    %c0_i32_0 = arith.constant 0 : i32
    %c0_i32_1 = arith.constant 0 : i32
    return %c0_i32, %c0_i32_0 : i32, i32
  }
  func.func @transform_11(%arg0: i32) -> (i32, i32) {
    %c0_i32 = arith.constant 0 : i32
    %c0_i32_0 = arith.constant 0 : i32
    %c0_i32_1 = arith.constant 0 : i32
    return %c0_i32, %c0_i32_0 : i32, i32
  }
  func.func @transform_12(%arg0: i32) -> (i32, i32) {
    %c0_i32 = arith.constant 0 : i32
    %c0_i32_0 = arith.constant 0 : i32
    %c0_i32_1 = arith.constant 0 : i32
    return %c0_i32, %c0_i32_0 : i32, i32
  }
  func.func @transform_13(%arg0: i32) -> (i32, i32, i32) {
    %c0_i32 = arith.constant 0 : i32
    %c0_i32_0 = arith.constant 0 : i32
    %c0_i32_1 = arith.constant 0 : i32
    %c0_i32_2 = arith.constant 0 : i32
    return %c0_i32, %c0_i32_0, %c0_i32_1 : i32, i32, i32
  }
  func.func @transform_14(%arg0: i32) -> (i32, i32) {
    %c0_i32 = arith.constant 0 : i32
    %c0_i32_0 = arith.constant 0 : i32
    %c0_i32_1 = arith.constant 0 : i32
    return %c0_i32, %c0_i32_0 : i32, i32
  }
  func.func @transform_15(%arg0: i32) -> (i32, i32) {
    %c0_i32 = arith.constant 0 : i32
    %c0_i32_0 = arith.constant 0 : i32
    %c0_i32_1 = arith.constant 0 : i32
    return %c0_i32, %c0_i32_0 : i32, i32
  }
  func.func @transform_16(%arg0: i32) -> (i32, i32) {
    %c0_i32 = arith.constant 0 : i32
    %c0_i32_0 = arith.constant 0 : i32
    %c0_i32_1 = arith.constant 0 : i32
    return %c0_i32, %c0_i32_0 : i32, i32
  }
  func.func @transform_17(%arg0: i32) -> (i32, i32) {
    %c0_i32 = arith.constant 0 : i32
    %c0_i32_0 = arith.constant 0 : i32
    %c0_i32_1 = arith.constant 0 : i32
    return %c0_i32, %c0_i32_0 : i32, i32
  }
  func.func @transform_18(%arg0: i32) -> (i32, i32) {
    %c0_i32 = arith.constant 0 : i32
    %c0_i32_0 = arith.constant 0 : i32
    %c0_i32_1 = arith.constant 0 : i32
    return %c0_i32, %c0_i32_0 : i32, i32
  }
  func.func @transform_19(%arg0: i32) -> (i32, i32, i32) {
    %c0_i32 = arith.constant 0 : i32
    %c0_i32_0 = arith.constant 0 : i32
    %c0_i32_1 = arith.constant 0 : i32
    return %arg0, %c0_i32, %c0_i32_0 : i32, i32, i32
  }
}

</mosaic_0001>

<llo_original>
// kernel: net_forward.1
$region0: #{net_forward.1}
  #allocation0 [shape = 'u32[]', space=smem, size = 0x4, offset = 0x4, fixed_abs, tag = 'smem constant byte address 0x4 - core index']
  #allocation1 [shape = 'u32[144,128]{1,0:T(1,128)}', space=vmem, size = 0x12000, scoped, tag = 'internal scratch']
  %s0 = inlined_call_operand.vmem [shape: f32[2,32,96], index: 0, kind: input, shape index: {}]
  %s1 = inlined_call_operand.vmem [shape: f32[5,96,168], index: 1, kind: input, shape index: {}]
  %s2 = inlined_call_operand.vmem [shape: f32[1,168], index: 2, kind: input, shape index: {}]
  %s3 = inlined_call_operand.vmem [shape: f32[14,28], index: 3, kind: input, shape index: {}]
  %s4 = inlined_call_operand.vmem [shape: f32[14,28], index: 4, kind: input, shape index: {}]
  %s5 = inlined_call_operand.vmem [shape: f32[168,84], index: 5, kind: input, shape index: {}]
  %s6 = inlined_call_operand.vmem [shape: f32[168,84], index: 6, kind: input, shape index: {}]
  %s7 = inlined_call_operand.vmem [shape: f32[5,84,160], index: 7, kind: input, shape index: {}]
  %s8 = inlined_call_operand.vmem [shape: f32[1,160], index: 8, kind: input, shape index: {}]
  %s9 = inlined_call_operand.vmem [shape: f32[5,10], index: 9, kind: input, shape index: {}]
  %s10 = inlined_call_operand.vmem [shape: f32[5,10], index: 10, kind: input, shape index: {}]
  %s11 = inlined_call_operand.vmem [shape: f32[160,80], index: 11, kind: input, shape index: {}]
  %s12 = inlined_call_operand.vmem [shape: f32[160,80], index: 12, kind: input, shape index: {}]
  %s13 = inlined_call_operand.vmem [shape: f32[5,80,250], index: 13, kind: input, shape index: {}]
  %s14 = inlined_call_operand.vmem [shape: f32[1,250], index: 14, kind: input, shape index: {}]
  %s15 = inlined_call_operand.vmem [shape: f32[250,160], index: 15, kind: input, shape index: {}]
  %s16 = inlined_call_operand.vmem [shape: f32[1,160], index: 16, kind: input, shape index: {}]
  %s17 = inlined_call_operand.vmem [shape: f32[160,100], index: 17, kind: input, shape index: {}]
  %s18 = inlined_call_operand.vmem [shape: f32[1,100], index: 18, kind: input, shape index: {}]
  %s19 = inlined_call_operand.hbm [shape: f32[2,1,100], index: 19, kind: output, shape index: {}]
  %s20 = sld [smem:[#allocation0]]
  $region109: #{net_forward.1} parent=0
    _
  %s22 = ssub.s32 1, %s20
  %s23 = scalar_select 0, %s22, %s20
  $region1: #{net_forward.1} parent=0
    #allocation2 [shape = 'u8[1024]{0}', space=vmem, size = 0x400, scoped, tag = 'output window, operand 0']
    #allocation3 [shape = 's32[2]{0}', space=sflag, size = 0x8, scoped, tag = 'scoped memory for net_forward.1']
    %24 = vsyncpa [#allocation3], 0
    %s25 = scalar_lea.sflag [#allocation3], 1
    %26 = vsyncpa %s25, 0
    loop: start=0, step=1, limit=4
    $region2: #{net_forward.1} parent=1 // loop_pre_header
      _
    $region3: #{net_forward.1} parent=1 // loop_header
      %s28 = sphi 0, %s32
      %p29 = scmp.ge.s32.totalorder %s28, 4
      %s38 = sphi 0, %s40
      %s41 = sphi 0, %s38
      %s42 = sphi 0, %s41
      %s58 = sphi 0, %s42
      %s62 = sphi 0, %s62
      %s64 = sphi 0, %s62
      %s65 = sphi 0, %s64
      %s79 = sphi 0, %s65
      %s83 = sphi 0, %s83
      %s85 = sphi 0, %s83
      %s86 = sphi 0, %s85
      %s100 = sphi 0, %s86
      %s104 = sphi 0, %s104
      %s106 = sphi 0, %s104
      %s107 = sphi 0, %s106
      %s121 = sphi 0, %s107
      %s125 = sphi 0, %s125
      %s127 = sphi 0, %s125
      %s128 = sphi 0, %s127
      %s142 = sphi 0, %s128
      %s146 = sphi 0, %s146
      %s148 = sphi 0, %s146
      %s149 = sphi 0, %s148
      %s163 = sphi 0, %s149
      %s167 = sphi 0, %s167
      %s169 = sphi 0, %s167
      %s170 = sphi 0, %s169
      %s184 = sphi 0, %s170
      %s188 = sphi 0, %s188
      %s190 = sphi 0, %s188
      %s191 = sphi 0, %s190
      %s205 = sphi 0, %s191
      %s209 = sphi 0, %s209
      %s211 = sphi 0, %s209
      %s212 = sphi 0, %s211
      %s226 = sphi 0, %s212
      %s230 = sphi 0, %s230
      %s232 = sphi 0, %s230
      %s233 = sphi 0, %s232
      %s247 = sphi 0, %s233
      %s251 = sphi 0, %s251
      %s253 = sphi 0, %s251
      %s254 = sphi 0, %s253
      %s268 = sphi 0, %s254
      %s272 = sphi 0, %s272
      %s274 = sphi 0, %s272
      %s275 = sphi 0, %s274
      %s289 = sphi 0, %s275
      %s293 = sphi 0, %s293
      %s295 = sphi 0, %s293
      %s296 = sphi 0, %s295
      %s310 = sphi 0, %s296
      %s314 = sphi 0, %s314
      %s316 = sphi 0, %s314
      %s317 = sphi 0, %s316
      %s331 = sphi 0, %s317
      %s335 = sphi 0, %s335
      %s337 = sphi 0, %s335
      %s338 = sphi 0, %s337
      %s352 = sphi 0, %s338
      %s356 = sphi 0, %s356
      %s358 = sphi 0, %s356
      %s359 = sphi 0, %s358
      %s373 = sphi 0, %s359
      %s377 = sphi 0, %s377
      %s379 = sphi 0, %s377
      %s380 = sphi 0, %s379
      %s394 = sphi 0, %s380
      %s398 = sphi 0, %s398
      %s400 = sphi 0, %s398
      %s401 = sphi 0, %s400
      %s415 = sphi 0, %s401
      %s419 = sphi 0, %s419
      %s421 = sphi 0, %s419
      %s422 = sphi 0, %s421
      %s436 = sphi 0, %s422
      %s442 = sphi 0, %s444
      %s445 = sphi 0, %s442
      %s446 = sphi 0, %s445
      %s462 = sphi 0, %s446
    $region4: #{net_forward.1} parent=1 // loop_header_branch
      %31 = sbr.rel (%p29) target = $region8
    $region5: #{net_forward.1} parent=1 // loop_body
      %s33 = ssub.s32 %s28, 1
      %s34 = ssub.s32 %s28, 2
      %s35 = sadd.s32 %s28, 1
      %s36 = ssub.s32 %s28, %s35
      %p37 = scmp.eq.s32.totalorder %s36, 0
      %s39 = sadd.s32 %s38, 1
      %s40 = scalar_select %p37, %s38, %s39
      %p43 = pneg %p37
      %p44 = scmp.eq.s32.totalorder %s28, 1
      %p45 = por %p43, %p44
      %p46 = scmp.ne.s32.totalorder %s38, %s41
      %p47 = scmp.eq.s32.totalorder %s28, 0
      %p48 = por %p46, %p47
      %p49 = scmp.ne.s32.totalorder %s38, %s41
      %p50 = scmp.eq.s32.totalorder %s33, 1
      %p51 = por %p49, %p50
      %p52 = scmp.ne.s32.totalorder %s41, %s42
      %p53 = scmp.eq.s32.totalorder %s33, 0
      %p54 = por %p52, %p53
      %p55 = scmp.ne.s32.totalorder %s41, %s42
      %p56 = scmp.eq.s32.totalorder %s34, 1
      %p57 = por %p55, %p56
      %p59 = scmp.ne.s32.totalorder %s42, %s58
      %p60 = scmp.eq.s32.totalorder %s34, 0
      %p61 = por %p59, %p60
      %s63 = sadd.s32 %s62, 1
      %p66 = scmp.eq.s32.totalorder %s28, 1
      %p67 = scmp.ne.s32.totalorder %s62, %s64
      %p68 = scmp.eq.s32.totalorder %s28, 0
      %p69 = por %p67, %p68
      %p70 = scmp.ne.s32.totalorder %s62, %s64
      %p71 = scmp.eq.s32.totalorder %s33, 1
      %p72 = por %p70, %p71
      %p73 = scmp.ne.s32.totalorder %s64, %s65
      %p74 = scmp.eq.s32.totalorder %s33, 0
      %p75 = por %p73, %p74
      %p76 = scmp.ne.s32.totalorder %s64, %s65
      %p77 = scmp.eq.s32.totalorder %s34, 1
      %p78 = por %p76, %p77
      %p80 = scmp.ne.s32.totalorder %s65, %s79
      %p81 = scmp.eq.s32.totalorder %s34, 0
      %p82 = por %p80, %p81
      %s84 = sadd.s32 %s83, 1
      %p87 = scmp.eq.s32.totalorder %s28, 1
      %p88 = scmp.ne.s32.totalorder %s83, %s85
      %p89 = scmp.eq.s32.totalorder %s28, 0
      %p90 = por %p88, %p89
      %p91 = scmp.ne.s32.totalorder %s83, %s85
      %p92 = scmp.eq.s32.totalorder %s33, 1
      %p93 = por %p91, %p92
      %p94 = scmp.ne.s32.totalorder %s85, %s86
      %p95 = scmp.eq.s32.totalorder %s33, 0
      %p96 = por %p94, %p95
      %p97 = scmp.ne.s32.totalorder %s85, %s86
      %p98 = scmp.eq.s32.totalorder %s34, 1
      %p99 = por %p97, %p98
      %p101 = scmp.ne.s32.totalorder %s86, %s100
      %p102 = scmp.eq.s32.totalorder %s34, 0
      %p103 = por %p101, %p102
      %s105 = sadd.s32 %s104, 1
      %p108 = scmp.eq.s32.totalorder %s28, 1
      %p109 = scmp.ne.s32.totalorder %s104, %s106
      %p110 = scmp.eq.s32.totalorder %s28, 0
      %p111 = por %p109, %p110
      %p112 = scmp.ne.s32.totalorder %s104, %s106
      %p113 = scmp.eq.s32.totalorder %s33, 1
      %p114 = por %p112, %p113
      %p115 = scmp.ne.s32.totalorder %s106, %s107
      %p116 = scmp.eq.s32.totalorder %s33, 0
      %p117 = por %p115, %p116
      %p118 = scmp.ne.s32.totalorder %s106, %s107
      %p119 = scmp.eq.s32.totalorder %s34, 1
      %p120 = por %p118, %p119
      %p122 = scmp.ne.s32.totalorder %s107, %s121
      %p123 = scmp.eq.s32.totalorder %s34, 0
      %p124 = por %p122, %p123
      %s126 = sadd.s32 %s125, 1
      %p129 = scmp.eq.s32.totalorder %s28, 1
      %p130 = scmp.ne.s32.totalorder %s125, %s127
      %p131 = scmp.eq.s32.totalorder %s28, 0
      %p132 = por %p130, %p131
      %p133 = scmp.ne.s32.totalorder %s125, %s127
      %p134 = scmp.eq.s32.totalorder %s33, 1
      %p135 = por %p133, %p134
      %p136 = scmp.ne.s32.totalorder %s127, %s128
      %p137 = scmp.eq.s32.totalorder %s33, 0
      %p138 = por %p136, %p137
      %p139 = scmp.ne.s32.totalorder %s127, %s128
      %p140 = scmp.eq.s32.totalorder %s34, 1
      %p141 = por %p139, %p140
      %p143 = scmp.ne.s32.totalorder %s128, %s142
      %p144 = scmp.eq.s32.totalorder %s34, 0
      %p145 = por %p143, %p144
      %s147 = sadd.s32 %s146, 1
      %p150 = scmp.eq.s32.totalorder %s28, 1
      %p151 = scmp.ne.s32.totalorder %s146, %s148
      %p152 = scmp.eq.s32.totalorder %s28, 0
      %p153 = por %p151, %p152
      %p154 = scmp.ne.s32.totalorder %s146, %s148
      %p155 = scmp.eq.s32.totalorder %s33, 1
      %p156 = por %p154, %p155
      %p157 = scmp.ne.s32.totalorder %s148, %s149
      %p158 = scmp.eq.s32.totalorder %s33, 0
      %p159 = por %p157, %p158
      %p160 = scmp.ne.s32.totalorder %s148, %s149
      %p161 = scmp.eq.s32.totalorder %s34, 1
      %p162 = por %p160, %p161
      %p164 = scmp.ne.s32.totalorder %s149, %s163
      %p165 = scmp.eq.s32.totalorder %s34, 0
      %p166 = por %p164, %p165
      %s168 = sadd.s32 %s167, 1
      %p171 = scmp.eq.s32.totalorder %s28, 1
      %p172 = scmp.ne.s32.totalorder %s167, %s169
      %p173 = scmp.eq.s32.totalorder %s28, 0
      %p174 = por %p172, %p173
      %p175 = scmp.ne.s32.totalorder %s167, %s169
      %p176 = scmp.eq.s32.totalorder %s33, 1
      %p177 = por %p175, %p176
      %p178 = scmp.ne.s32.totalorder %s169, %s170
      %p179 = scmp.eq.s32.totalorder %s33, 0
      %p180 = por %p178, %p179
      %p181 = scmp.ne.s32.totalorder %s169, %s170
      %p182 = scmp.eq.s32.totalorder %s34, 1
      %p183 = por %p181, %p182
      %p185 = scmp.ne.s32.totalorder %s170, %s184
      %p186 = scmp.eq.s32.totalorder %s34, 0
      %p187 = por %p185, %p186
      %s189 = sadd.s32 %s188, 1
      %p192 = scmp.eq.s32.totalorder %s28, 1
      %p193 = scmp.ne.s32.totalorder %s188, %s190
      %p194 = scmp.eq.s32.totalorder %s28, 0
      %p195 = por %p193, %p194
      %p196 = scmp.ne.s32.totalorder %s188, %s190
      %p197 = scmp.eq.s32.totalorder %s33, 1
      %p198 = por %p196, %p197
      %p199 = scmp.ne.s32.totalorder %s190, %s191
      %p200 = scmp.eq.s32.totalorder %s33, 0
      %p201 = por %p199, %p200
      %p202 = scmp.ne.s32.totalorder %s190, %s191
      %p203 = scmp.eq.s32.totalorder %s34, 1
      %p204 = por %p202, %p203
      %p206 = scmp.ne.s32.totalorder %s191, %s205
      %p207 = scmp.eq.s32.totalorder %s34, 0
      %p208 = por %p206, %p207
      %s210 = sadd.s32 %s209, 1
      %p213 = scmp.eq.s32.totalorder %s28, 1
      %p214 = scmp.ne.s32.totalorder %s209, %s211
      %p215 = scmp.eq.s32.totalorder %s28, 0
      %p216 = por %p214, %p215
      %p217 = scmp.ne.s32.totalorder %s209, %s211
      %p218 = scmp.eq.s32.totalorder %s33, 1
      %p219 = por %p217, %p218
      %p220 = scmp.ne.s32.totalorder %s211, %s212
      %p221 = scmp.eq.s32.totalorder %s33, 0
      %p222 = por %p220, %p221
      %p223 = scmp.ne.s32.totalorder %s211, %s212
      %p224 = scmp.eq.s32.totalorder %s34, 1
      %p225 = por %p223, %p224
      %p227 = scmp.ne.s32.totalorder %s212, %s226
      %p228 = scmp.eq.s32.totalorder %s34, 0
      %p229 = por %p227, %p228
      %s231 = sadd.s32 %s230, 1
      %p234 = scmp.eq.s32.totalorder %s28, 1
      %p235 = scmp.ne.s32.totalorder %s230, %s232
      %p236 = scmp.eq.s32.totalorder %s28, 0
      %p237 = por %p235, %p236
      %p238 = scmp.ne.s32.totalorder %s230, %s232
      %p239 = scmp.eq.s32.totalorder %s33, 1
      %p240 = por %p238, %p239
      %p241 = scmp.ne.s32.totalorder %s232, %s233
      %p242 = scmp.eq.s32.totalorder %s33, 0
      %p243 = por %p241, %p242
      %p244 = scmp.ne.s32.totalorder %s232, %s233
      %p245 = scmp.eq.s32.totalorder %s34, 1
      %p246 = por %p244, %p245
      %p248 = scmp.ne.s32.totalorder %s233, %s247
      %p249 = scmp.eq.s32.totalorder %s34, 0
      %p250 = por %p248, %p249
      %s252 = sadd.s32 %s251, 1
      %p255 = scmp.eq.s32.totalorder %s28, 1
      %p256 = scmp.ne.s32.totalorder %s251, %s253
      %p257 = scmp.eq.s32.totalorder %s28, 0
      %p258 = por %p256, %p257
      %p259 = scmp.ne.s32.totalorder %s251, %s253
      %p260 = scmp.eq.s32.totalorder %s33, 1
      %p261 = por %p259, %p260
      %p262 = scmp.ne.s32.totalorder %s253, %s254
      %p263 = scmp.eq.s32.totalorder %s33, 0
      %p264 = por %p262, %p263
      %p265 = scmp.ne.s32.totalorder %s253, %s254
      %p266 = scmp.eq.s32.totalorder %s34, 1
      %p267 = por %p265, %p266
      %p269 = scmp.ne.s32.totalorder %s254, %s268
      %p270 = scmp.eq.s32.totalorder %s34, 0
      %p271 = por %p269, %p270
      %s273 = sadd.s32 %s272, 1
      %p276 = scmp.eq.s32.totalorder %s28, 1
      %p277 = scmp.ne.s32.totalorder %s272, %s274
      %p278 = scmp.eq.s32.totalorder %s28, 0
      %p279 = por %p277, %p278
      %p280 = scmp.ne.s32.totalorder %s272, %s274
      %p281 = scmp.eq.s32.totalorder %s33, 1
      %p282 = por %p280, %p281
      %p283 = scmp.ne.s32.totalorder %s274, %s275
      %p284 = scmp.eq.s32.totalorder %s33, 0
      %p285 = por %p283, %p284
      %p286 = scmp.ne.s32.totalorder %s274, %s275
      %p287 = scmp.eq.s32.totalorder %s34, 1
      %p288 = por %p286, %p287
      %p290 = scmp.ne.s32.totalorder %s275, %s289
      %p291 = scmp.eq.s32.totalorder %s34, 0
      %p292 = por %p290, %p291
      %s294 = sadd.s32 %s293, 1
      %p297 = scmp.eq.s32.totalorder %s28, 1
      %p298 = scmp.ne.s32.totalorder %s293, %s295
      %p299 = scmp.eq.s32.totalorder %s28, 0
      %p300 = por %p298, %p299
      %p301 = scmp.ne.s32.totalorder %s293, %s295
      %p302 = scmp.eq.s32.totalorder %s33, 1
      %p303 = por %p301, %p302
      %p304 = scmp.ne.s32.totalorder %s295, %s296
      %p305 = scmp.eq.s32.totalorder %s33, 0
      %p306 = por %p304, %p305
      %p307 = scmp.ne.s32.totalorder %s295, %s296
      %p308 = scmp.eq.s32.totalorder %s34, 1
      %p309 = por %p307, %p308
      %p311 = scmp.ne.s32.totalorder %s296, %s310
      %p312 = scmp.eq.s32.totalorder %s34, 0
      %p313 = por %p311, %p312
      %s315 = sadd.s32 %s314, 1
      %p318 = scmp.eq.s32.totalorder %s28, 1
      %p319 = scmp.ne.s32.totalorder %s314, %s316
      %p320 = scmp.eq.s32.totalorder %s28, 0
      %p321 = por %p319, %p320
      %p322 = scmp.ne.s32.totalorder %s314, %s316
      %p323 = scmp.eq.s32.totalorder %s33, 1
      %p324 = por %p322, %p323
      %p325 = scmp.ne.s32.totalorder %s316, %s317
      %p326 = scmp.eq.s32.totalorder %s33, 0
      %p327 = por %p325, %p326
      %p328 = scmp.ne.s32.totalorder %s316, %s317
      %p329 = scmp.eq.s32.totalorder %s34, 1
      %p330 = por %p328, %p329
      %p332 = scmp.ne.s32.totalorder %s317, %s331
      %p333 = scmp.eq.s32.totalorder %s34, 0
      %p334 = por %p332, %p333
      %s336 = sadd.s32 %s335, 1
      %p339 = scmp.eq.s32.totalorder %s28, 1
      %p340 = scmp.ne.s32.totalorder %s335, %s337
      %p341 = scmp.eq.s32.totalorder %s28, 0
      %p342 = por %p340, %p341
      %p343 = scmp.ne.s32.totalorder %s335, %s337
      %p344 = scmp.eq.s32.totalorder %s33, 1
      %p345 = por %p343, %p344
      %p346 = scmp.ne.s32.totalorder %s337, %s338
      %p347 = scmp.eq.s32.totalorder %s33, 0
      %p348 = por %p346, %p347
      %p349 = scmp.ne.s32.totalorder %s337, %s338
      %p350 = scmp.eq.s32.totalorder %s34, 1
      %p351 = por %p349, %p350
      %p353 = scmp.ne.s32.totalorder %s338, %s352
      %p354 = scmp.eq.s32.totalorder %s34, 0
      %p355 = por %p353, %p354
      %s357 = sadd.s32 %s356, 1
      %p360 = scmp.eq.s32.totalorder %s28, 1
      %p361 = scmp.ne.s32.totalorder %s356, %s358
      %p362 = scmp.eq.s32.totalorder %s28, 0
      %p363 = por %p361, %p362
      %p364 = scmp.ne.s32.totalorder %s356, %s358
      %p365 = scmp.eq.s32.totalorder %s33, 1
      %p366 = por %p364, %p365
      %p367 = scmp.ne.s32.totalorder %s358, %s359
      %p368 = scmp.eq.s32.totalorder %s33, 0
      %p369 = por %p367, %p368
      %p370 = scmp.ne.s32.totalorder %s358, %s359
      %p371 = scmp.eq.s32.totalorder %s34, 1
      %p372 = por %p370, %p371
      %p374 = scmp.ne.s32.totalorder %s359, %s373
      %p375 = scmp.eq.s32.totalorder %s34, 0
      %p376 = por %p374, %p375
      %s378 = sadd.s32 %s377, 1
      %p381 = scmp.eq.s32.totalorder %s28, 1
      %p382 = scmp.ne.s32.totalorder %s377, %s379
      %p383 = scmp.eq.s32.totalorder %s28, 0
      %p384 = por %p382, %p383
      %p385 = scmp.ne.s32.totalorder %s377, %s379
      %p386 = scmp.eq.s32.totalorder %s33, 1
      %p387 = por %p385, %p386
      %p388 = scmp.ne.s32.totalorder %s379, %s380
      %p389 = scmp.eq.s32.totalorder %s33, 0
      %p390 = por %p388, %p389
      %p391 = scmp.ne.s32.totalorder %s379, %s380
      %p392 = scmp.eq.s32.totalorder %s34, 1
      %p393 = por %p391, %p392
      %p395 = scmp.ne.s32.totalorder %s380, %s394
      %p396 = scmp.eq.s32.totalorder %s34, 0
      %p397 = por %p395, %p396
      %s399 = sadd.s32 %s398, 1
      %p402 = scmp.eq.s32.totalorder %s28, 1
      %p403 = scmp.ne.s32.totalorder %s398, %s400
      %p404 = scmp.eq.s32.totalorder %s28, 0
      %p405 = por %p403, %p404
      %p406 = scmp.ne.s32.totalorder %s398, %s400
      %p407 = scmp.eq.s32.totalorder %s33, 1
      %p408 = por %p406, %p407
      %p409 = scmp.ne.s32.totalorder %s400, %s401
      %p410 = scmp.eq.s32.totalorder %s33, 0
      %p411 = por %p409, %p410
      %p412 = scmp.ne.s32.totalorder %s400, %s401
      %p413 = scmp.eq.s32.totalorder %s34, 1
      %p414 = por %p412, %p413
      %p416 = scmp.ne.s32.totalorder %s401, %s415
      %p417 = scmp.eq.s32.totalorder %s34, 0
      %p418 = por %p416, %p417
      %s420 = sadd.s32 %s419, 1
      %p423 = scmp.eq.s32.totalorder %s28, 1
      %p424 = scmp.ne.s32.totalorder %s419, %s421
      %p425 = scmp.eq.s32.totalorder %s28, 0
      %p426 = por %p424, %p425
      %p427 = scmp.ne.s32.totalorder %s419, %s421
      %p428 = scmp.eq.s32.totalorder %s33, 1
      %p429 = por %p427, %p428
      %p430 = scmp.ne.s32.totalorder %s421, %s422
      %p431 = scmp.eq.s32.totalorder %s33, 0
      %p432 = por %p430, %p431
      %p433 = scmp.ne.s32.totalorder %s421, %s422
      %p434 = scmp.eq.s32.totalorder %s34, 1
      %p435 = por %p433, %p434
      %p437 = scmp.ne.s32.totalorder %s422, %s436
      %p438 = scmp.eq.s32.totalorder %s34, 0
      %p439 = por %p437, %p438
      %s440 = ssub.s32 %s28, %s35
      %p441 = scmp.eq.s32.totalorder %s440, 0
      %s443 = sadd.s32 %s442, 1
      %s444 = scalar_select %p441, %s442, %s443
      %p447 = pneg %p441
      %p448 = scmp.eq.s32.totalorder %s28, 1
      %p449 = por %p447, %p448
      %p450 = scmp.ne.s32.totalorder %s442, %s445
      %p451 = scmp.eq.s32.totalorder %s28, 0
      %p452 = por %p450, %p451
      %p453 = scmp.ne.s32.totalorder %s442, %s445
      %p454 = scmp.eq.s32.totalorder %s33, 1
      %p455 = por %p453, %p454
      %p456 = scmp.ne.s32.totalorder %s445, %s446
      %p457 = scmp.eq.s32.totalorder %s33, 0
      %p458 = por %p456, %p457
      %p459 = scmp.ne.s32.totalorder %s445, %s446
      %p460 = scmp.eq.s32.totalorder %s34, 1
      %p461 = por %p459, %p460
      %p463 = scmp.ne.s32.totalorder %s446, %s462
      %p464 = scmp.eq.s32.totalorder %s34, 0
      %p465 = por %p463, %p464
      %p466 = scmp.le.s32.totalorder 1, %s28
      %p467 = scmp.lt.s32.totalorder %s28, 3
      %p468 = pnand %p466, %p467
      %p469 = pneg %p468
      // Predicated region
      $region9: #{net_forward.1} parent=5 // pred_check
        _
      $region10: #{net_forward.1} parent=5 // pred_check_branch
        %471 = sbr.rel (%p468) target = $region12
      $region11: #{net_forward.1} parent=5 // pred_region
        %s472 = ssub.s32 %s28, 1
        // Predicated region
        $region13: #{net_forward.1} parent=11 // pred_check
          %p473 = pneg %p75
        $region14: #{net_forward.1} parent=11 // pred_check_branch
          %475 = sbr.rel (%p473) target = $region16
        $region15: #{net_forward.1} parent=11 // pred_region
          _
        $region16: #{net_forward.1} parent=11 // pred_fallthru
          _
        // Predicated region
        $region17: #{net_forward.1} parent=11 // pred_check
          %p476 = pneg %p96
        $region18: #{net_forward.1} parent=11 // pred_check_branch
          %478 = sbr.rel (%p476) target = $region20
        $region19: #{net_forward.1} parent=11 // pred_region
          _
        $region20: #{net_forward.1} parent=11 // pred_fallthru
          _
        // Predicated region
        $region21: #{net_forward.1} parent=11 // pred_check
          %p479 = pneg %p117
        $region22: #{net_forward.1} parent=11 // pred_check_branch
          %481 = sbr.rel (%p479) target = $region24
        $region23: #{net_forward.1} parent=11 // pred_region
          _
        $region24: #{net_forward.1} parent=11 // pred_fallthru
          _
        // Predicated region
        $region25: #{net_forward.1} parent=11 // pred_check
          %p482 = pneg %p138
        $region26: #{net_forward.1} parent=11 // pred_check_branch
          %484 = sbr.rel (%p482) target = $region28
        $region27: #{net_forward.1} parent=11 // pred_region
          _
        $region28: #{net_forward.1} parent=11 // pred_fallthru
          _
        // Predicated region
        $region29: #{net_forward.1} parent=11 // pred_check
          %p485 = pneg %p159
        $region30: #{net_forward.1} parent=11 // pred_check_branch
          %487 = sbr.rel (%p485) target = $region32
        $region31: #{net_forward.1} parent=11 // pred_region
          _
        $region32: #{net_forward.1} parent=11 // pred_fallthru
          _
        // Predicated region
        $region33: #{net_forward.1} parent=11 // pred_check
          %p488 = pneg %p180
        $region34: #{net_forward.1} parent=11 // pred_check_branch
          %490 = sbr.rel (%p488) target = $region36
        $region35: #{net_forward.1} parent=11 // pred_region
          _
        $region36: #{net_forward.1} parent=11 // pred_fallthru
          _
        // Predicated region
        $region37: #{net_forward.1} parent=11 // pred_check
          %p491 = pneg %p201
        $region38: #{net_forward.1} parent=11 // pred_check_branch
          %493 = sbr.rel (%p491) target = $region40
        $region39: #{net_forward.1} parent=11 // pred_region
          _
        $region40: #{net_forward.1} parent=11 // pred_fallthru
          _
        // Predicated region
        $region41: #{net_forward.1} parent=11 // pred_check
          %p494 = pneg %p222
        $region42: #{net_forward.1} parent=11 // pred_check_branch
          %496 = sbr.rel (%p494) target = $region44
        $region43: #{net_forward.1} parent=11 // pred_region
          _
        $region44: #{net_forward.1} parent=11 // pred_fallthru
          _
        // Predicated region
        $region45: #{net_forward.1} parent=11 // pred_check
          %p497 = pneg %p243
        $region46: #{net_forward.1} parent=11 // pred_check_branch
          %499 = sbr.rel (%p497) target = $region48
        $region47: #{net_forward.1} parent=11 // pred_region
          _
        $region48: #{net_forward.1} parent=11 // pred_fallthru
          _
        // Predicated region
        $region49: #{net_forward.1} parent=11 // pred_check
          %p500 = pneg %p264
        $region50: #{net_forward.1} parent=11 // pred_check_branch
          %502 = sbr.rel (%p500) target = $region52
        $region51: #{net_forward.1} parent=11 // pred_region
          _
        $region52: #{net_forward.1} parent=11 // pred_fallthru
          _
        // Predicated region
        $region53: #{net_forward.1} parent=11 // pred_check
          %p503 = pneg %p285
        $region54: #{net_forward.1} parent=11 // pred_check_branch
          %505 = sbr.rel (%p503) target = $region56
        $region55: #{net_forward.1} parent=11 // pred_region
          _
        $region56: #{net_forward.1} parent=11 // pred_fallthru
          _
        // Predicated region
        $region57: #{net_forward.1} parent=11 // pred_check
          %p506 = pneg %p306
        $region58: #{net_forward.1} parent=11 // pred_check_branch
          %508 = sbr.rel (%p506) target = $region60
        $region59: #{net_forward.1} parent=11 // pred_region
          _
        $region60: #{net_forward.1} parent=11 // pred_fallthru
          _
        // Predicated region
        $region61: #{net_forward.1} parent=11 // pred_check
          %p509 = pneg %p327
        $region62: #{net_forward.1} parent=11 // pred_check_branch
          %511 = sbr.rel (%p509) target = $region64
        $region63: #{net_forward.1} parent=11 // pred_region
          _
        $region64: #{net_forward.1} parent=11 // pred_fallthru
          _
        // Predicated region
        $region65: #{net_forward.1} parent=11 // pred_check
          %p512 = pneg %p348
        $region66: #{net_forward.1} parent=11 // pred_check_branch
          %514 = sbr.rel (%p512) target = $region68
        $region67: #{net_forward.1} parent=11 // pred_region
          _
        $region68: #{net_forward.1} parent=11 // pred_fallthru
          _
        // Predicated region
        $region69: #{net_forward.1} parent=11 // pred_check
          %p515 = pneg %p369
        $region70: #{net_forward.1} parent=11 // pred_check_branch
          %517 = sbr.rel (%p515) target = $region72
        $region71: #{net_forward.1} parent=11 // pred_region
          _
        $region72: #{net_forward.1} parent=11 // pred_fallthru
          _
        // Predicated region
        $region73: #{net_forward.1} parent=11 // pred_check
          %p518 = pneg %p390
        $region74: #{net_forward.1} parent=11 // pred_check_branch
          %520 = sbr.rel (%p518) target = $region76
        $region75: #{net_forward.1} parent=11 // pred_region
          _
        $region76: #{net_forward.1} parent=11 // pred_fallthru
          _
        // Predicated region
        $region77: #{net_forward.1} parent=11 // pred_check
          %p521 = pneg %p411
        $region78: #{net_forward.1} parent=11 // pred_check_branch
          %523 = sbr.rel (%p521) target = $region80
        $region79: #{net_forward.1} parent=11 // pred_region
          _
        $region80: #{net_forward.1} parent=11 // pred_fallthru
          _
        // Predicated region
        $region81: #{net_forward.1} parent=11 // pred_check
          %p524 = pneg %p432
        $region82: #{net_forward.1} parent=11 // pred_check_branch
          %526 = sbr.rel (%p524) target = $region84
        $region83: #{net_forward.1} parent=11 // pred_region
          _
        $region84: #{net_forward.1} parent=11 // pred_fallthru
          _
      $region12: #{net_forward.1} parent=5 // pred_fallthru
        _
      %p527 = scmp.lt.s32.totalorder %s28, 2
      // Predicated region
      $region85: #{net_forward.1} parent=5 // pred_check
        %p528 = pneg %p527
      $region86: #{net_forward.1} parent=5 // pred_check_branch
        %530 = sbr.rel (%p528) target = $region88
      $region87: #{net_forward.1} parent=5 // pred_region
        // Predicated region
        $region89: #{net_forward.1} parent=87 // pred_check
          %p531 = pneg %p48
        $region90: #{net_forward.1} parent=87 // pred_check_branch
          %533 = sbr.rel (%p531) target = $region92
        $region91: #{net_forward.1} parent=87 // pred_region
          %p534 = scmp.lt.s32.totalorder %s28, 1
          %s535 = scalar_select %p534, %s28, 1
          %s536 = smul.addr %s535, 4
          %s537 = smul.addr %s536, 8
          %s538 = scalar_lea.vmem %s0, %s537
        $region92: #{net_forward.1} parent=87 // pred_fallthru
          _
      $region88: #{net_forward.1} parent=5 // pred_fallthru
        _
      %p539 = scmp.le.s32.totalorder 1, %s28
      %p540 = scmp.lt.s32.totalorder %s28, 3
      %p541 = pnand %p539, %p540
      %p542 = pneg %p541
      // Predicated region
      $region93: #{net_forward.1} parent=5 // pred_check
        _
      $region94: #{net_forward.1} parent=5 // pred_check_branch
        %544 = sbr.rel (%p541) target = $region96
      $region95: #{net_forward.1} parent=5 // pred_region
        %s545 = ssub.s32 %s28, 1
        %p546 = scmp.lt.s32.totalorder %s33, 1
        %s547 = scalar_select %p546, %s33, 1
        %s548 = smul.addr %s547, 4
        %s549 = smul.addr %s548, 8
        %s550 = scalar_lea.vmem %s0, %s549
        %p551 = pneg %p54
        %p552 = pneg %p51
        %p553 = pneg %p75
        %p554 = pneg %p72
        %p555 = pneg %p96
        %p556 = pneg %p93
        %p557 = pneg %p117
        %p558 = pneg %p114
        %p559 = pneg %p138
        %p560 = pneg %p135
        %p561 = pneg %p159
        %p562 = pneg %p156
        %p563 = pneg %p180
        %p564 = pneg %p177
        %p565 = pneg %p201
        %p566 = pneg %p198
        %p567 = pneg %p222
        %p568 = pneg %p219
        %p569 = pneg %p243
        %p570 = pneg %p240
        %p571 = pneg %p264
        %p572 = pneg %p261
        %p573 = pneg %p285
        %p574 = pneg %p282
        %p575 = pneg %p306
        %p576 = pneg %p303
        %p577 = pneg %p327
        %p578 = pneg %p324
        %p579 = pneg %p348
        %p580 = pneg %p345
        %p581 = pneg %p369
        %p582 = pneg %p366
        %p583 = pneg %p390
        %p584 = pneg %p387
        %p585 = pneg %p411
        %p586 = pneg %p408
        %p587 = pneg %p432
        %p588 = pneg %p429
        %p589 = pneg %p458
        %p590 = pneg %p455
        %s591 = sand.u32 %s445, 1
        %s592 = scalar_lea.sflag [#allocation3], %s591
        %s593 = sand.u32 %s445, 1
        %s594 = scalar_lea.vmem [#allocation2], %s593
        %p595 = scmp.lt.s32.totalorder %s33, 1
        %s596 = scalar_select %p595, %s33, 1
        %s597 = smul.addr %s596, 4
        %s598 = smul.addr %s597, 8
        %s599 = scalar_lea.vmem %s0, %s598
        %v600 = vld [vmem:[%s599] sm:$0xff]
        %v601 = vld [vmem:[%s599 + $0x8] sm:$0xff]
        %v602 = vld [vmem:[%s599 + $0x10] sm:$0xff]
        %v603 = vld [vmem:[%s599 + $0x18] sm:$0xff]
        %v604 = vld [vmem:[%s1] sm:$0xff]
        %v605 = vld [vmem:[%s1 + $0x8] sm:$0xff]
        %v606 = vld [vmem:[%s1 + $0x10] sm:$0xff]
        %v607 = vld [vmem:[%s1 + $0x18] sm:$0xff]
        %v608 = vld [vmem:[%s1 + $0x20] sm:$0xff]
        %v609 = vld [vmem:[%s1 + $0x28] sm:$0xff]
        %v610 = vld [vmem:[%s1 + $0x30] sm:$0xff]
        %v611 = vld [vmem:[%s1 + $0x38] sm:$0xff]
        %v612 = vld [vmem:[%s1 + $0x40] sm:$0xff]
        %v613 = vld [vmem:[%s1 + $0x48] sm:$0xff]
        %v614 = vld [vmem:[%s1 + $0x50] sm:$0xff]
        %v615 = vld [vmem:[%s1 + $0x58] sm:$0xff]
        %v616 = vld [vmem:[%s1 + $0x60] sm:$0xff]
        %v617 = vld [vmem:[%s1 + $0x68] sm:$0xff]
        %v618 = vld [vmem:[%s1 + $0x70] sm:$0xff]
        %v619 = vld [vmem:[%s1 + $0x78] sm:$0xff]
        %v620 = vld [vmem:[%s1 + $0x80] sm:$0xff]
        %v621 = vld [vmem:[%s1 + $0x88] sm:$0xff]
        %v622 = vld [vmem:[%s1 + $0x90] sm:$0xff]
        %v623 = vld [vmem:[%s1 + $0x98] sm:$0xff]
        %v624 = vld [vmem:[%s1 + $0xa0] sm:$0xff]
        %v625 = vld [vmem:[%s1 + $0xa8] sm:$0xff]
        %v626 = vld [vmem:[%s1 + $0xb0] sm:$0xff]
        %v627 = vld [vmem:[%s1 + $0xb8] sm:$0xff]
        %s628 = scalar_lea.vmem %s1, 192
        %v629 = vld [vmem:[%s628] sm:$0xff]
        %v630 = vld [vmem:[%s628 + $0x8] sm:$0xff]
        %v631 = vld [vmem:[%s628 + $0x10] sm:$0xff]
        %v632 = vld [vmem:[%s628 + $0x18] sm:$0xff]
        %v633 = vld [vmem:[%s628 + $0x20] sm:$0xff]
        %v634 = vld [vmem:[%s628 + $0x28] sm:$0xff]
        %v635 = vld [vmem:[%s628 + $0x30] sm:$0xff]
        %v636 = vld [vmem:[%s628 + $0x38] sm:$0xff]
        %v637 = vld [vmem:[%s628 + $0x40] sm:$0xff]
        %v638 = vld [vmem:[%s628 + $0x48] sm:$0xff]
        %v639 = vld [vmem:[%s628 + $0x50] sm:$0xff]
        %v640 = vld [vmem:[%s628 + $0x58] sm:$0xff]
        %v641 = vld [vmem:[%s628 + $0x60] sm:$0xff]
        %v642 = vld [vmem:[%s628 + $0x68] sm:$0xff]
        %v643 = vld [vmem:[%s628 + $0x70] sm:$0xff]
        %v644 = vld [vmem:[%s628 + $0x78] sm:$0xff]
        %v645 = vld [vmem:[%s628 + $0x80] sm:$0xff]
        %v646 = vld [vmem:[%s628 + $0x88] sm:$0xff]
        %v647 = vld [vmem:[%s628 + $0x90] sm:$0xff]
        %v648 = vld [vmem:[%s628 + $0x98] sm:$0xff]
        %v649 = vld [vmem:[%s628 + $0xa0] sm:$0xff]
        %v650 = vld [vmem:[%s628 + $0xa8] sm:$0xff]
        %v651 = vld [vmem:[%s628 + $0xb0] sm:$0xff]
        %v652 = vld [vmem:[%s628 + $0xb8] sm:$0xff]
        %vm657 = vcmask 1046528
        %v658 = vrot.slane %v600, 1
        %v659 = vrot.slane %v601, 1
        %v660 = vsel %vm657, %v658, %v659
        %v661 = vrot.slane %v602, 1
        %v662 = vsel %vm657, %v659, %v661
        %v663 = vrot.slane %v603, 1
        %v664 = vsel %vm657, %v661, %v663
        %vm665 = vcmask 785408
        %v666 = vsel %vm665, %v660, 0
        %v668 = vsel %vm665, %v662, 0
        %v670 = vsel %vm665, %v664, 0
        %v672 = vsel %vm665, %v663, 0
        %674 = vmatprep.subr.mxu0 0.0
        %675 = vmatpush1.msra.mxu0 0.0
        %676 = vmatprep.subr.mxu0 0.0
        %677 = vmatpush1.msra.mxu0 0.0
        %678 = vmatprep.subr.mxu0 0.0
        %679 = vmatpush1.msra.mxu0 0.0
        %680 = vmatprep.subr.mxu0 0.0
        %681 = vmatpush1.msra.mxu0 0.0
        %682 = vmatprep.subr.mxu0 %v652
        %683 = vmatpush1.msra.mxu0 %v651
        %684 = vmatprep.subr.mxu0 %v650
        %685 = vmatpush1.msra.mxu0 %v649
        %686 = vmatprep.subr.mxu0 %v648
        %687 = vmatpush1.msra.mxu0 %v647
        %688 = vmatprep.subr.mxu0 %v646
        %689 = vmatpush1.msra.mxu0 %v645
        %690 = vmatprep.subr.mxu0 %v644
        %691 = vmatpush1.msra.mxu0 %v643
        %692 = vmatprep.subr.mxu0 %v642
        %693 = vmatpush1.msra.mxu0 %v641
        %694 = vmatprep.subr.mxu0 %v640
        %695 = vmatpush1.msra.mxu0 %v639
        %696 = vmatprep.subr.mxu0 %v638
        %697 = vmatpush1.msra.mxu0 %v637
        %698 = vmatprep.subr.mxu0 %v636
        %699 = vmatpush1.msra.mxu0 %v635
        %700 = vmatprep.subr.mxu0 %v634
        %701 = vmatpush1.msra.mxu0 %v633
        %702 = vmatprep.subr.mxu0 %v632
        %703 = vmatpush1.msra.mxu0 %v631
        %704 = vmatprep.subr.mxu0 %v630
        %705 = vmatpush1.msra.mxu0 %v629
        %706 = vmatprep.subr.mxu0 0.0
        %707 = vmatpush2.msra.mxu0 0.0
        %708 = vmatprep.subr.mxu0 0.0
        %709 = vmatpush2.msra.mxu0 0.0
        %710 = vmatprep.subr.mxu0 0.0
        %711 = vmatpush2.msra.mxu0 0.0
        %712 = vmatprep.subr.mxu0 0.0
        %713 = vmatpush2.msra.mxu0 0.0
        %714 = vmatprep.subr.mxu0 0.0
        %715 = vmatpush2.msra.mxu0 0.0
        %716 = vmatprep.subr.mxu0 0.0
        %717 = vmatpush2.msra.mxu0 0.0
        %718 = vmatprep.subr.mxu0 0.0
        %719 = vmatpush2.msra.mxu0 0.0
        %720 = vmatprep.subr.mxu0 0.0
        %721 = vmatpush2.msra.mxu0 0.0
        %722 = vmatprep.subr.mxu0 0.0
        %723 = vmatpush2.msra.mxu0 0.0
        %724 = vmatprep.subr.mxu0 0.0
        %725 = vmatpush2.msra.mxu0 0.0
        %726 = vmatprep.subr.mxu0 0.0
        %727 = vmatpush2.msra.mxu0 0.0
        %728 = vmatprep.subr.mxu0 0.0
        %729 = vmatpush2.msra.mxu0 0.0
        %730 = vmatprep.subr.mxu0 0.0
        %731 = vmatpush2.msra.mxu0 0.0
        %732 = vmatprep.subr.mxu0 0.0
        %733 = vmatpush2.msra.mxu0 0.0
        %734 = vmatprep.subr.mxu0 0.0
        %735 = vmatpush2.msra.mxu0 0.0
        %736 = vmatprep.subr.mxu0 0.0
        %737 = vmatpush2.msra.mxu0 0.0
        %738 = vmatprep.mubr.f32.mxu0 0.0
        %739 = vmatmul.mubr.f32.gmra.mxu0 %v666
        %v740 = vpop.f32.mrf.mxu0
        %v741 = vadd.f32 0.0, %v740
        %v742 = vpop.f32.mrf.mxu0
        %v743 = vadd.f32 0.0, %v742
        %744 = vmatprep.mubr.f32.mxu0 0.0
        %745 = vmatmul.mubr.f32.gmra.mxu0 %v668
        %v746 = vpop.f32.mrf.mxu0
        %v747 = vadd.f32 0.0, %v746
        %v748 = vpop.f32.mrf.mxu0
        %v749 = vadd.f32 0.0, %v748
        %750 = vmatprep.mubr.f32.mxu0 0.0
        %751 = vmatmul.mubr.f32.gmra.mxu0 %v670
        %v752 = vpop.f32.mrf.mxu0
        %v753 = vadd.f32 0.0, %v752
        %v754 = vpop.f32.mrf.mxu0
        %v755 = vadd.f32 0.0, %v754
        %756 = vmatprep.mubr.f32.mxu0 0.0
        %757 = vmatmul.mubr.f32.gmra.mxu0 %v672
        %v758 = vpop.f32.mrf.mxu0
        %v759 = vadd.f32 0.0, %v758
        %v760 = vpop.f32.mrf.mxu0
        %v761 = vadd.f32 0.0, %v760
        %762 = vdwg.mxu0
        %v763 = vsel %vm665, %v600, 0
        %v765 = vsel %vm665, %v601, 0
        %v767 = vsel %vm665, %v602, 0
        %v769 = vsel %vm665, %v603, 0
        %771 = vmatprep.subr.mxu0 0.0
        %772 = vmatpush1.msra.mxu0 0.0
        %773 = vmatprep.subr.mxu0 0.0
        %774 = vmatpush1.msra.mxu0 0.0
        %775 = vmatprep.subr.mxu0 0.0
        %776 = vmatpush1.msra.mxu0 0.0
        %777 = vmatprep.subr.mxu0 0.0
        %778 = vmatpush1.msra.mxu0 0.0
        %779 = vmatprep.subr.mxu0 %v627
        %780 = vmatpush1.msra.mxu0 %v626
        %781 = vmatprep.subr.mxu0 %v625
        %782 = vmatpush1.msra.mxu0 %v624
        %783 = vmatprep.subr.mxu0 %v623
        %784 = vmatpush1.msra.mxu0 %v622
        %785 = vmatprep.subr.mxu0 %v621
        %786 = vmatpush1.msra.mxu0 %v620
        %787 = vmatprep.subr.mxu0 %v619
        %788 = vmatpush1.msra.mxu0 %v618
        %789 = vmatprep.subr.mxu0 %v617
        %790 = vmatpush1.msra.mxu0 %v616
        %791 = vmatprep.subr.mxu0 %v615
        %792 = vmatpush1.msra.mxu0 %v614
        %793 = vmatprep.subr.mxu0 %v613
        %794 = vmatpush1.msra.mxu0 %v612
        %795 = vmatprep.subr.mxu0 %v611
        %796 = vmatpush1.msra.mxu0 %v610
        %797 = vmatprep.subr.mxu0 %v609
        %798 = vmatpush1.msra.mxu0 %v608
        %799 = vmatprep.subr.mxu0 %v607
        %800 = vmatpush1.msra.mxu0 %v606
        %801 = vmatprep.subr.mxu0 %v605
        %802 = vmatpush1.msra.mxu0 %v604
        %803 = vmatprep.subr.mxu0 0.0
        %804 = vmatpush2.msra.mxu0 0.0
        %805 = vmatprep.subr.mxu0 0.0
        %806 = vmatpush2.msra.mxu0 0.0
        %807 = vmatprep.subr.mxu0 0.0
        %808 = vmatpush2.msra.mxu0 0.0
        %809 = vmatprep.subr.mxu0 0.0
        %810 = vmatpush2.msra.mxu0 0.0
        %811 = vmatprep.subr.mxu0 0.0
        %812 = vmatpush2.msra.mxu0 0.0
        %813 = vmatprep.subr.mxu0 0.0
        %814 = vmatpush2.msra.mxu0 0.0
        %815 = vmatprep.subr.mxu0 0.0
        %816 = vmatpush2.msra.mxu0 0.0
        %817 = vmatprep.subr.mxu0 0.0
        %818 = vmatpush2.msra.mxu0 0.0
        %819 = vmatprep.subr.mxu0 0.0
        %820 = vmatpush2.msra.mxu0 0.0
        %821 = vmatprep.subr.mxu0 0.0
        %822 = vmatpush2.msra.mxu0 0.0
        %823 = vmatprep.subr.mxu0 0.0
        %824 = vmatpush2.msra.mxu0 0.0
        %825 = vmatprep.subr.mxu0 0.0
        %826 = vmatpush2.msra.mxu0 0.0
        %827 = vmatprep.subr.mxu0 0.0
        %828 = vmatpush2.msra.mxu0 0.0
        %829 = vmatprep.subr.mxu0 0.0
        %830 = vmatpush2.msra.mxu0 0.0
        %831 = vmatprep.subr.mxu0 0.0
        %832 = vmatpush2.msra.mxu0 0.0
        %833 = vmatprep.subr.mxu0 0.0
        %834 = vmatpush2.msra.mxu0 0.0
        %835 = vmatprep.mubr.f32.mxu0 0.0
        %836 = vmatmul.mubr.f32.gmra.mxu0 %v763
        %v837 = vpop.f32.mrf.mxu0
        %v838 = vadd.f32 %v741, %v837
        %v839 = vpop.f32.mrf.mxu0
        %v840 = vadd.f32 %v743, %v839
        %841 = vmatprep.mubr.f32.mxu0 0.0
        %842 = vmatmul.mubr.f32.gmra.mxu0 %v765
        %v843 = vpop.f32.mrf.mxu0
        %v844 = vadd.f32 %v747, %v843
        %v845 = vpop.f32.mrf.mxu0
        %v846 = vadd.f32 %v749, %v845
        %847 = vmatprep.mubr.f32.mxu0 0.0
        %848 = vmatmul.mubr.f32.gmra.mxu0 %v767
        %v849 = vpop.f32.mrf.mxu0
        %v850 = vadd.f32 %v753, %v849
        %v851 = vpop.f32.mrf.mxu0
        %v852 = vadd.f32 %v755, %v851
        %853 = vmatprep.mubr.f32.mxu0 0.0
        %854 = vmatmul.mubr.f32.gmra.mxu0 %v769
        %v855 = vpop.f32.mrf.mxu0
        %v856 = vadd.f32 %v759, %v855
        %v857 = vpop.f32.mrf.mxu0
        %v858 = vadd.f32 %v761, %v857
        %859 = vdwg.mxu0
        %s860 = scalar_lea.vmem %s1, 384
        %v861 = vld [vmem:[%s860] sm:$0xff]
        %v862 = vld [vmem:[%s860 + $0x8] sm:$0xff]
        %v863 = vld [vmem:[%s860 + $0x10] sm:$0xff]
        %v864 = vld [vmem:[%s860 + $0x18] sm:$0xff]
        %v865 = vld [vmem:[%s860 + $0x20] sm:$0xff]
        %v866 = vld [vmem:[%s860 + $0x28] sm:$0xff]
        %v867 = vld [vmem:[%s860 + $0x30] sm:$0xff]
        %v868 = vld [vmem:[%s860 + $0x38] sm:$0xff]
        %v869 = vld [vmem:[%s860 + $0x40] sm:$0xff]
        %v870 = vld [vmem:[%s860 + $0x48] sm:$0xff]
        %v871 = vld [vmem:[%s860 + $0x50] sm:$0xff]
        %v872 = vld [vmem:[%s860 + $0x58] sm:$0xff]
        %v873 = vld [vmem:[%s860 + $0x60] sm:$0xff]
        %v874 = vld [vmem:[%s860 + $0x68] sm:$0xff]
        %v875 = vld [vmem:[%s860 + $0x70] sm:$0xff]
        %v876 = vld [vmem:[%s860 + $0x78] sm:$0xff]
        %v877 = vld [vmem:[%s860 + $0x80] sm:$0xff]
        %v878 = vld [vmem:[%s860 + $0x88] sm:$0xff]
        %v879 = vld [vmem:[%s860 + $0x90] sm:$0xff]
        %v880 = vld [vmem:[%s860 + $0x98] sm:$0xff]
        %v881 = vld [vmem:[%s860 + $0xa0] sm:$0xff]
        %v882 = vld [vmem:[%s860 + $0xa8] sm:$0xff]
        %v883 = vld [vmem:[%s860 + $0xb0] sm:$0xff]
        %v884 = vld [vmem:[%s860 + $0xb8] sm:$0xff]
        %vm885 = vcmask 1045504
        %v886 = vrot.slane %v600, 2
        %v887 = vrot.slane %v601, 2
        %v888 = vsel %vm885, %v886, %v887
        %v889 = vrot.slane %v602, 2
        %v890 = vsel %vm885, %v887, %v889
        %v891 = vrot.slane %v603, 2
        %v892 = vsel %vm885, %v889, %v891
        %v893 = vsel %vm665, %v888, 0
        %v895 = vsel %vm665, %v890, 0
        %v897 = vsel %vm665, %v892, 0
        %v899 = vsel %vm665, %v891, 0
        %901 = vmatprep.subr.mxu0 0.0
        %902 = vmatpush1.msra.mxu0 0.0
        %903 = vmatprep.subr.mxu0 0.0
        %904 = vmatpush1.msra.mxu0 0.0
        %905 = vmatprep.subr.mxu0 0.0
        %906 = vmatpush1.msra.mxu0 0.0
        %907 = vmatprep.subr.mxu0 0.0
        %908 = vmatpush1.msra.mxu0 0.0
        %909 = vmatprep.subr.mxu0 %v884
        %910 = vmatpush1.msra.mxu0 %v883
        %911 = vmatprep.subr.mxu0 %v882
        %912 = vmatpush1.msra.mxu0 %v881
        %913 = vmatprep.subr.mxu0 %v880
        %914 = vmatpush1.msra.mxu0 %v879
        %915 = vmatprep.subr.mxu0 %v878
        %916 = vmatpush1.msra.mxu0 %v877
        %917 = vmatprep.subr.mxu0 %v876
        %918 = vmatpush1.msra.mxu0 %v875
        %919 = vmatprep.subr.mxu0 %v874
        %920 = vmatpush1.msra.mxu0 %v873
        %921 = vmatprep.subr.mxu0 %v872
        %922 = vmatpush1.msra.mxu0 %v871
        %923 = vmatprep.subr.mxu0 %v870
        %924 = vmatpush1.msra.mxu0 %v869
        %925 = vmatprep.subr.mxu0 %v868
        %926 = vmatpush1.msra.mxu0 %v867
        %927 = vmatprep.subr.mxu0 %v866
        %928 = vmatpush1.msra.mxu0 %v865
        %929 = vmatprep.subr.mxu0 %v864
        %930 = vmatpush1.msra.mxu0 %v863
        %931 = vmatprep.subr.mxu0 %v862
        %932 = vmatpush1.msra.mxu0 %v861
        %933 = vmatprep.subr.mxu0 0.0
        %934 = vmatpush2.msra.mxu0 0.0
        %935 = vmatprep.subr.mxu0 0.0
        %936 = vmatpush2.msra.mxu0 0.0
        %937 = vmatprep.subr.mxu0 0.0
        %938 = vmatpush2.msra.mxu0 0.0
        %939 = vmatprep.subr.mxu0 0.0
        %940 = vmatpush2.msra.mxu0 0.0
        %941 = vmatprep.subr.mxu0 0.0
        %942 = vmatpush2.msra.mxu0 0.0
        %943 = vmatprep.subr.mxu0 0.0
        %944 = vmatpush2.msra.mxu0 0.0
        %945 = vmatprep.subr.mxu0 0.0
        %946 = vmatpush2.msra.mxu0 0.0
        %947 = vmatprep.subr.mxu0 0.0
        %948 = vmatpush2.msra.mxu0 0.0
        %949 = vmatprep.subr.mxu0 0.0
        %950 = vmatpush2.msra.mxu0 0.0
        %951 = vmatprep.subr.mxu0 0.0
        %952 = vmatpush2.msra.mxu0 0.0
        %953 = vmatprep.subr.mxu0 0.0
        %954 = vmatpush2.msra.mxu0 0.0
        %955 = vmatprep.subr.mxu0 0.0
        %956 = vmatpush2.msra.mxu0 0.0
        %957 = vmatprep.subr.mxu0 0.0
        %958 = vmatpush2.msra.mxu0 0.0
        %959 = vmatprep.subr.mxu0 0.0
        %960 = vmatpush2.msra.mxu0 0.0
        %961 = vmatprep.subr.mxu0 0.0
        %962 = vmatpush2.msra.mxu0 0.0
        %963 = vmatprep.subr.mxu0 0.0
        %964 = vmatpush2.msra.mxu0 0.0
        %965 = vmatprep.mubr.f32.mxu0 0.0
        %966 = vmatmul.mubr.f32.gmra.mxu0 %v893
        %v967 = vpop.f32.mrf.mxu0
        %v968 = vadd.f32 0.0, %v967
        %v969 = vpop.f32.mrf.mxu0
        %v970 = vadd.f32 0.0, %v969
        %971 = vmatprep.mubr.f32.mxu0 0.0
        %972 = vmatmul.mubr.f32.gmra.mxu0 %v895
        %v973 = vpop.f32.mrf.mxu0
        %v974 = vadd.f32 0.0, %v973
        %v975 = vpop.f32.mrf.mxu0
        %v976 = vadd.f32 0.0, %v975
        %977 = vmatprep.mubr.f32.mxu0 0.0
        %978 = vmatmul.mubr.f32.gmra.mxu0 %v897
        %v979 = vpop.f32.mrf.mxu0
        %v980 = vadd.f32 0.0, %v979
        %v981 = vpop.f32.mrf.mxu0
        %v982 = vadd.f32 0.0, %v981
        %983 = vmatprep.mubr.f32.mxu0 0.0
        %984 = vmatmul.mubr.f32.gmra.mxu0 %v899
        %v985 = vpop.f32.mrf.mxu0
        %v986 = vadd.f32 0.0, %v985
        %v987 = vpop.f32.mrf.mxu0
        %v988 = vadd.f32 0.0, %v987
        %989 = vdwg.mxu0
        %v990 = vadd.f32 %v838, %v968
        %v991 = vadd.f32 %v840, %v970
        %v992 = vadd.f32 %v844, %v974
        %v993 = vadd.f32 %v846, %v976
        %v994 = vadd.f32 %v850, %v980
        %v995 = vadd.f32 %v852, %v982
        %v996 = vadd.f32 %v856, %v986
        %v997 = vadd.f32 %v858, %v988
        %s998 = scalar_lea.vmem %s1, 576
        %v999 = vld [vmem:[%s998] sm:$0xff]
        %v1000 = vld [vmem:[%s998 + $0x8] sm:$0xff]
        %v1001 = vld [vmem:[%s998 + $0x10] sm:$0xff]
        %v1002 = vld [vmem:[%s998 + $0x18] sm:$0xff]
        %v1003 = vld [vmem:[%s998 + $0x20] sm:$0xff]
        %v1004 = vld [vmem:[%s998 + $0x28] sm:$0xff]
        %v1005 = vld [vmem:[%s998 + $0x30] sm:$0xff]
        %v1006 = vld [vmem:[%s998 + $0x38] sm:$0xff]
        %v1007 = vld [vmem:[%s998 + $0x40] sm:$0xff]
        %v1008 = vld [vmem:[%s998 + $0x48] sm:$0xff]
        %v1009 = vld [vmem:[%s998 + $0x50] sm:$0xff]
        %v1010 = vld [vmem:[%s998 + $0x58] sm:$0xff]
        %v1011 = vld [vmem:[%s998 + $0x60] sm:$0xff]
        %v1012 = vld [vmem:[%s998 + $0x68] sm:$0xff]
        %v1013 = vld [vmem:[%s998 + $0x70] sm:$0xff]
        %v1014 = vld [vmem:[%s998 + $0x78] sm:$0xff]
        %v1015 = vld [vmem:[%s998 + $0x80] sm:$0xff]
        %v1016 = vld [vmem:[%s998 + $0x88] sm:$0xff]
        %v1017 = vld [vmem:[%s998 + $0x90] sm:$0xff]
        %v1018 = vld [vmem:[%s998 + $0x98] sm:$0xff]
        %v1019 = vld [vmem:[%s998 + $0xa0] sm:$0xff]
        %v1020 = vld [vmem:[%s998 + $0xa8] sm:$0xff]
        %v1021 = vld [vmem:[%s998 + $0xb0] sm:$0xff]
        %v1022 = vld [vmem:[%s998 + $0xb8] sm:$0xff]
        %vm1023 = vcmask 1044480
        %v1024 = vrot.slane %v600, 3
        %v1025 = vrot.slane %v601, 3
        %v1026 = vsel %vm1023, %v1024, %v1025
        %v1027 = vrot.slane %v602, 3
        %v1028 = vsel %vm1023, %v1025, %v1027
        %v1029 = vrot.slane %v603, 3
        %v1030 = vsel %vm1023, %v1027, %v1029
        %v1031 = vsel %vm665, %v1026, 0
        %v1033 = vsel %vm665, %v1028, 0
        %v1035 = vsel %vm665, %v1030, 0
        %v1037 = vsel %vm665, %v1029, 0
        %1039 = vmatprep.subr.mxu0 0.0
        %1040 = vmatpush1.msra.mxu0 0.0
        %1041 = vmatprep.subr.mxu0 0.0
        %1042 = vmatpush1.msra.mxu0 0.0
        %1043 = vmatprep.subr.mxu0 0.0
        %1044 = vmatpush1.msra.mxu0 0.0
        %1045 = vmatprep.subr.mxu0 0.0
        %1046 = vmatpush1.msra.mxu0 0.0
        %1047 = vmatprep.subr.mxu0 %v1022
        %1048 = vmatpush1.msra.mxu0 %v1021
        %1049 = vmatprep.subr.mxu0 %v1020
        %1050 = vmatpush1.msra.mxu0 %v1019
        %1051 = vmatprep.subr.mxu0 %v1018
        %1052 = vmatpush1.msra.mxu0 %v1017
        %1053 = vmatprep.subr.mxu0 %v1016
        %1054 = vmatpush1.msra.mxu0 %v1015
        %1055 = vmatprep.subr.mxu0 %v1014
        %1056 = vmatpush1.msra.mxu0 %v1013
        %1057 = vmatprep.subr.mxu0 %v1012
        %1058 = vmatpush1.msra.mxu0 %v1011
        %1059 = vmatprep.subr.mxu0 %v1010
        %1060 = vmatpush1.msra.mxu0 %v1009
        %1061 = vmatprep.subr.mxu0 %v1008
        %1062 = vmatpush1.msra.mxu0 %v1007
        %1063 = vmatprep.subr.mxu0 %v1006
        %1064 = vmatpush1.msra.mxu0 %v1005
        %1065 = vmatprep.subr.mxu0 %v1004
        %1066 = vmatpush1.msra.mxu0 %v1003
        %1067 = vmatprep.subr.mxu0 %v1002
        %1068 = vmatpush1.msra.mxu0 %v1001
        %1069 = vmatprep.subr.mxu0 %v1000
        %1070 = vmatpush1.msra.mxu0 %v999
        %1071 = vmatprep.subr.mxu0 0.0
        %1072 = vmatpush2.msra.mxu0 0.0
        %1073 = vmatprep.subr.mxu0 0.0
        %1074 = vmatpush2.msra.mxu0 0.0
        %1075 = vmatprep.subr.mxu0 0.0
        %1076 = vmatpush2.msra.mxu0 0.0
        %1077 = vmatprep.subr.mxu0 0.0
        %1078 = vmatpush2.msra.mxu0 0.0
        %1079 = vmatprep.subr.mxu0 0.0
        %1080 = vmatpush2.msra.mxu0 0.0
        %1081 = vmatprep.subr.mxu0 0.0
        %1082 = vmatpush2.msra.mxu0 0.0
        %1083 = vmatprep.subr.mxu0 0.0
        %1084 = vmatpush2.msra.mxu0 0.0
        %1085 = vmatprep.subr.mxu0 0.0
        %1086 = vmatpush2.msra.mxu0 0.0
        %1087 = vmatprep.subr.mxu0 0.0
        %1088 = vmatpush2.msra.mxu0 0.0
        %1089 = vmatprep.subr.mxu0 0.0
        %1090 = vmatpush2.msra.mxu0 0.0
        %1091 = vmatprep.subr.mxu0 0.0
        %1092 = vmatpush2.msra.mxu0 0.0
        %1093 = vmatprep.subr.mxu0 0.0
        %1094 = vmatpush2.msra.mxu0 0.0
        %1095 = vmatprep.subr.mxu0 0.0
        %1096 = vmatpush2.msra.mxu0 0.0
        %1097 = vmatprep.subr.mxu0 0.0
        %1098 = vmatpush2.msra.mxu0 0.0
        %1099 = vmatprep.subr.mxu0 0.0
        %1100 = vmatpush2.msra.mxu0 0.0
        %1101 = vmatprep.subr.mxu0 0.0
        %1102 = vmatpush2.msra.mxu0 0.0
        %1103 = vmatprep.mubr.f32.mxu0 0.0
        %1104 = vmatmul.mubr.f32.gmra.mxu0 %v1031
        %v1105 = vpop.f32.mrf.mxu0
        %v1106 = vadd.f32 0.0, %v1105
        %v1107 = vpop.f32.mrf.mxu0
        %v1108 = vadd.f32 0.0, %v1107
        %1109 = vmatprep.mubr.f32.mxu0 0.0
        %1110 = vmatmul.mubr.f32.gmra.mxu0 %v1033
        %v1111 = vpop.f32.mrf.mxu0
        %v1112 = vadd.f32 0.0, %v1111
        %v1113 = vpop.f32.mrf.mxu0
        %v1114 = vadd.f32 0.0, %v1113
        %1115 = vmatprep.mubr.f32.mxu0 0.0
        %1116 = vmatmul.mubr.f32.gmra.mxu0 %v1035
        %v1117 = vpop.f32.mrf.mxu0
        %v1118 = vadd.f32 0.0, %v1117
        %v1119 = vpop.f32.mrf.mxu0
        %v1120 = vadd.f32 0.0, %v1119
        %1121 = vmatprep.mubr.f32.mxu0 0.0
        %1122 = vmatmul.mubr.f32.gmra.mxu0 %v1037
        %v1123 = vpop.f32.mrf.mxu0
        %v1124 = vadd.f32 0.0, %v1123
        %v1125 = vpop.f32.mrf.mxu0
        %v1126 = vadd.f32 0.0, %v1125
        %1127 = vdwg.mxu0
        %v1128 = vadd.f32 %v990, %v1106
        %v1129 = vadd.f32 %v991, %v1108
        %v1130 = vadd.f32 %v992, %v1112
        %v1131 = vadd.f32 %v993, %v1114
        %v1132 = vadd.f32 %v994, %v1118
        %v1133 = vadd.f32 %v995, %v1120
        %v1134 = vadd.f32 %v996, %v1124
        %v1135 = vadd.f32 %v997, %v1126
        %s1136 = scalar_lea.vmem %s1, 768
        %v1137 = vld [vmem:[%s1136] sm:$0xff]
        %v1138 = vld [vmem:[%s1136 + $0x8] sm:$0xff]
        %v1139 = vld [vmem:[%s1136 + $0x10] sm:$0xff]
        %v1140 = vld [vmem:[%s1136 + $0x18] sm:$0xff]
        %v1141 = vld [vmem:[%s1136 + $0x20] sm:$0xff]
        %v1142 = vld [vmem:[%s1136 + $0x28] sm:$0xff]
        %v1143 = vld [vmem:[%s1136 + $0x30] sm:$0xff]
        %v1144 = vld [vmem:[%s1136 + $0x38] sm:$0xff]
        %v1145 = vld [vmem:[%s1136 + $0x40] sm:$0xff]
        %v1146 = vld [vmem:[%s1136 + $0x48] sm:$0xff]
        %v1147 = vld [vmem:[%s1136 + $0x50] sm:$0xff]
        %v1148 = vld [vmem:[%s1136 + $0x58] sm:$0xff]
        %v1149 = vld [vmem:[%s1136 + $0x60] sm:$0xff]
        %v1150 = vld [vmem:[%s1136 + $0x68] sm:$0xff]
        %v1151 = vld [vmem:[%s1136 + $0x70] sm:$0xff]
        %v1152 = vld [vmem:[%s1136 + $0x78] sm:$0xff]
        %v1153 = vld [vmem:[%s1136 + $0x80] sm:$0xff]
        %v1154 = vld [vmem:[%s1136 + $0x88] sm:$0xff]
        %v1155 = vld [vmem:[%s1136 + $0x90] sm:$0xff]
        %v1156 = vld [vmem:[%s1136 + $0x98] sm:$0xff]
        %v1157 = vld [vmem:[%s1136 + $0xa0] sm:$0xff]
        %v1158 = vld [vmem:[%s1136 + $0xa8] sm:$0xff]
        %v1159 = vld [vmem:[%s1136 + $0xb0] sm:$0xff]
        %v1160 = vld [vmem:[%s1136 + $0xb8] sm:$0xff]
        %vm1161 = vcmask 1043456
        %v1162 = vrot.slane %v600, 4
        %v1163 = vrot.slane %v601, 4
        %v1164 = vsel %vm1161, %v1162, %v1163
        %v1165 = vrot.slane %v602, 4
        %v1166 = vsel %vm1161, %v1163, %v1165
        %v1167 = vrot.slane %v603, 4
        %v1168 = vsel %vm1161, %v1165, %v1167
        %v1169 = vsel %vm665, %v1164, 0
        %v1171 = vsel %vm665, %v1166, 0
        %v1173 = vsel %vm665, %v1168, 0
        %v1175 = vsel %vm665, %v1167, 0
        %1177 = vmatprep.subr.mxu0 0.0
        %1178 = vmatpush1.msra.mxu0 0.0
        %1179 = vmatprep.subr.mxu0 0.0
        %1180 = vmatpush1.msra.mxu0 0.0
        %1181 = vmatprep.subr.mxu0 0.0
        %1182 = vmatpush1.msra.mxu0 0.0
        %1183 = vmatprep.subr.mxu0 0.0
        %1184 = vmatpush1.msra.mxu0 0.0
        %1185 = vmatprep.subr.mxu0 %v1160
        %1186 = vmatpush1.msra.mxu0 %v1159
        %1187 = vmatprep.subr.mxu0 %v1158
        %1188 = vmatpush1.msra.mxu0 %v1157
        %1189 = vmatprep.subr.mxu0 %v1156
        %1190 = vmatpush1.msra.mxu0 %v1155
        %1191 = vmatprep.subr.mxu0 %v1154
        %1192 = vmatpush1.msra.mxu0 %v1153
        %1193 = vmatprep.subr.mxu0 %v1152
        %1194 = vmatpush1.msra.mxu0 %v1151
        %1195 = vmatprep.subr.mxu0 %v1150
        %1196 = vmatpush1.msra.mxu0 %v1149
        %1197 = vmatprep.subr.mxu0 %v1148
        %1198 = vmatpush1.msra.mxu0 %v1147
        %1199 = vmatprep.subr.mxu0 %v1146
        %1200 = vmatpush1.msra.mxu0 %v1145
        %1201 = vmatprep.subr.mxu0 %v1144
        %1202 = vmatpush1.msra.mxu0 %v1143
        %1203 = vmatprep.subr.mxu0 %v1142
        %1204 = vmatpush1.msra.mxu0 %v1141
        %1205 = vmatprep.subr.mxu0 %v1140
        %1206 = vmatpush1.msra.mxu0 %v1139
        %1207 = vmatprep.subr.mxu0 %v1138
        %1208 = vmatpush1.msra.mxu0 %v1137
        %1209 = vmatprep.subr.mxu0 0.0
        %1210 = vmatpush2.msra.mxu0 0.0
        %1211 = vmatprep.subr.mxu0 0.0
        %1212 = vmatpush2.msra.mxu0 0.0
        %1213 = vmatprep.subr.mxu0 0.0
        %1214 = vmatpush2.msra.mxu0 0.0
        %1215 = vmatprep.subr.mxu0 0.0
        %1216 = vmatpush2.msra.mxu0 0.0
        %1217 = vmatprep.subr.mxu0 0.0
        %1218 = vmatpush2.msra.mxu0 0.0
        %1219 = vmatprep.subr.mxu0 0.0
        %1220 = vmatpush2.msra.mxu0 0.0
        %1221 = vmatprep.subr.mxu0 0.0
        %1222 = vmatpush2.msra.mxu0 0.0
        %1223 = vmatprep.subr.mxu0 0.0
        %1224 = vmatpush2.msra.mxu0 0.0
        %1225 = vmatprep.subr.mxu0 0.0
        %1226 = vmatpush2.msra.mxu0 0.0
        %1227 = vmatprep.subr.mxu0 0.0
        %1228 = vmatpush2.msra.mxu0 0.0
        %1229 = vmatprep.subr.mxu0 0.0
        %1230 = vmatpush2.msra.mxu0 0.0
        %1231 = vmatprep.subr.mxu0 0.0
        %1232 = vmatpush2.msra.mxu0 0.0
        %1233 = vmatprep.subr.mxu0 0.0
        %1234 = vmatpush2.msra.mxu0 0.0
        %1235 = vmatprep.subr.mxu0 0.0
        %1236 = vmatpush2.msra.mxu0 0.0
        %1237 = vmatprep.subr.mxu0 0.0
        %1238 = vmatpush2.msra.mxu0 0.0
        %1239 = vmatprep.subr.mxu0 0.0
        %1240 = vmatpush2.msra.mxu0 0.0
        %1241 = vmatprep.mubr.f32.mxu0 0.0
        %1242 = vmatmul.mubr.f32.gmra.mxu0 %v1169
        %v1243 = vpop.f32.mrf.mxu0
        %v1244 = vadd.f32 0.0, %v1243
        %v1245 = vpop.f32.mrf.mxu0
        %v1246 = vadd.f32 0.0, %v1245
        %1247 = vmatprep.mubr.f32.mxu0 0.0
        %1248 = vmatmul.mubr.f32.gmra.mxu0 %v1171
        %v1249 = vpop.f32.mrf.mxu0
        %v1250 = vadd.f32 0.0, %v1249
        %v1251 = vpop.f32.mrf.mxu0
        %v1252 = vadd.f32 0.0, %v1251
        %1253 = vmatprep.mubr.f32.mxu0 0.0
        %1254 = vmatmul.mubr.f32.gmra.mxu0 %v1173
        %v1255 = vpop.f32.mrf.mxu0
        %v1256 = vadd.f32 0.0, %v1255
        %v1257 = vpop.f32.mrf.mxu0
        %v1258 = vadd.f32 0.0, %v1257
        %1259 = vmatprep.mubr.f32.mxu0 0.0
        %1260 = vmatmul.mubr.f32.gmra.mxu0 %v1175
        %v1261 = vpop.f32.mrf.mxu0
        %v1262 = vadd.f32 0.0, %v1261
        %v1263 = vpop.f32.mrf.mxu0
        %v1264 = vadd.f32 0.0, %v1263
        %1265 = vdwg.mxu0
        %v1266 = vadd.f32 %v1128, %v1244
        %v1267 = vadd.f32 %v1129, %v1246
        %v1268 = vadd.f32 %v1130, %v1250
        %v1269 = vadd.f32 %v1131, %v1252
        %v1270 = vadd.f32 %v1132, %v1256
        %v1271 = vadd.f32 %v1133, %v1258
        %v1272 = vadd.f32 %v1134, %v1262
        %v1273 = vadd.f32 %v1135, %v1264
        %v1274 = vld [vmem:[%s2] sm:$0x3]
        %v1276 = vlaneseq
        %v1277 = vshrl.u32 %v1276, 7
        %v1278 = vsub.s32 0, %v1277
        %v1279 = vrot.slane %v1274, %v1278
        %v1280 = vlaneseq
        %v1281 = vshrl.u32 %v1280, 7
        %v1282 = vsub.s32 1, %v1281
        %v1283 = vrot.slane %v1274, %v1282
        %v1286 = vadd.f32 %v1266, %v1279
        %v1287 = vadd.f32 %v1267, %v1283
        %v1288 = vadd.f32 %v1268, %v1279
        %v1289 = vadd.f32 %v1269, %v1283
        %v1290 = vadd.f32 %v1270, %v1279
        %v1291 = vadd.f32 %v1271, %v1283
        %v1292 = vadd.f32 %v1272, %v1279
        %v1293 = vadd.f32 %v1273, %v1283
        %v1294 = vmax.f32 %v1286, 0.0
        %v1295 = vmax.f32 %v1287, 0.0
        %v1296 = vmax.f32 %v1288, 0.0
        %v1297 = vmax.f32 %v1289, 0.0
        %v1298 = vmax.f32 %v1290, 0.0
        %v1299 = vmax.f32 %v1291, 0.0
        %v1300 = vmax.f32 %v1292, 0.0
        %v1301 = vmax.f32 %v1293, 0.0
        %v1302 = vld [vmem:[%s3] sm:$0xff]
        %v1303 = vld [vmem:[%s3 + $0x8] sm:$0x3f]
        %vm1304 = vcmask 228352
        %v1306 = vsel %vm1304, %v1302, 0
        %v1309 = vsel %vm1304, %v1303, 0
        %v1312 = vsel %vm1161, %v1300, 0
        %v1315 = vsel %vm1161, %v1301, 0
        %1317 = vmatprep.subr.mxu0 0.0
        %1318 = vmatpush1.msra.mxu0 0.0
        %1319 = vmatprep.subr.mxu0 0.0
        %1320 = vmatpush1.msra.mxu0 0.0
        %1321 = vmatprep.subr.mxu0 0.0
        %1322 = vmatpush1.msra.mxu0 0.0
        %1323 = vmatprep.subr.mxu0 0.0
        %1324 = vmatpush1.msra.mxu0 0.0
        %1325 = vmatprep.subr.mxu0 0.0
        %1326 = vmatpush1.msra.mxu0 0.0
        %1327 = vmatprep.subr.mxu0 0.0
        %1328 = vmatpush1.msra.mxu0 0.0
        %1329 = vmatprep.subr.mxu0 0.0
        %1330 = vmatpush1.msra.mxu0 0.0
        %1331 = vmatprep.subr.mxu0 0.0
        %1332 = vmatpush1.msra.mxu0 0.0
        %1333 = vmatprep.subr.mxu0 0.0
        %1334 = vmatpush1.msra.mxu0 0.0
        %1335 = vmatprep.subr.mxu0 0.0
        %1336 = vmatpush1.msra.mxu0 0.0
        %1337 = vmatprep.subr.mxu0 0.0
        %1338 = vmatpush1.msra.mxu0 0.0
        %1339 = vmatprep.subr.mxu0 0.0
        %1340 = vmatpush1.msra.mxu0 0.0
        %1341 = vmatprep.subr.mxu0 %v1315
        %1342 = vmatpush1.msra.mxu0 %v1312
        %1343 = vmatprep.subr.mxu0 %v1299
        %1344 = vmatpush1.msra.mxu0 %v1298
        %1345 = vmatprep.subr.mxu0 %v1297
        %1346 = vmatpush1.msra.mxu0 %v1296
        %1347 = vmatprep.subr.mxu0 %v1295
        %1348 = vmatpush1.msra.mxu0 %v1294
        %1349 = vmatprep.subr.mxu0 0.0
        %1350 = vmatpush2.msra.mxu0 0.0
        %1351 = vmatprep.subr.mxu0 0.0
        %1352 = vmatpush2.msra.mxu0 0.0
        %1353 = vmatprep.subr.mxu0 0.0
        %1354 = vmatpush2.msra.mxu0 0.0
        %1355 = vmatprep.subr.mxu0 0.0
        %1356 = vmatpush2.msra.mxu0 0.0
        %1357 = vmatprep.subr.mxu0 0.0
        %1358 = vmatpush2.msra.mxu0 0.0
        %1359 = vmatprep.subr.mxu0 0.0
        %1360 = vmatpush2.msra.mxu0 0.0
        %1361 = vmatprep.subr.mxu0 0.0
        %1362 = vmatpush2.msra.mxu0 0.0
        %1363 = vmatprep.subr.mxu0 0.0
        %1364 = vmatpush2.msra.mxu0 0.0
        %1365 = vmatprep.subr.mxu0 0.0
        %1366 = vmatpush2.msra.mxu0 0.0
        %1367 = vmatprep.subr.mxu0 0.0
        %1368 = vmatpush2.msra.mxu0 0.0
        %1369 = vmatprep.subr.mxu0 0.0
        %1370 = vmatpush2.msra.mxu0 0.0
        %1371 = vmatprep.subr.mxu0 0.0
        %1372 = vmatpush2.msra.mxu0 0.0
        %1373 = vmatprep.subr.mxu0 0.0
        %1374 = vmatpush2.msra.mxu0 0.0
        %1375 = vmatprep.subr.mxu0 0.0
        %1376 = vmatpush2.msra.mxu0 0.0
        %1377 = vmatprep.subr.mxu0 0.0
        %1378 = vmatpush2.msra.mxu0 0.0
        %1379 = vmatprep.subr.mxu0 0.0
        %1380 = vmatpush2.msra.mxu0 0.0
        %1381 = vmatprep.mubr.f32.mxu0 0.0
        %1382 = vmatmul.mubr.f32.gmra.mxu0 %v1306
        %v1383 = vpop.f32.mrf.mxu0
        %v1384 = vadd.f32 0.0, %v1383
        %v1385 = vpop.f32.mrf.mxu0
        %v1386 = vadd.f32 0.0, %v1385
        %1387 = vmatprep.mubr.f32.mxu0 0.0
        %1388 = vmatmul.mubr.f32.gmra.mxu0 %v1309
        %v1389 = vpop.f32.mrf.mxu0
        %v1390 = vadd.f32 0.0, %v1389
        %v1391 = vpop.f32.mrf.mxu0
        %v1392 = vadd.f32 0.0, %v1391
        %1393 = vdwg.mxu0
        %v1394 = vld [vmem:[%s4] sm:$0xff]
        %v1395 = vld [vmem:[%s4 + $0x8] sm:$0x3f]
        %v1397 = vsel %vm1304, %v1394, 0
        %v1400 = vsel %vm1304, %v1395, 0
        %1402 = vmatprep.subr.mxu0 0.0
        %1403 = vmatpush1.msra.mxu0 0.0
        %1404 = vmatprep.subr.mxu0 0.0
        %1405 = vmatpush1.msra.mxu0 0.0
        %1406 = vmatprep.subr.mxu0 0.0
        %1407 = vmatpush1.msra.mxu0 0.0
        %1408 = vmatprep.subr.mxu0 0.0
        %1409 = vmatpush1.msra.mxu0 0.0
        %1410 = vmatprep.subr.mxu0 0.0
        %1411 = vmatpush1.msra.mxu0 0.0
        %1412 = vmatprep.subr.mxu0 0.0
        %1413 = vmatpush1.msra.mxu0 0.0
        %1414 = vmatprep.subr.mxu0 0.0
        %1415 = vmatpush1.msra.mxu0 0.0
        %1416 = vmatprep.subr.mxu0 0.0
        %1417 = vmatpush1.msra.mxu0 0.0
        %1418 = vmatprep.subr.mxu0 0.0
        %1419 = vmatpush1.msra.mxu0 0.0
        %1420 = vmatprep.subr.mxu0 0.0
        %1421 = vmatpush1.msra.mxu0 0.0
        %1422 = vmatprep.subr.mxu0 0.0
        %1423 = vmatpush1.msra.mxu0 0.0
        %1424 = vmatprep.subr.mxu0 0.0
        %1425 = vmatpush1.msra.mxu0 0.0
        %1426 = vmatprep.subr.mxu0 %v1315
        %1427 = vmatpush1.msra.mxu0 %v1312
        %1428 = vmatprep.subr.mxu0 %v1299
        %1429 = vmatpush1.msra.mxu0 %v1298
        %1430 = vmatprep.subr.mxu0 %v1297
        %1431 = vmatpush1.msra.mxu0 %v1296
        %1432 = vmatprep.subr.mxu0 %v1295
        %1433 = vmatpush1.msra.mxu0 %v1294
        %1434 = vmatprep.subr.mxu0 0.0
        %1435 = vmatpush2.msra.mxu0 0.0
        %1436 = vmatprep.subr.mxu0 0.0
        %1437 = vmatpush2.msra.mxu0 0.0
        %1438 = vmatprep.subr.mxu0 0.0
        %1439 = vmatpush2.msra.mxu0 0.0
        %1440 = vmatprep.subr.mxu0 0.0
        %1441 = vmatpush2.msra.mxu0 0.0
        %1442 = vmatprep.subr.mxu0 0.0
        %1443 = vmatpush2.msra.mxu0 0.0
        %1444 = vmatprep.subr.mxu0 0.0
        %1445 = vmatpush2.msra.mxu0 0.0
        %1446 = vmatprep.subr.mxu0 0.0
        %1447 = vmatpush2.msra.mxu0 0.0
        %1448 = vmatprep.subr.mxu0 0.0
        %1449 = vmatpush2.msra.mxu0 0.0
        %1450 = vmatprep.subr.mxu0 0.0
        %1451 = vmatpush2.msra.mxu0 0.0
        %1452 = vmatprep.subr.mxu0 0.0
        %1453 = vmatpush2.msra.mxu0 0.0
        %1454 = vmatprep.subr.mxu0 0.0
        %1455 = vmatpush2.msra.mxu0 0.0
        %1456 = vmatprep.subr.mxu0 0.0
        %1457 = vmatpush2.msra.mxu0 0.0
        %1458 = vmatprep.subr.mxu0 0.0
        %1459 = vmatpush2.msra.mxu0 0.0
        %1460 = vmatprep.subr.mxu0 0.0
        %1461 = vmatpush2.msra.mxu0 0.0
        %1462 = vmatprep.subr.mxu0 0.0
        %1463 = vmatpush2.msra.mxu0 0.0
        %1464 = vmatprep.subr.mxu0 0.0
        %1465 = vmatpush2.msra.mxu0 0.0
        %1466 = vmatprep.mubr.f32.mxu0 0.0
        %1467 = vmatmul.mubr.f32.gmra.mxu0 %v1397
        %v1468 = vpop.f32.mrf.mxu0
        %v1469 = vadd.f32 0.0, %v1468
        %v1470 = vpop.f32.mrf.mxu0
        %v1471 = vadd.f32 0.0, %v1470
        %1472 = vmatprep.mubr.f32.mxu0 0.0
        %1473 = vmatmul.mubr.f32.gmra.mxu0 %v1400
        %v1474 = vpop.f32.mrf.mxu0
        %v1475 = vadd.f32 0.0, %v1474
        %v1476 = vpop.f32.mrf.mxu0
        %v1477 = vadd.f32 0.0, %v1476
        %1478 = vdwg.mxu0
        %v1479 = vmax.f32 %v1384, %v1469
        %v1480 = vmax.f32 %v1386, %v1471
        %v1481 = vmax.f32 %v1390, %v1475
        %v1482 = vmax.f32 %v1392, %v1477
        %v1483 = vld [vmem:[%s5] sm:$0xff]
        %v1484 = vld [vmem:[%s5 + $0x8] sm:$0xff]
        %v1485 = vld [vmem:[%s5 + $0x10] sm:$0xff]
        %v1486 = vld [vmem:[%s5 + $0x18] sm:$0xff]
        %v1487 = vld [vmem:[%s5 + $0x20] sm:$0xff]
        %v1488 = vld [vmem:[%s5 + $0x28] sm:$0xff]
        %v1489 = vld [vmem:[%s5 + $0x30] sm:$0xff]
        %v1490 = vld [vmem:[%s5 + $0x38] sm:$0xff]
        %v1491 = vld [vmem:[%s5 + $0x40] sm:$0xff]
        %v1492 = vld [vmem:[%s5 + $0x48] sm:$0xff]
        %v1493 = vld [vmem:[%s5 + $0x50] sm:$0xff]
        %v1494 = vld [vmem:[%s5 + $0x58] sm:$0xff]
        %v1495 = vld [vmem:[%s5 + $0x60] sm:$0xff]
        %v1496 = vld [vmem:[%s5 + $0x68] sm:$0xff]
        %v1497 = vld [vmem:[%s5 + $0x70] sm:$0xff]
        %v1498 = vld [vmem:[%s5 + $0x78] sm:$0xff]
        %v1499 = vld [vmem:[%s5 + $0x80] sm:$0xff]
        %v1500 = vld [vmem:[%s5 + $0x88] sm:$0xff]
        %v1501 = vld [vmem:[%s5 + $0x90] sm:$0xff]
        %v1502 = vld [vmem:[%s5 + $0x98] sm:$0xff]
        %v1503 = vld [vmem:[%s5 + $0xa0] sm:$0xff]
        %vm1504 = vcmask 326656
        %v1506 = vsel %vm1504, %v1480, 0
        %v1509 = vsel %vm1504, %v1482, 0
        %1511 = vmatprep.subr.mxu0 0.0
        %1512 = vmatpush1.msra.mxu0 %v1498
        %1513 = vmatprep.subr.mxu0 0.0
        %1514 = vmatpush1.msra.mxu0 %v1497
        %1515 = vmatprep.subr.mxu0 0.0
        %1516 = vmatpush1.msra.mxu0 %v1496
        %1517 = vmatprep.subr.mxu0 0.0
        %1518 = vmatpush1.msra.mxu0 %v1495
        %1519 = vmatprep.subr.mxu0 0.0
        %1520 = vmatpush1.msra.mxu0 %v1494
        %1521 = vmatprep.subr.mxu0 0.0
        %1522 = vmatpush1.msra.mxu0 %v1493
        %1523 = vmatprep.subr.mxu0 0.0
        %1524 = vmatpush1.msra.mxu0 %v1492
        %1525 = vmatprep.subr.mxu0 0.0
        %1526 = vmatpush1.msra.mxu0 %v1491
        %1527 = vmatprep.subr.mxu0 0.0
        %1528 = vmatpush1.msra.mxu0 %v1490
        %1529 = vmatprep.subr.mxu0 0.0
        %1530 = vmatpush1.msra.mxu0 %v1489
        %1531 = vmatprep.subr.mxu0 0.0
        %1532 = vmatpush1.msra.mxu0 %v1488
        %1533 = vmatprep.subr.mxu0 0.0
        %1534 = vmatpush1.msra.mxu0 %v1487
        %1535 = vmatprep.subr.mxu0 0.0
        %1536 = vmatpush1.msra.mxu0 %v1486
        %1537 = vmatprep.subr.mxu0 0.0
        %1538 = vmatpush1.msra.mxu0 %v1485
        %1539 = vmatprep.subr.mxu0 0.0
        %1540 = vmatpush1.msra.mxu0 %v1484
        %1541 = vmatprep.subr.mxu0 0.0
        %1542 = vmatpush1.msra.mxu0 %v1483
        %1543 = vmatprep.subr.mxu0 0.0
        %1544 = vmatpush2.msra.mxu0 0.0
        %1545 = vmatprep.subr.mxu0 0.0
        %1546 = vmatpush2.msra.mxu0 0.0
        %1547 = vmatprep.subr.mxu0 0.0
        %1548 = vmatpush2.msra.mxu0 0.0
        %1549 = vmatprep.subr.mxu0 0.0
        %1550 = vmatpush2.msra.mxu0 0.0
        %1551 = vmatprep.subr.mxu0 0.0
        %1552 = vmatpush2.msra.mxu0 0.0
        %1553 = vmatprep.subr.mxu0 0.0
        %1554 = vmatpush2.msra.mxu0 0.0
        %1555 = vmatprep.subr.mxu0 0.0
        %1556 = vmatpush2.msra.mxu0 0.0
        %1557 = vmatprep.subr.mxu0 0.0
        %1558 = vmatpush2.msra.mxu0 0.0
        %1559 = vmatprep.subr.mxu0 0.0
        %1560 = vmatpush2.msra.mxu0 0.0
        %1561 = vmatprep.subr.mxu0 0.0
        %1562 = vmatpush2.msra.mxu0 0.0
        %1563 = vmatprep.subr.mxu0 0.0
        %1564 = vmatpush2.msra.mxu0 0.0
        %1565 = vmatprep.subr.mxu0 0.0
        %1566 = vmatpush2.msra.mxu0 %v1503
        %1567 = vmatprep.subr.mxu0 0.0
        %1568 = vmatpush2.msra.mxu0 %v1502
        %1569 = vmatprep.subr.mxu0 0.0
        %1570 = vmatpush2.msra.mxu0 %v1501
        %1571 = vmatprep.subr.mxu0 0.0
        %1572 = vmatpush2.msra.mxu0 %v1500
        %1573 = vmatprep.subr.mxu0 0.0
        %1574 = vmatpush2.msra.mxu0 %v1499
        %1575 = vmatprep.mubr.f32.mxu0 %v1506
        %1576 = vmatmul.mubr.f32.gmra.mxu0 %v1479
        %v1577 = vpop.f32.mrf.mxu0
        %v1578 = vadd.f32 0.0, %v1577
        %v1579 = vpop.f32.mrf.mxu0
        %1580 = vmatprep.mubr.f32.mxu0 %v1509
        %1581 = vmatmul.mubr.f32.gmra.mxu0 %v1481
        %v1582 = vpop.f32.mrf.mxu0
        %v1583 = vadd.f32 0.0, %v1582
        %v1584 = vpop.f32.mrf.mxu0
        %1585 = vdwg.mxu0
        %v1586 = vld [vmem:[%s6] sm:$0xff]
        %v1587 = vld [vmem:[%s6 + $0x8] sm:$0xff]
        %v1588 = vld [vmem:[%s6 + $0x10] sm:$0xff]
        %v1589 = vld [vmem:[%s6 + $0x18] sm:$0xff]
        %v1590 = vld [vmem:[%s6 + $0x20] sm:$0xff]
        %v1591 = vld [vmem:[%s6 + $0x28] sm:$0xff]
        %v1592 = vld [vmem:[%s6 + $0x30] sm:$0xff]
        %v1593 = vld [vmem:[%s6 + $0x38] sm:$0xff]
        %v1594 = vld [vmem:[%s6 + $0x40] sm:$0xff]
        %v1595 = vld [vmem:[%s6 + $0x48] sm:$0xff]
        %v1596 = vld [vmem:[%s6 + $0x50] sm:$0xff]
        %v1597 = vld [vmem:[%s6 + $0x58] sm:$0xff]
        %v1598 = vld [vmem:[%s6 + $0x60] sm:$0xff]
        %v1599 = vld [vmem:[%s6 + $0x68] sm:$0xff]
        %v1600 = vld [vmem:[%s6 + $0x70] sm:$0xff]
        %v1601 = vld [vmem:[%s6 + $0x78] sm:$0xff]
        %v1602 = vld [vmem:[%s6 + $0x80] sm:$0xff]
        %v1603 = vld [vmem:[%s6 + $0x88] sm:$0xff]
        %v1604 = vld [vmem:[%s6 + $0x90] sm:$0xff]
        %v1605 = vld [vmem:[%s6 + $0x98] sm:$0xff]
        %v1606 = vld [vmem:[%s6 + $0xa0] sm:$0xff]
        %1607 = vmatprep.subr.mxu0 0.0
        %1608 = vmatpush1.msra.mxu0 %v1601
        %1609 = vmatprep.subr.mxu0 0.0
        %1610 = vmatpush1.msra.mxu0 %v1600
        %1611 = vmatprep.subr.mxu0 0.0
        %1612 = vmatpush1.msra.mxu0 %v1599
        %1613 = vmatprep.subr.mxu0 0.0
        %1614 = vmatpush1.msra.mxu0 %v1598
        %1615 = vmatprep.subr.mxu0 0.0
        %1616 = vmatpush1.msra.mxu0 %v1597
        %1617 = vmatprep.subr.mxu0 0.0
        %1618 = vmatpush1.msra.mxu0 %v1596
        %1619 = vmatprep.subr.mxu0 0.0
        %1620 = vmatpush1.msra.mxu0 %v1595
        %1621 = vmatprep.subr.mxu0 0.0
        %1622 = vmatpush1.msra.mxu0 %v1594
        %1623 = vmatprep.subr.mxu0 0.0
        %1624 = vmatpush1.msra.mxu0 %v1593
        %1625 = vmatprep.subr.mxu0 0.0
        %1626 = vmatpush1.msra.mxu0 %v1592
        %1627 = vmatprep.subr.mxu0 0.0
        %1628 = vmatpush1.msra.mxu0 %v1591
        %1629 = vmatprep.subr.mxu0 0.0
        %1630 = vmatpush1.msra.mxu0 %v1590
        %1631 = vmatprep.subr.mxu0 0.0
        %1632 = vmatpush1.msra.mxu0 %v1589
        %1633 = vmatprep.subr.mxu0 0.0
        %1634 = vmatpush1.msra.mxu0 %v1588
        %1635 = vmatprep.subr.mxu0 0.0
        %1636 = vmatpush1.msra.mxu0 %v1587
        %1637 = vmatprep.subr.mxu0 0.0
        %1638 = vmatpush1.msra.mxu0 %v1586
        %1639 = vmatprep.subr.mxu0 0.0
        %1640 = vmatpush2.msra.mxu0 0.0
        %1641 = vmatprep.subr.mxu0 0.0
        %1642 = vmatpush2.msra.mxu0 0.0
        %1643 = vmatprep.subr.mxu0 0.0
        %1644 = vmatpush2.msra.mxu0 0.0
        %1645 = vmatprep.subr.mxu0 0.0
        %1646 = vmatpush2.msra.mxu0 0.0
        %1647 = vmatprep.subr.mxu0 0.0
        %1648 = vmatpush2.msra.mxu0 0.0
        %1649 = vmatprep.subr.mxu0 0.0
        %1650 = vmatpush2.msra.mxu0 0.0
        %1651 = vmatprep.subr.mxu0 0.0
        %1652 = vmatpush2.msra.mxu0 0.0
        %1653 = vmatprep.subr.mxu0 0.0
        %1654 = vmatpush2.msra.mxu0 0.0
        %1655 = vmatprep.subr.mxu0 0.0
        %1656 = vmatpush2.msra.mxu0 0.0
        %1657 = vmatprep.subr.mxu0 0.0
        %1658 = vmatpush2.msra.mxu0 0.0
        %1659 = vmatprep.subr.mxu0 0.0
        %1660 = vmatpush2.msra.mxu0 0.0
        %1661 = vmatprep.subr.mxu0 0.0
        %1662 = vmatpush2.msra.mxu0 %v1606
        %1663 = vmatprep.subr.mxu0 0.0
        %1664 = vmatpush2.msra.mxu0 %v1605
        %1665 = vmatprep.subr.mxu0 0.0
        %1666 = vmatpush2.msra.mxu0 %v1604
        %1667 = vmatprep.subr.mxu0 0.0
        %1668 = vmatpush2.msra.mxu0 %v1603
        %1669 = vmatprep.subr.mxu0 0.0
        %1670 = vmatpush2.msra.mxu0 %v1602
        %1671 = vmatprep.mubr.f32.mxu0 %v1506
        %1672 = vmatmul.mubr.f32.gmra.mxu0 %v1479
        %v1673 = vpop.f32.mrf.mxu0
        %v1674 = vadd.f32 0.0, %v1673
        %v1675 = vpop.f32.mrf.mxu0
        %1676 = vmatprep.mubr.f32.mxu0 %v1509
        %1677 = vmatmul.mubr.f32.gmra.mxu0 %v1481
        %v1678 = vpop.f32.mrf.mxu0
        %v1679 = vadd.f32 0.0, %v1678
        %v1680 = vpop.f32.mrf.mxu0
        %1681 = vdwg.mxu0
        %v1682 = vmax.f32 %v1578, %v1674
        %v1683 = vmax.f32 %v1583, %v1679
        %v1684 = vld [vmem:[%s7] sm:$0xff]
        %v1685 = vld [vmem:[%s7 + $0x8] sm:$0xff]
        %v1686 = vld [vmem:[%s7 + $0x10] sm:$0xff]
        %v1687 = vld [vmem:[%s7 + $0x18] sm:$0xff]
        %v1688 = vld [vmem:[%s7 + $0x20] sm:$0xff]
        %v1689 = vld [vmem:[%s7 + $0x28] sm:$0xff]
        %v1690 = vld [vmem:[%s7 + $0x30] sm:$0xff]
        %v1691 = vld [vmem:[%s7 + $0x38] sm:$0xff]
        %v1692 = vld [vmem:[%s7 + $0x40] sm:$0xff]
        %v1693 = vld [vmem:[%s7 + $0x48] sm:$0xff]
        %v1694 = vld [vmem:[%s7 + $0x50] sm:$0xff]
        %v1695 = vld [vmem:[%s7 + $0x58] sm:$0xff]
        %v1696 = vld [vmem:[%s7 + $0x60] sm:$0xff]
        %v1697 = vld [vmem:[%s7 + $0x68] sm:$0xff]
        %v1698 = vld [vmem:[%s7 + $0x70] sm:$0xff]
        %v1699 = vld [vmem:[%s7 + $0x78] sm:$0xff]
        %v1700 = vld [vmem:[%s7 + $0x80] sm:$0xff]
        %v1701 = vld [vmem:[%s7 + $0x88] sm:$0xff]
        %v1702 = vld [vmem:[%s7 + $0x90] sm:$0xff]
        %v1703 = vld [vmem:[%s7 + $0x98] sm:$0xff]
        %v1704 = vld [vmem:[%s7 + $0xa0] sm:$0xf]
        %v1705 = vld [vmem:[%s7 + $0xa8] sm:$0xf]
        %s1706 = scalar_lea.vmem %s7, 176
        %v1707 = vld [vmem:[%s1706] sm:$0xff]
        %v1708 = vld [vmem:[%s1706 + $0x8] sm:$0xff]
        %v1709 = vld [vmem:[%s1706 + $0x10] sm:$0xff]
        %v1710 = vld [vmem:[%s1706 + $0x18] sm:$0xff]
        %v1711 = vld [vmem:[%s1706 + $0x20] sm:$0xff]
        %v1712 = vld [vmem:[%s1706 + $0x28] sm:$0xff]
        %v1713 = vld [vmem:[%s1706 + $0x30] sm:$0xff]
        %v1714 = vld [vmem:[%s1706 + $0x38] sm:$0xff]
        %v1715 = vld [vmem:[%s1706 + $0x40] sm:$0xff]
        %v1716 = vld [vmem:[%s1706 + $0x48] sm:$0xff]
        %v1717 = vld [vmem:[%s1706 + $0x50] sm:$0xff]
        %v1718 = vld [vmem:[%s1706 + $0x58] sm:$0xff]
        %v1719 = vld [vmem:[%s1706 + $0x60] sm:$0xff]
        %v1720 = vld [vmem:[%s1706 + $0x68] sm:$0xff]
        %v1721 = vld [vmem:[%s1706 + $0x70] sm:$0xff]
        %v1722 = vld [vmem:[%s1706 + $0x78] sm:$0xff]
        %v1723 = vld [vmem:[%s1706 + $0x80] sm:$0xff]
        %v1724 = vld [vmem:[%s1706 + $0x88] sm:$0xff]
        %v1725 = vld [vmem:[%s1706 + $0x90] sm:$0xff]
        %v1726 = vld [vmem:[%s1706 + $0x98] sm:$0xff]
        %v1727 = vld [vmem:[%s1706 + $0xa0] sm:$0xf]
        %v1728 = vld [vmem:[%s1706 + $0xa8] sm:$0xf]
        %v1731 = vrot.slane %v1682, 1
        %v1732 = vrot.slane %v1683, 1
        %v1733 = vsel %vm657, %v1731, %v1732
        %vm1734 = vcmask 687104
        %v1735 = vsel %vm1734, %v1733, 0
        %v1737 = vsel %vm1734, %v1732, 0
        %v1740 = vsel %vm1161, %v1727, 0
        %v1743 = vsel %vm1161, %v1728, 0
        %1745 = vmatprep.subr.mxu0 0.0
        %1746 = vmatpush1.msra.mxu0 0.0
        %1747 = vmatprep.subr.mxu0 0.0
        %1748 = vmatpush1.msra.mxu0 0.0
        %1749 = vmatprep.subr.mxu0 0.0
        %1750 = vmatpush1.msra.mxu0 0.0
        %1751 = vmatprep.subr.mxu0 0.0
        %1752 = vmatpush1.msra.mxu0 0.0
        %1753 = vmatprep.subr.mxu0 0.0
        %1754 = vmatpush1.msra.mxu0 0.0
        %1755 = vmatprep.subr.mxu0 %v1743
        %1756 = vmatpush1.msra.mxu0 %v1740
        %1757 = vmatprep.subr.mxu0 %v1726
        %1758 = vmatpush1.msra.mxu0 %v1725
        %1759 = vmatprep.subr.mxu0 %v1724
        %1760 = vmatpush1.msra.mxu0 %v1723
        %1761 = vmatprep.subr.mxu0 %v1722
        %1762 = vmatpush1.msra.mxu0 %v1721
        %1763 = vmatprep.subr.mxu0 %v1720
        %1764 = vmatpush1.msra.mxu0 %v1719
        %1765 = vmatprep.subr.mxu0 %v1718
        %1766 = vmatpush1.msra.mxu0 %v1717
        %1767 = vmatprep.subr.mxu0 %v1716
        %1768 = vmatpush1.msra.mxu0 %v1715
        %1769 = vmatprep.subr.mxu0 %v1714
        %1770 = vmatpush1.msra.mxu0 %v1713
        %1771 = vmatprep.subr.mxu0 %v1712
        %1772 = vmatpush1.msra.mxu0 %v1711
        %1773 = vmatprep.subr.mxu0 %v1710
        %1774 = vmatpush1.msra.mxu0 %v1709
        %1775 = vmatprep.subr.mxu0 %v1708
        %1776 = vmatpush1.msra.mxu0 %v1707
        %1777 = vmatprep.subr.mxu0 0.0
        %1778 = vmatpush2.msra.mxu0 0.0
        %1779 = vmatprep.subr.mxu0 0.0
        %1780 = vmatpush2.msra.mxu0 0.0
        %1781 = vmatprep.subr.mxu0 0.0
        %1782 = vmatpush2.msra.mxu0 0.0
        %1783 = vmatprep.subr.mxu0 0.0
        %1784 = vmatpush2.msra.mxu0 0.0
        %1785 = vmatprep.subr.mxu0 0.0
        %1786 = vmatpush2.msra.mxu0 0.0
        %1787 = vmatprep.subr.mxu0 0.0
        %1788 = vmatpush2.msra.mxu0 0.0
        %1789 = vmatprep.subr.mxu0 0.0
        %1790 = vmatpush2.msra.mxu0 0.0
        %1791 = vmatprep.subr.mxu0 0.0
        %1792 = vmatpush2.msra.mxu0 0.0
        %1793 = vmatprep.subr.mxu0 0.0
        %1794 = vmatpush2.msra.mxu0 0.0
        %1795 = vmatprep.subr.mxu0 0.0
        %1796 = vmatpush2.msra.mxu0 0.0
        %1797 = vmatprep.subr.mxu0 0.0
        %1798 = vmatpush2.msra.mxu0 0.0
        %1799 = vmatprep.subr.mxu0 0.0
        %1800 = vmatpush2.msra.mxu0 0.0
        %1801 = vmatprep.subr.mxu0 0.0
        %1802 = vmatpush2.msra.mxu0 0.0
        %1803 = vmatprep.subr.mxu0 0.0
        %1804 = vmatpush2.msra.mxu0 0.0
        %1805 = vmatprep.subr.mxu0 0.0
        %1806 = vmatpush2.msra.mxu0 0.0
        %1807 = vmatprep.subr.mxu0 0.0
        %1808 = vmatpush2.msra.mxu0 0.0
        %1809 = vmatprep.mubr.f32.mxu0 0.0
        %1810 = vmatmul.mubr.f32.gmra.mxu0 %v1735
        %v1811 = vpop.f32.mrf.mxu0
        %v1812 = vadd.f32 0.0, %v1811
        %v1813 = vpop.f32.mrf.mxu0
        %v1814 = vadd.f32 0.0, %v1813
        %1815 = vmatprep.mubr.f32.mxu0 0.0
        %1816 = vmatmul.mubr.f32.gmra.mxu0 %v1737
        %v1817 = vpop.f32.mrf.mxu0
        %v1818 = vadd.f32 0.0, %v1817
        %v1819 = vpop.f32.mrf.mxu0
        %v1820 = vadd.f32 0.0, %v1819
        %1821 = vdwg.mxu0
        %v1822 = vsel %vm1734, %v1682, 0
        %v1824 = vsel %vm1734, %v1683, 0
        %v1827 = vsel %vm1161, %v1704, 0
        %v1830 = vsel %vm1161, %v1705, 0
        %1832 = vmatprep.subr.mxu0 0.0
        %1833 = vmatpush1.msra.mxu0 0.0
        %1834 = vmatprep.subr.mxu0 0.0
        %1835 = vmatpush1.msra.mxu0 0.0
        %1836 = vmatprep.subr.mxu0 0.0
        %1837 = vmatpush1.msra.mxu0 0.0
        %1838 = vmatprep.subr.mxu0 0.0
        %1839 = vmatpush1.msra.mxu0 0.0
        %1840 = vmatprep.subr.mxu0 0.0
        %1841 = vmatpush1.msra.mxu0 0.0
        %1842 = vmatprep.subr.mxu0 %v1830
        %1843 = vmatpush1.msra.mxu0 %v1827
        %1844 = vmatprep.subr.mxu0 %v1703
        %1845 = vmatpush1.msra.mxu0 %v1702
        %1846 = vmatprep.subr.mxu0 %v1701
        %1847 = vmatpush1.msra.mxu0 %v1700
        %1848 = vmatprep.subr.mxu0 %v1699
        %1849 = vmatpush1.msra.mxu0 %v1698
        %1850 = vmatprep.subr.mxu0 %v1697
        %1851 = vmatpush1.msra.mxu0 %v1696
        %1852 = vmatprep.subr.mxu0 %v1695
        %1853 = vmatpush1.msra.mxu0 %v1694
        %1854 = vmatprep.subr.mxu0 %v1693
        %1855 = vmatpush1.msra.mxu0 %v1692
        %1856 = vmatprep.subr.mxu0 %v1691
        %1857 = vmatpush1.msra.mxu0 %v1690
        %1858 = vmatprep.subr.mxu0 %v1689
        %1859 = vmatpush1.msra.mxu0 %v1688
        %1860 = vmatprep.subr.mxu0 %v1687
        %1861 = vmatpush1.msra.mxu0 %v1686
        %1862 = vmatprep.subr.mxu0 %v1685
        %1863 = vmatpush1.msra.mxu0 %v1684
        %1864 = vmatprep.subr.mxu0 0.0
        %1865 = vmatpush2.msra.mxu0 0.0
        %1866 = vmatprep.subr.mxu0 0.0
        %1867 = vmatpush2.msra.mxu0 0.0
        %1868 = vmatprep.subr.mxu0 0.0
        %1869 = vmatpush2.msra.mxu0 0.0
        %1870 = vmatprep.subr.mxu0 0.0
        %1871 = vmatpush2.msra.mxu0 0.0
        %1872 = vmatprep.subr.mxu0 0.0
        %1873 = vmatpush2.msra.mxu0 0.0
        %1874 = vmatprep.subr.mxu0 0.0
        %1875 = vmatpush2.msra.mxu0 0.0
        %1876 = vmatprep.subr.mxu0 0.0
        %1877 = vmatpush2.msra.mxu0 0.0
        %1878 = vmatprep.subr.mxu0 0.0
        %1879 = vmatpush2.msra.mxu0 0.0
        %1880 = vmatprep.subr.mxu0 0.0
        %1881 = vmatpush2.msra.mxu0 0.0
        %1882 = vmatprep.subr.mxu0 0.0
        %1883 = vmatpush2.msra.mxu0 0.0
        %1884 = vmatprep.subr.mxu0 0.0
        %1885 = vmatpush2.msra.mxu0 0.0
        %1886 = vmatprep.subr.mxu0 0.0
        %1887 = vmatpush2.msra.mxu0 0.0
        %1888 = vmatprep.subr.mxu0 0.0
        %1889 = vmatpush2.msra.mxu0 0.0
        %1890 = vmatprep.subr.mxu0 0.0
        %1891 = vmatpush2.msra.mxu0 0.0
        %1892 = vmatprep.subr.mxu0 0.0
        %1893 = vmatpush2.msra.mxu0 0.0
        %1894 = vmatprep.subr.mxu0 0.0
        %1895 = vmatpush2.msra.mxu0 0.0
        %1896 = vmatprep.mubr.f32.mxu0 0.0
        %1897 = vmatmul.mubr.f32.gmra.mxu0 %v1822
        %v1898 = vpop.f32.mrf.mxu0
        %v1899 = vadd.f32 %v1812, %v1898
        %v1900 = vpop.f32.mrf.mxu0
        %v1901 = vadd.f32 %v1814, %v1900
        %1902 = vmatprep.mubr.f32.mxu0 0.0
        %1903 = vmatmul.mubr.f32.gmra.mxu0 %v1824
        %v1904 = vpop.f32.mrf.mxu0
        %v1905 = vadd.f32 %v1818, %v1904
        %v1906 = vpop.f32.mrf.mxu0
        %v1907 = vadd.f32 %v1820, %v1906
        %1908 = vdwg.mxu0
        %s1909 = scalar_lea.vmem %s7, 352
        %v1910 = vld [vmem:[%s1909] sm:$0xff]
        %v1911 = vld [vmem:[%s1909 + $0x8] sm:$0xff]
        %v1912 = vld [vmem:[%s1909 + $0x10] sm:$0xff]
        %v1913 = vld [vmem:[%s1909 + $0x18] sm:$0xff]
        %v1914 = vld [vmem:[%s1909 + $0x20] sm:$0xff]
        %v1915 = vld [vmem:[%s1909 + $0x28] sm:$0xff]
        %v1916 = vld [vmem:[%s1909 + $0x30] sm:$0xff]
        %v1917 = vld [vmem:[%s1909 + $0x38] sm:$0xff]
        %v1918 = vld [vmem:[%s1909 + $0x40] sm:$0xff]
        %v1919 = vld [vmem:[%s1909 + $0x48] sm:$0xff]
        %v1920 = vld [vmem:[%s1909 + $0x50] sm:$0xff]
        %v1921 = vld [vmem:[%s1909 + $0x58] sm:$0xff]
        %v1922 = vld [vmem:[%s1909 + $0x60] sm:$0xff]
        %v1923 = vld [vmem:[%s1909 + $0x68] sm:$0xff]
        %v1924 = vld [vmem:[%s1909 + $0x70] sm:$0xff]
        %v1925 = vld [vmem:[%s1909 + $0x78] sm:$0xff]
        %v1926 = vld [vmem:[%s1909 + $0x80] sm:$0xff]
        %v1927 = vld [vmem:[%s1909 + $0x88] sm:$0xff]
        %v1928 = vld [vmem:[%s1909 + $0x90] sm:$0xff]
        %v1929 = vld [vmem:[%s1909 + $0x98] sm:$0xff]
        %v1930 = vld [vmem:[%s1909 + $0xa0] sm:$0xf]
        %v1931 = vld [vmem:[%s1909 + $0xa8] sm:$0xf]
        %v1932 = vrot.slane %v1682, 2
        %v1933 = vrot.slane %v1683, 2
        %v1934 = vsel %vm885, %v1932, %v1933
        %v1935 = vsel %vm1734, %v1934, 0
        %v1937 = vsel %vm1734, %v1933, 0
        %v1940 = vsel %vm1161, %v1930, 0
        %v1943 = vsel %vm1161, %v1931, 0
        %1945 = vmatprep.subr.mxu0 0.0
        %1946 = vmatpush1.msra.mxu0 0.0
        %1947 = vmatprep.subr.mxu0 0.0
        %1948 = vmatpush1.msra.mxu0 0.0
        %1949 = vmatprep.subr.mxu0 0.0
        %1950 = vmatpush1.msra.mxu0 0.0
        %1951 = vmatprep.subr.mxu0 0.0
        %1952 = vmatpush1.msra.mxu0 0.0
        %1953 = vmatprep.subr.mxu0 0.0
        %1954 = vmatpush1.msra.mxu0 0.0
        %1955 = vmatprep.subr.mxu0 %v1943
        %1956 = vmatpush1.msra.mxu0 %v1940
        %1957 = vmatprep.subr.mxu0 %v1929
        %1958 = vmatpush1.msra.mxu0 %v1928
        %1959 = vmatprep.subr.mxu0 %v1927
        %1960 = vmatpush1.msra.mxu0 %v1926
        %1961 = vmatprep.subr.mxu0 %v1925
        %1962 = vmatpush1.msra.mxu0 %v1924
        %1963 = vmatprep.subr.mxu0 %v1923
        %1964 = vmatpush1.msra.mxu0 %v1922
        %1965 = vmatprep.subr.mxu0 %v1921
        %1966 = vmatpush1.msra.mxu0 %v1920
        %1967 = vmatprep.subr.mxu0 %v1919
        %1968 = vmatpush1.msra.mxu0 %v1918
        %1969 = vmatprep.subr.mxu0 %v1917
        %1970 = vmatpush1.msra.mxu0 %v1916
        %1971 = vmatprep.subr.mxu0 %v1915
        %1972 = vmatpush1.msra.mxu0 %v1914
        %1973 = vmatprep.subr.mxu0 %v1913
        %1974 = vmatpush1.msra.mxu0 %v1912
        %1975 = vmatprep.subr.mxu0 %v1911
        %1976 = vmatpush1.msra.mxu0 %v1910
        %1977 = vmatprep.subr.mxu0 0.0
        %1978 = vmatpush2.msra.mxu0 0.0
        %1979 = vmatprep.subr.mxu0 0.0
        %1980 = vmatpush2.msra.mxu0 0.0
        %1981 = vmatprep.subr.mxu0 0.0
        %1982 = vmatpush2.msra.mxu0 0.0
        %1983 = vmatprep.subr.mxu0 0.0
        %1984 = vmatpush2.msra.mxu0 0.0
        %1985 = vmatprep.subr.mxu0 0.0
        %1986 = vmatpush2.msra.mxu0 0.0
        %1987 = vmatprep.subr.mxu0 0.0
        %1988 = vmatpush2.msra.mxu0 0.0
        %1989 = vmatprep.subr.mxu0 0.0
        %1990 = vmatpush2.msra.mxu0 0.0
        %1991 = vmatprep.subr.mxu0 0.0
        %1992 = vmatpush2.msra.mxu0 0.0
        %1993 = vmatprep.subr.mxu0 0.0
        %1994 = vmatpush2.msra.mxu0 0.0
        %1995 = vmatprep.subr.mxu0 0.0
        %1996 = vmatpush2.msra.mxu0 0.0
        %1997 = vmatprep.subr.mxu0 0.0
        %1998 = vmatpush2.msra.mxu0 0.0
        %1999 = vmatprep.subr.mxu0 0.0
        %2000 = vmatpush2.msra.mxu0 0.0
        %2001 = vmatprep.subr.mxu0 0.0
        %2002 = vmatpush2.msra.mxu0 0.0
        %2003 = vmatprep.subr.mxu0 0.0
        %2004 = vmatpush2.msra.mxu0 0.0
        %2005 = vmatprep.subr.mxu0 0.0
        %2006 = vmatpush2.msra.mxu0 0.0
        %2007 = vmatprep.subr.mxu0 0.0
        %2008 = vmatpush2.msra.mxu0 0.0
        %2009 = vmatprep.mubr.f32.mxu0 0.0
        %2010 = vmatmul.mubr.f32.gmra.mxu0 %v1935
        %v2011 = vpop.f32.mrf.mxu0
        %v2012 = vadd.f32 0.0, %v2011
        %v2013 = vpop.f32.mrf.mxu0
        %v2014 = vadd.f32 0.0, %v2013
        %2015 = vmatprep.mubr.f32.mxu0 0.0
        %2016 = vmatmul.mubr.f32.gmra.mxu0 %v1937
        %v2017 = vpop.f32.mrf.mxu0
        %v2018 = vadd.f32 0.0, %v2017
        %v2019 = vpop.f32.mrf.mxu0
        %v2020 = vadd.f32 0.0, %v2019
        %2021 = vdwg.mxu0
        %v2022 = vadd.f32 %v1899, %v2012
        %v2023 = vadd.f32 %v1901, %v2014
        %v2024 = vadd.f32 %v1905, %v2018
        %v2025 = vadd.f32 %v1907, %v2020
        %s2026 = scalar_lea.vmem %s7, 528
        %v2027 = vld [vmem:[%s2026] sm:$0xff]
        %v2028 = vld [vmem:[%s2026 + $0x8] sm:$0xff]
        %v2029 = vld [vmem:[%s2026 + $0x10] sm:$0xff]
        %v2030 = vld [vmem:[%s2026 + $0x18] sm:$0xff]
        %v2031 = vld [vmem:[%s2026 + $0x20] sm:$0xff]
        %v2032 = vld [vmem:[%s2026 + $0x28] sm:$0xff]
        %v2033 = vld [vmem:[%s2026 + $0x30] sm:$0xff]
        %v2034 = vld [vmem:[%s2026 + $0x38] sm:$0xff]
        %v2035 = vld [vmem:[%s2026 + $0x40] sm:$0xff]
        %v2036 = vld [vmem:[%s2026 + $0x48] sm:$0xff]
        %v2037 = vld [vmem:[%s2026 + $0x50] sm:$0xff]
        %v2038 = vld [vmem:[%s2026 + $0x58] sm:$0xff]
        %v2039 = vld [vmem:[%s2026 + $0x60] sm:$0xff]
        %v2040 = vld [vmem:[%s2026 + $0x68] sm:$0xff]
        %v2041 = vld [vmem:[%s2026 + $0x70] sm:$0xff]
        %v2042 = vld [vmem:[%s2026 + $0x78] sm:$0xff]
        %v2043 = vld [vmem:[%s2026 + $0x80] sm:$0xff]
        %v2044 = vld [vmem:[%s2026 + $0x88] sm:$0xff]
        %v2045 = vld [vmem:[%s2026 + $0x90] sm:$0xff]
        %v2046 = vld [vmem:[%s2026 + $0x98] sm:$0xff]
        %v2047 = vld [vmem:[%s2026 + $0xa0] sm:$0xf]
        %v2048 = vld [vmem:[%s2026 + $0xa8] sm:$0xf]
        %v2049 = vrot.slane %v1682, 3
        %v2050 = vrot.slane %v1683, 3
        %v2051 = vsel %vm1023, %v2049, %v2050
        %v2052 = vsel %vm1734, %v2051, 0
        %v2054 = vsel %vm1734, %v2050, 0
        %v2057 = vsel %vm1161, %v2047, 0
        %v2060 = vsel %vm1161, %v2048, 0
        %2062 = vmatprep.subr.mxu0 0.0
        %2063 = vmatpush1.msra.mxu0 0.0
        %2064 = vmatprep.subr.mxu0 0.0
        %2065 = vmatpush1.msra.mxu0 0.0
        %2066 = vmatprep.subr.mxu0 0.0
        %2067 = vmatpush1.msra.mxu0 0.0
        %2068 = vmatprep.subr.mxu0 0.0
        %2069 = vmatpush1.msra.mxu0 0.0
        %2070 = vmatprep.subr.mxu0 0.0
        %2071 = vmatpush1.msra.mxu0 0.0
        %2072 = vmatprep.subr.mxu0 %v2060
        %2073 = vmatpush1.msra.mxu0 %v2057
        %2074 = vmatprep.subr.mxu0 %v2046
        %2075 = vmatpush1.msra.mxu0 %v2045
        %2076 = vmatprep.subr.mxu0 %v2044
        %2077 = vmatpush1.msra.mxu0 %v2043
        %2078 = vmatprep.subr.mxu0 %v2042
        %2079 = vmatpush1.msra.mxu0 %v2041
        %2080 = vmatprep.subr.mxu0 %v2040
        %2081 = vmatpush1.msra.mxu0 %v2039
        %2082 = vmatprep.subr.mxu0 %v2038
        %2083 = vmatpush1.msra.mxu0 %v2037
        %2084 = vmatprep.subr.mxu0 %v2036
        %2085 = vmatpush1.msra.mxu0 %v2035
        %2086 = vmatprep.subr.mxu0 %v2034
        %2087 = vmatpush1.msra.mxu0 %v2033
        %2088 = vmatprep.subr.mxu0 %v2032
        %2089 = vmatpush1.msra.mxu0 %v2031
        %2090 = vmatprep.subr.mxu0 %v2030
        %2091 = vmatpush1.msra.mxu0 %v2029
        %2092 = vmatprep.subr.mxu0 %v2028
        %2093 = vmatpush1.msra.mxu0 %v2027
        %2094 = vmatprep.subr.mxu0 0.0
        %2095 = vmatpush2.msra.mxu0 0.0
        %2096 = vmatprep.subr.mxu0 0.0
        %2097 = vmatpush2.msra.mxu0 0.0
        %2098 = vmatprep.subr.mxu0 0.0
        %2099 = vmatpush2.msra.mxu0 0.0
        %2100 = vmatprep.subr.mxu0 0.0
        %2101 = vmatpush2.msra.mxu0 0.0
        %2102 = vmatprep.subr.mxu0 0.0
        %2103 = vmatpush2.msra.mxu0 0.0
        %2104 = vmatprep.subr.mxu0 0.0
        %2105 = vmatpush2.msra.mxu0 0.0
        %2106 = vmatprep.subr.mxu0 0.0
        %2107 = vmatpush2.msra.mxu0 0.0
        %2108 = vmatprep.subr.mxu0 0.0
        %2109 = vmatpush2.msra.mxu0 0.0
        %2110 = vmatprep.subr.mxu0 0.0
        %2111 = vmatpush2.msra.mxu0 0.0
        %2112 = vmatprep.subr.mxu0 0.0
        %2113 = vmatpush2.msra.mxu0 0.0
        %2114 = vmatprep.subr.mxu0 0.0
        %2115 = vmatpush2.msra.mxu0 0.0
        %2116 = vmatprep.subr.mxu0 0.0
        %2117 = vmatpush2.msra.mxu0 0.0
        %2118 = vmatprep.subr.mxu0 0.0
        %2119 = vmatpush2.msra.mxu0 0.0
        %2120 = vmatprep.subr.mxu0 0.0
        %2121 = vmatpush2.msra.mxu0 0.0
        %2122 = vmatprep.subr.mxu0 0.0
        %2123 = vmatpush2.msra.mxu0 0.0
        %2124 = vmatprep.subr.mxu0 0.0
        %2125 = vmatpush2.msra.mxu0 0.0
        %2126 = vmatprep.mubr.f32.mxu0 0.0
        %2127 = vmatmul.mubr.f32.gmra.mxu0 %v2052
        %v2128 = vpop.f32.mrf.mxu0
        %v2129 = vadd.f32 0.0, %v2128
        %v2130 = vpop.f32.mrf.mxu0
        %v2131 = vadd.f32 0.0, %v2130
        %2132 = vmatprep.mubr.f32.mxu0 0.0
        %2133 = vmatmul.mubr.f32.gmra.mxu0 %v2054
        %v2134 = vpop.f32.mrf.mxu0
        %v2135 = vadd.f32 0.0, %v2134
        %v2136 = vpop.f32.mrf.mxu0
        %v2137 = vadd.f32 0.0, %v2136
        %2138 = vdwg.mxu0
        %v2139 = vadd.f32 %v2022, %v2129
        %v2140 = vadd.f32 %v2023, %v2131
        %v2141 = vadd.f32 %v2024, %v2135
        %v2142 = vadd.f32 %v2025, %v2137
        %s2143 = scalar_lea.vmem %s7, 704
        %v2144 = vld [vmem:[%s2143] sm:$0xff]
        %v2145 = vld [vmem:[%s2143 + $0x8] sm:$0xff]
        %v2146 = vld [vmem:[%s2143 + $0x10] sm:$0xff]
        %v2147 = vld [vmem:[%s2143 + $0x18] sm:$0xff]
        %v2148 = vld [vmem:[%s2143 + $0x20] sm:$0xff]
        %v2149 = vld [vmem:[%s2143 + $0x28] sm:$0xff]
        %v2150 = vld [vmem:[%s2143 + $0x30] sm:$0xff]
        %v2151 = vld [vmem:[%s2143 + $0x38] sm:$0xff]
        %v2152 = vld [vmem:[%s2143 + $0x40] sm:$0xff]
        %v2153 = vld [vmem:[%s2143 + $0x48] sm:$0xff]
        %v2154 = vld [vmem:[%s2143 + $0x50] sm:$0xff]
        %v2155 = vld [vmem:[%s2143 + $0x58] sm:$0xff]
        %v2156 = vld [vmem:[%s2143 + $0x60] sm:$0xff]
        %v2157 = vld [vmem:[%s2143 + $0x68] sm:$0xff]
        %v2158 = vld [vmem:[%s2143 + $0x70] sm:$0xff]
        %v2159 = vld [vmem:[%s2143 + $0x78] sm:$0xff]
        %v2160 = vld [vmem:[%s2143 + $0x80] sm:$0xff]
        %v2161 = vld [vmem:[%s2143 + $0x88] sm:$0xff]
        %v2162 = vld [vmem:[%s2143 + $0x90] sm:$0xff]
        %v2163 = vld [vmem:[%s2143 + $0x98] sm:$0xff]
        %v2164 = vld [vmem:[%s2143 + $0xa0] sm:$0xf]
        %v2165 = vld [vmem:[%s2143 + $0xa8] sm:$0xf]
        %v2166 = vrot.slane %v1682, 4
        %v2167 = vrot.slane %v1683, 4
        %v2168 = vsel %vm1161, %v2166, %v2167
        %v2169 = vsel %vm1734, %v2168, 0
        %v2171 = vsel %vm1734, %v2167, 0
        %v2174 = vsel %vm1161, %v2164, 0
        %v2177 = vsel %vm1161, %v2165, 0
        %2179 = vmatprep.subr.mxu0 0.0
        %2180 = vmatpush1.msra.mxu0 0.0
        %2181 = vmatprep.subr.mxu0 0.0
        %2182 = vmatpush1.msra.mxu0 0.0
        %2183 = vmatprep.subr.mxu0 0.0
        %2184 = vmatpush1.msra.mxu0 0.0
        %2185 = vmatprep.subr.mxu0 0.0
        %2186 = vmatpush1.msra.mxu0 0.0
        %2187 = vmatprep.subr.mxu0 0.0
        %2188 = vmatpush1.msra.mxu0 0.0
        %2189 = vmatprep.subr.mxu0 %v2177
        %2190 = vmatpush1.msra.mxu0 %v2174
        %2191 = vmatprep.subr.mxu0 %v2163
        %2192 = vmatpush1.msra.mxu0 %v2162
        %2193 = vmatprep.subr.mxu0 %v2161
        %2194 = vmatpush1.msra.mxu0 %v2160
        %2195 = vmatprep.subr.mxu0 %v2159
        %2196 = vmatpush1.msra.mxu0 %v2158
        %2197 = vmatprep.subr.mxu0 %v2157
        %2198 = vmatpush1.msra.mxu0 %v2156
        %2199 = vmatprep.subr.mxu0 %v2155
        %2200 = vmatpush1.msra.mxu0 %v2154
        %2201 = vmatprep.subr.mxu0 %v2153
        %2202 = vmatpush1.msra.mxu0 %v2152
        %2203 = vmatprep.subr.mxu0 %v2151
        %2204 = vmatpush1.msra.mxu0 %v2150
        %2205 = vmatprep.subr.mxu0 %v2149
        %2206 = vmatpush1.msra.mxu0 %v2148
        %2207 = vmatprep.subr.mxu0 %v2147
        %2208 = vmatpush1.msra.mxu0 %v2146
        %2209 = vmatprep.subr.mxu0 %v2145
        %2210 = vmatpush1.msra.mxu0 %v2144
        %2211 = vmatprep.subr.mxu0 0.0
        %2212 = vmatpush2.msra.mxu0 0.0
        %2213 = vmatprep.subr.mxu0 0.0
        %2214 = vmatpush2.msra.mxu0 0.0
        %2215 = vmatprep.subr.mxu0 0.0
        %2216 = vmatpush2.msra.mxu0 0.0
        %2217 = vmatprep.subr.mxu0 0.0
        %2218 = vmatpush2.msra.mxu0 0.0
        %2219 = vmatprep.subr.mxu0 0.0
        %2220 = vmatpush2.msra.mxu0 0.0
        %2221 = vmatprep.subr.mxu0 0.0
        %2222 = vmatpush2.msra.mxu0 0.0
        %2223 = vmatprep.subr.mxu0 0.0
        %2224 = vmatpush2.msra.mxu0 0.0
        %2225 = vmatprep.subr.mxu0 0.0
        %2226 = vmatpush2.msra.mxu0 0.0
        %2227 = vmatprep.subr.mxu0 0.0
        %2228 = vmatpush2.msra.mxu0 0.0
        %2229 = vmatprep.subr.mxu0 0.0
        %2230 = vmatpush2.msra.mxu0 0.0
        %2231 = vmatprep.subr.mxu0 0.0
        %2232 = vmatpush2.msra.mxu0 0.0
        %2233 = vmatprep.subr.mxu0 0.0
        %2234 = vmatpush2.msra.mxu0 0.0
        %2235 = vmatprep.subr.mxu0 0.0
        %2236 = vmatpush2.msra.mxu0 0.0
        %2237 = vmatprep.subr.mxu0 0.0
        %2238 = vmatpush2.msra.mxu0 0.0
        %2239 = vmatprep.subr.mxu0 0.0
        %2240 = vmatpush2.msra.mxu0 0.0
        %2241 = vmatprep.subr.mxu0 0.0
        %2242 = vmatpush2.msra.mxu0 0.0
        %2243 = vmatprep.mubr.f32.mxu0 0.0
        %2244 = vmatmul.mubr.f32.gmra.mxu0 %v2169
        %v2245 = vpop.f32.mrf.mxu0
        %v2246 = vadd.f32 0.0, %v2245
        %v2247 = vpop.f32.mrf.mxu0
        %v2248 = vadd.f32 0.0, %v2247
        %2249 = vmatprep.mubr.f32.mxu0 0.0
        %2250 = vmatmul.mubr.f32.gmra.mxu0 %v2171
        %v2251 = vpop.f32.mrf.mxu0
        %v2252 = vadd.f32 0.0, %v2251
        %v2253 = vpop.f32.mrf.mxu0
        %v2254 = vadd.f32 0.0, %v2253
        %2255 = vdwg.mxu0
        %v2256 = vadd.f32 %v2139, %v2246
        %v2257 = vadd.f32 %v2140, %v2248
        %v2258 = vadd.f32 %v2141, %v2252
        %v2259 = vadd.f32 %v2142, %v2254
        %v2260 = vld [vmem:[%s8] sm:$0x3]
        %v2262 = vlaneseq
        %v2263 = vshrl.u32 %v2262, 7
        %v2264 = vsub.s32 0, %v2263
        %v2265 = vrot.slane %v2260, %v2264
        %v2266 = vlaneseq
        %v2267 = vshrl.u32 %v2266, 7
        %v2268 = vsub.s32 1, %v2267
        %v2269 = vrot.slane %v2260, %v2268
        %v2272 = vadd.f32 %v2256, %v2265
        %v2273 = vadd.f32 %v2257, %v2269
        %v2274 = vadd.f32 %v2258, %v2265
        %v2275 = vadd.f32 %v2259, %v2269
        %v2276 = vmax.f32 %v2272, 0.0
        %v2277 = vmax.f32 %v2273, 0.0
        %v2278 = vmax.f32 %v2274, 0.0
        %v2279 = vmax.f32 %v2275, 0.0
        %v2280 = vld [vmem:[%s9] sm:$0x1f]
        %vm2281 = vcmask 80896
        %v2283 = vsel %vm2281, %v2280, 0
        %vm2285 = vcmask 1041408
        %v2287 = vsel %vm2285, %v2278, 0
        %v2290 = vsel %vm2285, %v2279, 0
        %2292 = vmatprep.subr.mxu0 0.0
        %2293 = vmatpush1.msra.mxu0 0.0
        %2294 = vmatprep.subr.mxu0 0.0
        %2295 = vmatpush1.msra.mxu0 0.0
        %2296 = vmatprep.subr.mxu0 0.0
        %2297 = vmatpush1.msra.mxu0 0.0
        %2298 = vmatprep.subr.mxu0 0.0
        %2299 = vmatpush1.msra.mxu0 0.0
        %2300 = vmatprep.subr.mxu0 0.0
        %2301 = vmatpush1.msra.mxu0 0.0
        %2302 = vmatprep.subr.mxu0 0.0
        %2303 = vmatpush1.msra.mxu0 0.0
        %2304 = vmatprep.subr.mxu0 0.0
        %2305 = vmatpush1.msra.mxu0 0.0
        %2306 = vmatprep.subr.mxu0 0.0
        %2307 = vmatpush1.msra.mxu0 0.0
        %2308 = vmatprep.subr.mxu0 0.0
        %2309 = vmatpush1.msra.mxu0 0.0
        %2310 = vmatprep.subr.mxu0 0.0
        %2311 = vmatpush1.msra.mxu0 0.0
        %2312 = vmatprep.subr.mxu0 0.0
        %2313 = vmatpush1.msra.mxu0 0.0
        %2314 = vmatprep.subr.mxu0 0.0
        %2315 = vmatpush1.msra.mxu0 0.0
        %2316 = vmatprep.subr.mxu0 0.0
        %2317 = vmatpush1.msra.mxu0 0.0
        %2318 = vmatprep.subr.mxu0 0.0
        %2319 = vmatpush1.msra.mxu0 0.0
        %2320 = vmatprep.subr.mxu0 %v2290
        %2321 = vmatpush1.msra.mxu0 %v2287
        %2322 = vmatprep.subr.mxu0 %v2277
        %2323 = vmatpush1.msra.mxu0 %v2276
        %2324 = vmatprep.subr.mxu0 0.0
        %2325 = vmatpush2.msra.mxu0 0.0
        %2326 = vmatprep.subr.mxu0 0.0
        %2327 = vmatpush2.msra.mxu0 0.0
        %2328 = vmatprep.subr.mxu0 0.0
        %2329 = vmatpush2.msra.mxu0 0.0
        %2330 = vmatprep.subr.mxu0 0.0
        %2331 = vmatpush2.msra.mxu0 0.0
        %2332 = vmatprep.subr.mxu0 0.0
        %2333 = vmatpush2.msra.mxu0 0.0
        %2334 = vmatprep.subr.mxu0 0.0
        %2335 = vmatpush2.msra.mxu0 0.0
        %2336 = vmatprep.subr.mxu0 0.0
        %2337 = vmatpush2.msra.mxu0 0.0
        %2338 = vmatprep.subr.mxu0 0.0
        %2339 = vmatpush2.msra.mxu0 0.0
        %2340 = vmatprep.subr.mxu0 0.0
        %2341 = vmatpush2.msra.mxu0 0.0
        %2342 = vmatprep.subr.mxu0 0.0
        %2343 = vmatpush2.msra.mxu0 0.0
        %2344 = vmatprep.subr.mxu0 0.0
        %2345 = vmatpush2.msra.mxu0 0.0
        %2346 = vmatprep.subr.mxu0 0.0
        %2347 = vmatpush2.msra.mxu0 0.0
        %2348 = vmatprep.subr.mxu0 0.0
        %2349 = vmatpush2.msra.mxu0 0.0
        %2350 = vmatprep.subr.mxu0 0.0
        %2351 = vmatpush2.msra.mxu0 0.0
        %2352 = vmatprep.subr.mxu0 0.0
        %2353 = vmatpush2.msra.mxu0 0.0
        %2354 = vmatprep.subr.mxu0 0.0
        %2355 = vmatpush2.msra.mxu0 0.0
        %2356 = vmatprep.mubr.f32.mxu0 0.0
        %2357 = vmatmul.mubr.f32.gmra.mxu0 %v2283
        %v2358 = vpop.f32.mrf.mxu0
        %v2359 = vadd.f32 0.0, %v2358
        %v2360 = vpop.f32.mrf.mxu0
        %v2361 = vadd.f32 0.0, %v2360
        %2362 = vdwg.mxu0
        %v2363 = vld [vmem:[%s10] sm:$0x1f]
        %v2365 = vsel %vm2281, %v2363, 0
        %2367 = vmatprep.subr.mxu0 0.0
        %2368 = vmatpush1.msra.mxu0 0.0
        %2369 = vmatprep.subr.mxu0 0.0
        %2370 = vmatpush1.msra.mxu0 0.0
        %2371 = vmatprep.subr.mxu0 0.0
        %2372 = vmatpush1.msra.mxu0 0.0
        %2373 = vmatprep.subr.mxu0 0.0
        %2374 = vmatpush1.msra.mxu0 0.0
        %2375 = vmatprep.subr.mxu0 0.0
        %2376 = vmatpush1.msra.mxu0 0.0
        %2377 = vmatprep.subr.mxu0 0.0
        %2378 = vmatpush1.msra.mxu0 0.0
        %2379 = vmatprep.subr.mxu0 0.0
        %2380 = vmatpush1.msra.mxu0 0.0
        %2381 = vmatprep.subr.mxu0 0.0
        %2382 = vmatpush1.msra.mxu0 0.0
        %2383 = vmatprep.subr.mxu0 0.0
        %2384 = vmatpush1.msra.mxu0 0.0
        %2385 = vmatprep.subr.mxu0 0.0
        %2386 = vmatpush1.msra.mxu0 0.0
        %2387 = vmatprep.subr.mxu0 0.0
        %2388 = vmatpush1.msra.mxu0 0.0
        %2389 = vmatprep.subr.mxu0 0.0
        %2390 = vmatpush1.msra.mxu0 0.0
        %2391 = vmatprep.subr.mxu0 0.0
        %2392 = vmatpush1.msra.mxu0 0.0
        %2393 = vmatprep.subr.mxu0 0.0
        %2394 = vmatpush1.msra.mxu0 0.0
        %2395 = vmatprep.subr.mxu0 %v2290
        %2396 = vmatpush1.msra.mxu0 %v2287
        %2397 = vmatprep.subr.mxu0 %v2277
        %2398 = vmatpush1.msra.mxu0 %v2276
        %2399 = vmatprep.subr.mxu0 0.0
        %2400 = vmatpush2.msra.mxu0 0.0
        %2401 = vmatprep.subr.mxu0 0.0
        %2402 = vmatpush2.msra.mxu0 0.0
        %2403 = vmatprep.subr.mxu0 0.0
        %2404 = vmatpush2.msra.mxu0 0.0
        %2405 = vmatprep.subr.mxu0 0.0
        %2406 = vmatpush2.msra.mxu0 0.0
        %2407 = vmatprep.subr.mxu0 0.0
        %2408 = vmatpush2.msra.mxu0 0.0
        %2409 = vmatprep.subr.mxu0 0.0
        %2410 = vmatpush2.msra.mxu0 0.0
        %2411 = vmatprep.subr.mxu0 0.0
        %2412 = vmatpush2.msra.mxu0 0.0
        %2413 = vmatprep.subr.mxu0 0.0
        %2414 = vmatpush2.msra.mxu0 0.0
        %2415 = vmatprep.subr.mxu0 0.0
        %2416 = vmatpush2.msra.mxu0 0.0
        %2417 = vmatprep.subr.mxu0 0.0
        %2418 = vmatpush2.msra.mxu0 0.0
        %2419 = vmatprep.subr.mxu0 0.0
        %2420 = vmatpush2.msra.mxu0 0.0
        %2421 = vmatprep.subr.mxu0 0.0
        %2422 = vmatpush2.msra.mxu0 0.0
        %2423 = vmatprep.subr.mxu0 0.0
        %2424 = vmatpush2.msra.mxu0 0.0
        %2425 = vmatprep.subr.mxu0 0.0
        %2426 = vmatpush2.msra.mxu0 0.0
        %2427 = vmatprep.subr.mxu0 0.0
        %2428 = vmatpush2.msra.mxu0 0.0
        %2429 = vmatprep.subr.mxu0 0.0
        %2430 = vmatpush2.msra.mxu0 0.0
        %2431 = vmatprep.mubr.f32.mxu0 0.0
        %2432 = vmatmul.mubr.f32.gmra.mxu0 %v2365
        %v2433 = vpop.f32.mrf.mxu0
        %v2434 = vadd.f32 0.0, %v2433
        %v2435 = vpop.f32.mrf.mxu0
        %v2436 = vadd.f32 0.0, %v2435
        %2437 = vdwg.mxu0
        %v2438 = vmax.f32 %v2359, %v2434
        %v2439 = vmax.f32 %v2361, %v2436
        %v2440 = vld [vmem:[%s11] sm:$0xff]
        %v2441 = vld [vmem:[%s11 + $0x8] sm:$0xff]
        %v2442 = vld [vmem:[%s11 + $0x10] sm:$0xff]
        %v2443 = vld [vmem:[%s11 + $0x18] sm:$0xff]
        %v2444 = vld [vmem:[%s11 + $0x20] sm:$0xff]
        %v2445 = vld [vmem:[%s11 + $0x28] sm:$0xff]
        %v2446 = vld [vmem:[%s11 + $0x30] sm:$0xff]
        %v2447 = vld [vmem:[%s11 + $0x38] sm:$0xff]
        %v2448 = vld [vmem:[%s11 + $0x40] sm:$0xff]
        %v2449 = vld [vmem:[%s11 + $0x48] sm:$0xff]
        %v2450 = vld [vmem:[%s11 + $0x50] sm:$0xff]
        %v2451 = vld [vmem:[%s11 + $0x58] sm:$0xff]
        %v2452 = vld [vmem:[%s11 + $0x60] sm:$0xff]
        %v2453 = vld [vmem:[%s11 + $0x68] sm:$0xff]
        %v2454 = vld [vmem:[%s11 + $0x70] sm:$0xff]
        %v2455 = vld [vmem:[%s11 + $0x78] sm:$0xff]
        %v2456 = vld [vmem:[%s11 + $0x80] sm:$0xff]
        %v2457 = vld [vmem:[%s11 + $0x88] sm:$0xff]
        %v2458 = vld [vmem:[%s11 + $0x90] sm:$0xff]
        %v2459 = vld [vmem:[%s11 + $0x98] sm:$0xff]
        %vm2460 = vcmask 261120
        %v2462 = vsel %vm2460, %v2439, 0
        %2464 = vmatprep.subr.mxu0 0.0
        %2465 = vmatpush1.msra.mxu0 %v2455
        %2466 = vmatprep.subr.mxu0 0.0
        %2467 = vmatpush1.msra.mxu0 %v2454
        %2468 = vmatprep.subr.mxu0 0.0
        %2469 = vmatpush1.msra.mxu0 %v2453
        %2470 = vmatprep.subr.mxu0 0.0
        %2471 = vmatpush1.msra.mxu0 %v2452
        %2472 = vmatprep.subr.mxu0 0.0
        %2473 = vmatpush1.msra.mxu0 %v2451
        %2474 = vmatprep.subr.mxu0 0.0
        %2475 = vmatpush1.msra.mxu0 %v2450
        %2476 = vmatprep.subr.mxu0 0.0
        %2477 = vmatpush1.msra.mxu0 %v2449
        %2478 = vmatprep.subr.mxu0 0.0
        %2479 = vmatpush1.msra.mxu0 %v2448
        %2480 = vmatprep.subr.mxu0 0.0
        %2481 = vmatpush1.msra.mxu0 %v2447
        %2482 = vmatprep.subr.mxu0 0.0
        %2483 = vmatpush1.msra.mxu0 %v2446
        %2484 = vmatprep.subr.mxu0 0.0
        %2485 = vmatpush1.msra.mxu0 %v2445
        %2486 = vmatprep.subr.mxu0 0.0
        %2487 = vmatpush1.msra.mxu0 %v2444
        %2488 = vmatprep.subr.mxu0 0.0
        %2489 = vmatpush1.msra.mxu0 %v2443
        %2490 = vmatprep.subr.mxu0 0.0
        %2491 = vmatpush1.msra.mxu0 %v2442
        %2492 = vmatprep.subr.mxu0 0.0
        %2493 = vmatpush1.msra.mxu0 %v2441
        %2494 = vmatprep.subr.mxu0 0.0
        %2495 = vmatpush1.msra.mxu0 %v2440
        %2496 = vmatprep.subr.mxu0 0.0
        %2497 = vmatpush2.msra.mxu0 0.0
        %2498 = vmatprep.subr.mxu0 0.0
        %2499 = vmatpush2.msra.mxu0 0.0
        %2500 = vmatprep.subr.mxu0 0.0
        %2501 = vmatpush2.msra.mxu0 0.0
        %2502 = vmatprep.subr.mxu0 0.0
        %2503 = vmatpush2.msra.mxu0 0.0
        %2504 = vmatprep.subr.mxu0 0.0
        %2505 = vmatpush2.msra.mxu0 0.0
        %2506 = vmatprep.subr.mxu0 0.0
        %2507 = vmatpush2.msra.mxu0 0.0
        %2508 = vmatprep.subr.mxu0 0.0
        %2509 = vmatpush2.msra.mxu0 0.0
        %2510 = vmatprep.subr.mxu0 0.0
        %2511 = vmatpush2.msra.mxu0 0.0
        %2512 = vmatprep.subr.mxu0 0.0
        %2513 = vmatpush2.msra.mxu0 0.0
        %2514 = vmatprep.subr.mxu0 0.0
        %2515 = vmatpush2.msra.mxu0 0.0
        %2516 = vmatprep.subr.mxu0 0.0
        %2517 = vmatpush2.msra.mxu0 0.0
        %2518 = vmatprep.subr.mxu0 0.0
        %2519 = vmatpush2.msra.mxu0 0.0
        %2520 = vmatprep.subr.mxu0 0.0
        %2521 = vmatpush2.msra.mxu0 %v2459
        %2522 = vmatprep.subr.mxu0 0.0
        %2523 = vmatpush2.msra.mxu0 %v2458
        %2524 = vmatprep.subr.mxu0 0.0
        %2525 = vmatpush2.msra.mxu0 %v2457
        %2526 = vmatprep.subr.mxu0 0.0
        %2527 = vmatpush2.msra.mxu0 %v2456
        %2528 = vmatprep.mubr.f32.mxu0 %v2462
        %2529 = vmatmul.mubr.f32.gmra.mxu0 %v2438
        %v2530 = vpop.f32.mrf.mxu0
        %v2531 = vadd.f32 0.0, %v2530
        %v2532 = vpop.f32.mrf.mxu0
        %2533 = vdwg.mxu0
        %v2534 = vld [vmem:[%s12] sm:$0xff]
        %v2535 = vld [vmem:[%s12 + $0x8] sm:$0xff]
        %v2536 = vld [vmem:[%s12 + $0x10] sm:$0xff]
        %v2537 = vld [vmem:[%s12 + $0x18] sm:$0xff]
        %v2538 = vld [vmem:[%s12 + $0x20] sm:$0xff]
        %v2539 = vld [vmem:[%s12 + $0x28] sm:$0xff]
        %v2540 = vld [vmem:[%s12 + $0x30] sm:$0xff]
        %v2541 = vld [vmem:[%s12 + $0x38] sm:$0xff]
        %v2542 = vld [vmem:[%s12 + $0x40] sm:$0xff]
        %v2543 = vld [vmem:[%s12 + $0x48] sm:$0xff]
        %v2544 = vld [vmem:[%s12 + $0x50] sm:$0xff]
        %v2545 = vld [vmem:[%s12 + $0x58] sm:$0xff]
        %v2546 = vld [vmem:[%s12 + $0x60] sm:$0xff]
        %v2547 = vld [vmem:[%s12 + $0x68] sm:$0xff]
        %v2548 = vld [vmem:[%s12 + $0x70] sm:$0xff]
        %v2549 = vld [vmem:[%s12 + $0x78] sm:$0xff]
        %v2550 = vld [vmem:[%s12 + $0x80] sm:$0xff]
        %v2551 = vld [vmem:[%s12 + $0x88] sm:$0xff]
        %v2552 = vld [vmem:[%s12 + $0x90] sm:$0xff]
        %v2553 = vld [vmem:[%s12 + $0x98] sm:$0xff]
        %2554 = vmatprep.subr.mxu0 0.0
        %2555 = vmatpush1.msra.mxu0 %v2549
        %2556 = vmatprep.subr.mxu0 0.0
        %2557 = vmatpush1.msra.mxu0 %v2548
        %2558 = vmatprep.subr.mxu0 0.0
        %2559 = vmatpush1.msra.mxu0 %v2547
        %2560 = vmatprep.subr.mxu0 0.0
        %2561 = vmatpush1.msra.mxu0 %v2546
        %2562 = vmatprep.subr.mxu0 0.0
        %2563 = vmatpush1.msra.mxu0 %v2545
        %2564 = vmatprep.subr.mxu0 0.0
        %2565 = vmatpush1.msra.mxu0 %v2544
        %2566 = vmatprep.subr.mxu0 0.0
        %2567 = vmatpush1.msra.mxu0 %v2543
        %2568 = vmatprep.subr.mxu0 0.0
        %2569 = vmatpush1.msra.mxu0 %v2542
        %2570 = vmatprep.subr.mxu0 0.0
        %2571 = vmatpush1.msra.mxu0 %v2541
        %2572 = vmatprep.subr.mxu0 0.0
        %2573 = vmatpush1.msra.mxu0 %v2540
        %2574 = vmatprep.subr.mxu0 0.0
        %2575 = vmatpush1.msra.mxu0 %v2539
        %2576 = vmatprep.subr.mxu0 0.0
        %2577 = vmatpush1.msra.mxu0 %v2538
        %2578 = vmatprep.subr.mxu0 0.0
        %2579 = vmatpush1.msra.mxu0 %v2537
        %2580 = vmatprep.subr.mxu0 0.0
        %2581 = vmatpush1.msra.mxu0 %v2536
        %2582 = vmatprep.subr.mxu0 0.0
        %2583 = vmatpush1.msra.mxu0 %v2535
        %2584 = vmatprep.subr.mxu0 0.0
        %2585 = vmatpush1.msra.mxu0 %v2534
        %2586 = vmatprep.subr.mxu0 0.0
        %2587 = vmatpush2.msra.mxu0 0.0
        %2588 = vmatprep.subr.mxu0 0.0
        %2589 = vmatpush2.msra.mxu0 0.0
        %2590 = vmatprep.subr.mxu0 0.0
        %2591 = vmatpush2.msra.mxu0 0.0
        %2592 = vmatprep.subr.mxu0 0.0
        %2593 = vmatpush2.msra.mxu0 0.0
        %2594 = vmatprep.subr.mxu0 0.0
        %2595 = vmatpush2.msra.mxu0 0.0
        %2596 = vmatprep.subr.mxu0 0.0
        %2597 = vmatpush2.msra.mxu0 0.0
        %2598 = vmatprep.subr.mxu0 0.0
        %2599 = vmatpush2.msra.mxu0 0.0
        %2600 = vmatprep.subr.mxu0 0.0
        %2601 = vmatpush2.msra.mxu0 0.0
        %2602 = vmatprep.subr.mxu0 0.0
        %2603 = vmatpush2.msra.mxu0 0.0
        %2604 = vmatprep.subr.mxu0 0.0
        %2605 = vmatpush2.msra.mxu0 0.0
        %2606 = vmatprep.subr.mxu0 0.0
        %2607 = vmatpush2.msra.mxu0 0.0
        %2608 = vmatprep.subr.mxu0 0.0
        %2609 = vmatpush2.msra.mxu0 0.0
        %2610 = vmatprep.subr.mxu0 0.0
        %2611 = vmatpush2.msra.mxu0 %v2553
        %2612 = vmatprep.subr.mxu0 0.0
        %2613 = vmatpush2.msra.mxu0 %v2552
        %2614 = vmatprep.subr.mxu0 0.0
        %2615 = vmatpush2.msra.mxu0 %v2551
        %2616 = vmatprep.subr.mxu0 0.0
        %2617 = vmatpush2.msra.mxu0 %v2550
        %2618 = vmatprep.mubr.f32.mxu0 %v2462
        %2619 = vmatmul.mubr.f32.gmra.mxu0 %v2438
        %v2620 = vpop.f32.mrf.mxu0
        %v2621 = vadd.f32 0.0, %v2620
        %v2622 = vpop.f32.mrf.mxu0
        %2623 = vdwg.mxu0
        %v2624 = vmax.f32 %v2531, %v2621
        %v2625 = vld [vmem:[%s13] sm:$0xff]
        %v2626 = vld [vmem:[%s13 + $0x8] sm:$0xff]
        %v2627 = vld [vmem:[%s13 + $0x10] sm:$0xff]
        %v2628 = vld [vmem:[%s13 + $0x18] sm:$0xff]
        %v2629 = vld [vmem:[%s13 + $0x20] sm:$0xff]
        %v2630 = vld [vmem:[%s13 + $0x28] sm:$0xff]
        %v2631 = vld [vmem:[%s13 + $0x30] sm:$0xff]
        %v2632 = vld [vmem:[%s13 + $0x38] sm:$0xff]
        %v2633 = vld [vmem:[%s13 + $0x40] sm:$0xff]
        %v2634 = vld [vmem:[%s13 + $0x48] sm:$0xff]
        %v2635 = vld [vmem:[%s13 + $0x50] sm:$0xff]
        %v2636 = vld [vmem:[%s13 + $0x58] sm:$0xff]
        %v2637 = vld [vmem:[%s13 + $0x60] sm:$0xff]
        %v2638 = vld [vmem:[%s13 + $0x68] sm:$0xff]
        %v2639 = vld [vmem:[%s13 + $0x70] sm:$0xff]
        %v2640 = vld [vmem:[%s13 + $0x78] sm:$0xff]
        %v2641 = vld [vmem:[%s13 + $0x80] sm:$0xff]
        %v2642 = vld [vmem:[%s13 + $0x88] sm:$0xff]
        %v2643 = vld [vmem:[%s13 + $0x90] sm:$0xff]
        %v2644 = vld [vmem:[%s13 + $0x98] sm:$0xff]
        %s2645 = scalar_lea.vmem %s13, 160
        %v2646 = vld [vmem:[%s2645] sm:$0xff]
        %v2647 = vld [vmem:[%s2645 + $0x8] sm:$0xff]
        %v2648 = vld [vmem:[%s2645 + $0x10] sm:$0xff]
        %v2649 = vld [vmem:[%s2645 + $0x18] sm:$0xff]
        %v2650 = vld [vmem:[%s2645 + $0x20] sm:$0xff]
        %v2651 = vld [vmem:[%s2645 + $0x28] sm:$0xff]
        %v2652 = vld [vmem:[%s2645 + $0x30] sm:$0xff]
        %v2653 = vld [vmem:[%s2645 + $0x38] sm:$0xff]
        %v2654 = vld [vmem:[%s2645 + $0x40] sm:$0xff]
        %v2655 = vld [vmem:[%s2645 + $0x48] sm:$0xff]
        %v2656 = vld [vmem:[%s2645 + $0x50] sm:$0xff]
        %v2657 = vld [vmem:[%s2645 + $0x58] sm:$0xff]
        %v2658 = vld [vmem:[%s2645 + $0x60] sm:$0xff]
        %v2659 = vld [vmem:[%s2645 + $0x68] sm:$0xff]
        %v2660 = vld [vmem:[%s2645 + $0x70] sm:$0xff]
        %v2661 = vld [vmem:[%s2645 + $0x78] sm:$0xff]
        %v2662 = vld [vmem:[%s2645 + $0x80] sm:$0xff]
        %v2663 = vld [vmem:[%s2645 + $0x88] sm:$0xff]
        %v2664 = vld [vmem:[%s2645 + $0x90] sm:$0xff]
        %v2665 = vld [vmem:[%s2645 + $0x98] sm:$0xff]
        %v2667 = vrot.slane %v2624, 1
        %vm2668 = vcmask 654336
        %v2669 = vsel %vm2668, %v2667, 0
        %2671 = vmatprep.subr.mxu0 0.0
        %2672 = vmatpush1.msra.mxu0 0.0
        %2673 = vmatprep.subr.mxu0 0.0
        %2674 = vmatpush1.msra.mxu0 0.0
        %2675 = vmatprep.subr.mxu0 0.0
        %2676 = vmatpush1.msra.mxu0 0.0
        %2677 = vmatprep.subr.mxu0 0.0
        %2678 = vmatpush1.msra.mxu0 0.0
        %2679 = vmatprep.subr.mxu0 0.0
        %2680 = vmatpush1.msra.mxu0 0.0
        %2681 = vmatprep.subr.mxu0 0.0
        %2682 = vmatpush1.msra.mxu0 0.0
        %2683 = vmatprep.subr.mxu0 %v2665
        %2684 = vmatpush1.msra.mxu0 %v2664
        %2685 = vmatprep.subr.mxu0 %v2663
        %2686 = vmatpush1.msra.mxu0 %v2662
        %2687 = vmatprep.subr.mxu0 %v2661
        %2688 = vmatpush1.msra.mxu0 %v2660
        %2689 = vmatprep.subr.mxu0 %v2659
        %2690 = vmatpush1.msra.mxu0 %v2658
        %2691 = vmatprep.subr.mxu0 %v2657
        %2692 = vmatpush1.msra.mxu0 %v2656
        %2693 = vmatprep.subr.mxu0 %v2655
        %2694 = vmatpush1.msra.mxu0 %v2654
        %2695 = vmatprep.subr.mxu0 %v2653
        %2696 = vmatpush1.msra.mxu0 %v2652
        %2697 = vmatprep.subr.mxu0 %v2651
        %2698 = vmatpush1.msra.mxu0 %v2650
        %2699 = vmatprep.subr.mxu0 %v2649
        %2700 = vmatpush1.msra.mxu0 %v2648
        %2701 = vmatprep.subr.mxu0 %v2647
        %2702 = vmatpush1.msra.mxu0 %v2646
        %2703 = vmatprep.subr.mxu0 0.0
        %2704 = vmatpush2.msra.mxu0 0.0
        %2705 = vmatprep.subr.mxu0 0.0
        %2706 = vmatpush2.msra.mxu0 0.0
        %2707 = vmatprep.subr.mxu0 0.0
        %2708 = vmatpush2.msra.mxu0 0.0
        %2709 = vmatprep.subr.mxu0 0.0
        %2710 = vmatpush2.msra.mxu0 0.0
        %2711 = vmatprep.subr.mxu0 0.0
        %2712 = vmatpush2.msra.mxu0 0.0
        %2713 = vmatprep.subr.mxu0 0.0
        %2714 = vmatpush2.msra.mxu0 0.0
        %2715 = vmatprep.subr.mxu0 0.0
        %2716 = vmatpush2.msra.mxu0 0.0
        %2717 = vmatprep.subr.mxu0 0.0
        %2718 = vmatpush2.msra.mxu0 0.0
        %2719 = vmatprep.subr.mxu0 0.0
        %2720 = vmatpush2.msra.mxu0 0.0
        %2721 = vmatprep.subr.mxu0 0.0
        %2722 = vmatpush2.msra.mxu0 0.0
        %2723 = vmatprep.subr.mxu0 0.0
        %2724 = vmatpush2.msra.mxu0 0.0
        %2725 = vmatprep.subr.mxu0 0.0
        %2726 = vmatpush2.msra.mxu0 0.0
        %2727 = vmatprep.subr.mxu0 0.0
        %2728 = vmatpush2.msra.mxu0 0.0
        %2729 = vmatprep.subr.mxu0 0.0
        %2730 = vmatpush2.msra.mxu0 0.0
        %2731 = vmatprep.subr.mxu0 0.0
        %2732 = vmatpush2.msra.mxu0 0.0
        %2733 = vmatprep.subr.mxu0 0.0
        %2734 = vmatpush2.msra.mxu0 0.0
        %2735 = vmatprep.mubr.f32.mxu0 0.0
        %2736 = vmatmul.mubr.f32.gmra.mxu0 %v2669
        %v2737 = vpop.f32.mrf.mxu0
        %v2738 = vadd.f32 0.0, %v2737
        %v2739 = vpop.f32.mrf.mxu0
        %v2740 = vadd.f32 0.0, %v2739
        %2741 = vdwg.mxu0
        %v2742 = vsel %vm2668, %v2624, 0
        %2744 = vmatprep.subr.mxu0 0.0
        %2745 = vmatpush1.msra.mxu0 0.0
        %2746 = vmatprep.subr.mxu0 0.0
        %2747 = vmatpush1.msra.mxu0 0.0
        %2748 = vmatprep.subr.mxu0 0.0
        %2749 = vmatpush1.msra.mxu0 0.0
        %2750 = vmatprep.subr.mxu0 0.0
        %2751 = vmatpush1.msra.mxu0 0.0
        %2752 = vmatprep.subr.mxu0 0.0
        %2753 = vmatpush1.msra.mxu0 0.0
        %2754 = vmatprep.subr.mxu0 0.0
        %2755 = vmatpush1.msra.mxu0 0.0
        %2756 = vmatprep.subr.mxu0 %v2644
        %2757 = vmatpush1.msra.mxu0 %v2643
        %2758 = vmatprep.subr.mxu0 %v2642
        %2759 = vmatpush1.msra.mxu0 %v2641
        %2760 = vmatprep.subr.mxu0 %v2640
        %2761 = vmatpush1.msra.mxu0 %v2639
        %2762 = vmatprep.subr.mxu0 %v2638
        %2763 = vmatpush1.msra.mxu0 %v2637
        %2764 = vmatprep.subr.mxu0 %v2636
        %2765 = vmatpush1.msra.mxu0 %v2635
        %2766 = vmatprep.subr.mxu0 %v2634
        %2767 = vmatpush1.msra.mxu0 %v2633
        %2768 = vmatprep.subr.mxu0 %v2632
        %2769 = vmatpush1.msra.mxu0 %v2631
        %2770 = vmatprep.subr.mxu0 %v2630
        %2771 = vmatpush1.msra.mxu0 %v2629
        %2772 = vmatprep.subr.mxu0 %v2628
        %2773 = vmatpush1.msra.mxu0 %v2627
        %2774 = vmatprep.subr.mxu0 %v2626
        %2775 = vmatpush1.msra.mxu0 %v2625
        %2776 = vmatprep.subr.mxu0 0.0
        %2777 = vmatpush2.msra.mxu0 0.0
        %2778 = vmatprep.subr.mxu0 0.0
        %2779 = vmatpush2.msra.mxu0 0.0
        %2780 = vmatprep.subr.mxu0 0.0
        %2781 = vmatpush2.msra.mxu0 0.0
        %2782 = vmatprep.subr.mxu0 0.0
        %2783 = vmatpush2.msra.mxu0 0.0
        %2784 = vmatprep.subr.mxu0 0.0
        %2785 = vmatpush2.msra.mxu0 0.0
        %2786 = vmatprep.subr.mxu0 0.0
        %2787 = vmatpush2.msra.mxu0 0.0
        %2788 = vmatprep.subr.mxu0 0.0
        %2789 = vmatpush2.msra.mxu0 0.0
        %2790 = vmatprep.subr.mxu0 0.0
        %2791 = vmatpush2.msra.mxu0 0.0
        %2792 = vmatprep.subr.mxu0 0.0
        %2793 = vmatpush2.msra.mxu0 0.0
        %2794 = vmatprep.subr.mxu0 0.0
        %2795 = vmatpush2.msra.mxu0 0.0
        %2796 = vmatprep.subr.mxu0 0.0
        %2797 = vmatpush2.msra.mxu0 0.0
        %2798 = vmatprep.subr.mxu0 0.0
        %2799 = vmatpush2.msra.mxu0 0.0
        %2800 = vmatprep.subr.mxu0 0.0
        %2801 = vmatpush2.msra.mxu0 0.0
        %2802 = vmatprep.subr.mxu0 0.0
        %2803 = vmatpush2.msra.mxu0 0.0
        %2804 = vmatprep.subr.mxu0 0.0
        %2805 = vmatpush2.msra.mxu0 0.0
        %2806 = vmatprep.subr.mxu0 0.0
        %2807 = vmatpush2.msra.mxu0 0.0
        %2808 = vmatprep.mubr.f32.mxu0 0.0
        %2809 = vmatmul.mubr.f32.gmra.mxu0 %v2742
        %v2810 = vpop.f32.mrf.mxu0
        %v2811 = vadd.f32 %v2738, %v2810
        %v2812 = vpop.f32.mrf.mxu0
        %v2813 = vadd.f32 %v2740, %v2812
        %2814 = vdwg.mxu0
        %s2815 = scalar_lea.vmem %s13, 320
        %v2816 = vld [vmem:[%s2815] sm:$0xff]
        %v2817 = vld [vmem:[%s2815 + $0x8] sm:$0xff]
        %v2818 = vld [vmem:[%s2815 + $0x10] sm:$0xff]
        %v2819 = vld [vmem:[%s2815 + $0x18] sm:$0xff]
        %v2820 = vld [vmem:[%s2815 + $0x20] sm:$0xff]
        %v2821 = vld [vmem:[%s2815 + $0x28] sm:$0xff]
        %v2822 = vld [vmem:[%s2815 + $0x30] sm:$0xff]
        %v2823 = vld [vmem:[%s2815 + $0x38] sm:$0xff]
        %v2824 = vld [vmem:[%s2815 + $0x40] sm:$0xff]
        %v2825 = vld [vmem:[%s2815 + $0x48] sm:$0xff]
        %v2826 = vld [vmem:[%s2815 + $0x50] sm:$0xff]
        %v2827 = vld [vmem:[%s2815 + $0x58] sm:$0xff]
        %v2828 = vld [vmem:[%s2815 + $0x60] sm:$0xff]
        %v2829 = vld [vmem:[%s2815 + $0x68] sm:$0xff]
        %v2830 = vld [vmem:[%s2815 + $0x70] sm:$0xff]
        %v2831 = vld [vmem:[%s2815 + $0x78] sm:$0xff]
        %v2832 = vld [vmem:[%s2815 + $0x80] sm:$0xff]
        %v2833 = vld [vmem:[%s2815 + $0x88] sm:$0xff]
        %v2834 = vld [vmem:[%s2815 + $0x90] sm:$0xff]
        %v2835 = vld [vmem:[%s2815 + $0x98] sm:$0xff]
        %v2836 = vrot.slane %v2624, 2
        %v2837 = vsel %vm2668, %v2836, 0
        %2839 = vmatprep.subr.mxu0 0.0
        %2840 = vmatpush1.msra.mxu0 0.0
        %2841 = vmatprep.subr.mxu0 0.0
        %2842 = vmatpush1.msra.mxu0 0.0
        %2843 = vmatprep.subr.mxu0 0.0
        %2844 = vmatpush1.msra.mxu0 0.0
        %2845 = vmatprep.subr.mxu0 0.0
        %2846 = vmatpush1.msra.mxu0 0.0
        %2847 = vmatprep.subr.mxu0 0.0
        %2848 = vmatpush1.msra.mxu0 0.0
        %2849 = vmatprep.subr.mxu0 0.0
        %2850 = vmatpush1.msra.mxu0 0.0
        %2851 = vmatprep.subr.mxu0 %v2835
        %2852 = vmatpush1.msra.mxu0 %v2834
        %2853 = vmatprep.subr.mxu0 %v2833
        %2854 = vmatpush1.msra.mxu0 %v2832
        %2855 = vmatprep.subr.mxu0 %v2831
        %2856 = vmatpush1.msra.mxu0 %v2830
        %2857 = vmatprep.subr.mxu0 %v2829
        %2858 = vmatpush1.msra.mxu0 %v2828
        %2859 = vmatprep.subr.mxu0 %v2827
        %2860 = vmatpush1.msra.mxu0 %v2826
        %2861 = vmatprep.subr.mxu0 %v2825
        %2862 = vmatpush1.msra.mxu0 %v2824
        %2863 = vmatprep.subr.mxu0 %v2823
        %2864 = vmatpush1.msra.mxu0 %v2822
        %2865 = vmatprep.subr.mxu0 %v2821
        %2866 = vmatpush1.msra.mxu0 %v2820
        %2867 = vmatprep.subr.mxu0 %v2819
        %2868 = vmatpush1.msra.mxu0 %v2818
        %2869 = vmatprep.subr.mxu0 %v2817
        %2870 = vmatpush1.msra.mxu0 %v2816
        %2871 = vmatprep.subr.mxu0 0.0
        %2872 = vmatpush2.msra.mxu0 0.0
        %2873 = vmatprep.subr.mxu0 0.0
        %2874 = vmatpush2.msra.mxu0 0.0
        %2875 = vmatprep.subr.mxu0 0.0
        %2876 = vmatpush2.msra.mxu0 0.0
        %2877 = vmatprep.subr.mxu0 0.0
        %2878 = vmatpush2.msra.mxu0 0.0
        %2879 = vmatprep.subr.mxu0 0.0
        %2880 = vmatpush2.msra.mxu0 0.0
        %2881 = vmatprep.subr.mxu0 0.0
        %2882 = vmatpush2.msra.mxu0 0.0
        %2883 = vmatprep.subr.mxu0 0.0
        %2884 = vmatpush2.msra.mxu0 0.0
        %2885 = vmatprep.subr.mxu0 0.0
        %2886 = vmatpush2.msra.mxu0 0.0
        %2887 = vmatprep.subr.mxu0 0.0
        %2888 = vmatpush2.msra.mxu0 0.0
        %2889 = vmatprep.subr.mxu0 0.0
        %2890 = vmatpush2.msra.mxu0 0.0
        %2891 = vmatprep.subr.mxu0 0.0
        %2892 = vmatpush2.msra.mxu0 0.0
        %2893 = vmatprep.subr.mxu0 0.0
        %2894 = vmatpush2.msra.mxu0 0.0
        %2895 = vmatprep.subr.mxu0 0.0
        %2896 = vmatpush2.msra.mxu0 0.0
        %2897 = vmatprep.subr.mxu0 0.0
        %2898 = vmatpush2.msra.mxu0 0.0
        %2899 = vmatprep.subr.mxu0 0.0
        %2900 = vmatpush2.msra.mxu0 0.0
        %2901 = vmatprep.subr.mxu0 0.0
        %2902 = vmatpush2.msra.mxu0 0.0
        %2903 = vmatprep.mubr.f32.mxu0 0.0
        %2904 = vmatmul.mubr.f32.gmra.mxu0 %v2837
        %v2905 = vpop.f32.mrf.mxu0
        %v2906 = vadd.f32 0.0, %v2905
        %v2907 = vpop.f32.mrf.mxu0
        %v2908 = vadd.f32 0.0, %v2907
        %2909 = vdwg.mxu0
        %v2910 = vadd.f32 %v2811, %v2906
        %v2911 = vadd.f32 %v2813, %v2908
        %s2912 = scalar_lea.vmem %s13, 480
        %v2913 = vld [vmem:[%s2912] sm:$0xff]
        %v2914 = vld [vmem:[%s2912 + $0x8] sm:$0xff]
        %v2915 = vld [vmem:[%s2912 + $0x10] sm:$0xff]
        %v2916 = vld [vmem:[%s2912 + $0x18] sm:$0xff]
        %v2917 = vld [vmem:[%s2912 + $0x20] sm:$0xff]
        %v2918 = vld [vmem:[%s2912 + $0x28] sm:$0xff]
        %v2919 = vld [vmem:[%s2912 + $0x30] sm:$0xff]
        %v2920 = vld [vmem:[%s2912 + $0x38] sm:$0xff]
        %v2921 = vld [vmem:[%s2912 + $0x40] sm:$0xff]
        %v2922 = vld [vmem:[%s2912 + $0x48] sm:$0xff]
        %v2923 = vld [vmem:[%s2912 + $0x50] sm:$0xff]
        %v2924 = vld [vmem:[%s2912 + $0x58] sm:$0xff]
        %v2925 = vld [vmem:[%s2912 + $0x60] sm:$0xff]
        %v2926 = vld [vmem:[%s2912 + $0x68] sm:$0xff]
        %v2927 = vld [vmem:[%s2912 + $0x70] sm:$0xff]
        %v2928 = vld [vmem:[%s2912 + $0x78] sm:$0xff]
        %v2929 = vld [vmem:[%s2912 + $0x80] sm:$0xff]
        %v2930 = vld [vmem:[%s2912 + $0x88] sm:$0xff]
        %v2931 = vld [vmem:[%s2912 + $0x90] sm:$0xff]
        %v2932 = vld [vmem:[%s2912 + $0x98] sm:$0xff]
        %v2933 = vrot.slane %v2624, 3
        %v2934 = vsel %vm2668, %v2933, 0
        %2936 = vmatprep.subr.mxu0 0.0
        %2937 = vmatpush1.msra.mxu0 0.0
        %2938 = vmatprep.subr.mxu0 0.0
        %2939 = vmatpush1.msra.mxu0 0.0
        %2940 = vmatprep.subr.mxu0 0.0
        %2941 = vmatpush1.msra.mxu0 0.0
        %2942 = vmatprep.subr.mxu0 0.0
        %2943 = vmatpush1.msra.mxu0 0.0
        %2944 = vmatprep.subr.mxu0 0.0
        %2945 = vmatpush1.msra.mxu0 0.0
        %2946 = vmatprep.subr.mxu0 0.0
        %2947 = vmatpush1.msra.mxu0 0.0
        %2948 = vmatprep.subr.mxu0 %v2932
        %2949 = vmatpush1.msra.mxu0 %v2931
        %2950 = vmatprep.subr.mxu0 %v2930
        %2951 = vmatpush1.msra.mxu0 %v2929
        %2952 = vmatprep.subr.mxu0 %v2928
        %2953 = vmatpush1.msra.mxu0 %v2927
        %2954 = vmatprep.subr.mxu0 %v2926
        %2955 = vmatpush1.msra.mxu0 %v2925
        %2956 = vmatprep.subr.mxu0 %v2924
        %2957 = vmatpush1.msra.mxu0 %v2923
        %2958 = vmatprep.subr.mxu0 %v2922
        %2959 = vmatpush1.msra.mxu0 %v2921
        %2960 = vmatprep.subr.mxu0 %v2920
        %2961 = vmatpush1.msra.mxu0 %v2919
        %2962 = vmatprep.subr.mxu0 %v2918
        %2963 = vmatpush1.msra.mxu0 %v2917
        %2964 = vmatprep.subr.mxu0 %v2916
        %2965 = vmatpush1.msra.mxu0 %v2915
        %2966 = vmatprep.subr.mxu0 %v2914
        %2967 = vmatpush1.msra.mxu0 %v2913
        %2968 = vmatprep.subr.mxu0 0.0
        %2969 = vmatpush2.msra.mxu0 0.0
        %2970 = vmatprep.subr.mxu0 0.0
        %2971 = vmatpush2.msra.mxu0 0.0
        %2972 = vmatprep.subr.mxu0 0.0
        %2973 = vmatpush2.msra.mxu0 0.0
        %2974 = vmatprep.subr.mxu0 0.0
        %2975 = vmatpush2.msra.mxu0 0.0
        %2976 = vmatprep.subr.mxu0 0.0
        %2977 = vmatpush2.msra.mxu0 0.0
        %2978 = vmatprep.subr.mxu0 0.0
        %2979 = vmatpush2.msra.mxu0 0.0
        %2980 = vmatprep.subr.mxu0 0.0
        %2981 = vmatpush2.msra.mxu0 0.0
        %2982 = vmatprep.subr.mxu0 0.0
        %2983 = vmatpush2.msra.mxu0 0.0
        %2984 = vmatprep.subr.mxu0 0.0
        %2985 = vmatpush2.msra.mxu0 0.0
        %2986 = vmatprep.subr.mxu0 0.0
        %2987 = vmatpush2.msra.mxu0 0.0
        %2988 = vmatprep.subr.mxu0 0.0
        %2989 = vmatpush2.msra.mxu0 0.0
        %2990 = vmatprep.subr.mxu0 0.0
        %2991 = vmatpush2.msra.mxu0 0.0
        %2992 = vmatprep.subr.mxu0 0.0
        %2993 = vmatpush2.msra.mxu0 0.0
        %2994 = vmatprep.subr.mxu0 0.0
        %2995 = vmatpush2.msra.mxu0 0.0
        %2996 = vmatprep.subr.mxu0 0.0
        %2997 = vmatpush2.msra.mxu0 0.0
        %2998 = vmatprep.subr.mxu0 0.0
        %2999 = vmatpush2.msra.mxu0 0.0
        %3000 = vmatprep.mubr.f32.mxu0 0.0
        %3001 = vmatmul.mubr.f32.gmra.mxu0 %v2934
        %v3002 = vpop.f32.mrf.mxu0
        %v3003 = vadd.f32 0.0, %v3002
        %v3004 = vpop.f32.mrf.mxu0
        %v3005 = vadd.f32 0.0, %v3004
        %3006 = vdwg.mxu0
        %v3007 = vadd.f32 %v2910, %v3003
        %v3008 = vadd.f32 %v2911, %v3005
        %s3009 = scalar_lea.vmem %s13, 640
        %v3010 = vld [vmem:[%s3009] sm:$0xff]
        %v3011 = vld [vmem:[%s3009 + $0x8] sm:$0xff]
        %v3012 = vld [vmem:[%s3009 + $0x10] sm:$0xff]
        %v3013 = vld [vmem:[%s3009 + $0x18] sm:$0xff]
        %v3014 = vld [vmem:[%s3009 + $0x20] sm:$0xff]
        %v3015 = vld [vmem:[%s3009 + $0x28] sm:$0xff]
        %v3016 = vld [vmem:[%s3009 + $0x30] sm:$0xff]
        %v3017 = vld [vmem:[%s3009 + $0x38] sm:$0xff]
        %v3018 = vld [vmem:[%s3009 + $0x40] sm:$0xff]
        %v3019 = vld [vmem:[%s3009 + $0x48] sm:$0xff]
        %v3020 = vld [vmem:[%s3009 + $0x50] sm:$0xff]
        %v3021 = vld [vmem:[%s3009 + $0x58] sm:$0xff]
        %v3022 = vld [vmem:[%s3009 + $0x60] sm:$0xff]
        %v3023 = vld [vmem:[%s3009 + $0x68] sm:$0xff]
        %v3024 = vld [vmem:[%s3009 + $0x70] sm:$0xff]
        %v3025 = vld [vmem:[%s3009 + $0x78] sm:$0xff]
        %v3026 = vld [vmem:[%s3009 + $0x80] sm:$0xff]
        %v3027 = vld [vmem:[%s3009 + $0x88] sm:$0xff]
        %v3028 = vld [vmem:[%s3009 + $0x90] sm:$0xff]
        %v3029 = vld [vmem:[%s3009 + $0x98] sm:$0xff]
        %v3030 = vrot.slane %v2624, 4
        %v3031 = vsel %vm2668, %v3030, 0
        %3033 = vmatprep.subr.mxu0 0.0
        %3034 = vmatpush1.msra.mxu0 0.0
        %3035 = vmatprep.subr.mxu0 0.0
        %3036 = vmatpush1.msra.mxu0 0.0
        %3037 = vmatprep.subr.mxu0 0.0
        %3038 = vmatpush1.msra.mxu0 0.0
        %3039 = vmatprep.subr.mxu0 0.0
        %3040 = vmatpush1.msra.mxu0 0.0
        %3041 = vmatprep.subr.mxu0 0.0
        %3042 = vmatpush1.msra.mxu0 0.0
        %3043 = vmatprep.subr.mxu0 0.0
        %3044 = vmatpush1.msra.mxu0 0.0
        %3045 = vmatprep.subr.mxu0 %v3029
        %3046 = vmatpush1.msra.mxu0 %v3028
        %3047 = vmatprep.subr.mxu0 %v3027
        %3048 = vmatpush1.msra.mxu0 %v3026
        %3049 = vmatprep.subr.mxu0 %v3025
        %3050 = vmatpush1.msra.mxu0 %v3024
        %3051 = vmatprep.subr.mxu0 %v3023
        %3052 = vmatpush1.msra.mxu0 %v3022
        %3053 = vmatprep.subr.mxu0 %v3021
        %3054 = vmatpush1.msra.mxu0 %v3020
        %3055 = vmatprep.subr.mxu0 %v3019
        %3056 = vmatpush1.msra.mxu0 %v3018
        %3057 = vmatprep.subr.mxu0 %v3017
        %3058 = vmatpush1.msra.mxu0 %v3016
        %3059 = vmatprep.subr.mxu0 %v3015
        %3060 = vmatpush1.msra.mxu0 %v3014
        %3061 = vmatprep.subr.mxu0 %v3013
        %3062 = vmatpush1.msra.mxu0 %v3012
        %3063 = vmatprep.subr.mxu0 %v3011
        %3064 = vmatpush1.msra.mxu0 %v3010
        %3065 = vmatprep.subr.mxu0 0.0
        %3066 = vmatpush2.msra.mxu0 0.0
        %3067 = vmatprep.subr.mxu0 0.0
        %3068 = vmatpush2.msra.mxu0 0.0
        %3069 = vmatprep.subr.mxu0 0.0
        %3070 = vmatpush2.msra.mxu0 0.0
        %3071 = vmatprep.subr.mxu0 0.0
        %3072 = vmatpush2.msra.mxu0 0.0
        %3073 = vmatprep.subr.mxu0 0.0
        %3074 = vmatpush2.msra.mxu0 0.0
        %3075 = vmatprep.subr.mxu0 0.0
        %3076 = vmatpush2.msra.mxu0 0.0
        %3077 = vmatprep.subr.mxu0 0.0
        %3078 = vmatpush2.msra.mxu0 0.0
        %3079 = vmatprep.subr.mxu0 0.0
        %3080 = vmatpush2.msra.mxu0 0.0
        %3081 = vmatprep.subr.mxu0 0.0
        %3082 = vmatpush2.msra.mxu0 0.0
        %3083 = vmatprep.subr.mxu0 0.0
        %3084 = vmatpush2.msra.mxu0 0.0
        %3085 = vmatprep.subr.mxu0 0.0
        %3086 = vmatpush2.msra.mxu0 0.0
        %3087 = vmatprep.subr.mxu0 0.0
        %3088 = vmatpush2.msra.mxu0 0.0
        %3089 = vmatprep.subr.mxu0 0.0
        %3090 = vmatpush2.msra.mxu0 0.0
        %3091 = vmatprep.subr.mxu0 0.0
        %3092 = vmatpush2.msra.mxu0 0.0
        %3093 = vmatprep.subr.mxu0 0.0
        %3094 = vmatpush2.msra.mxu0 0.0
        %3095 = vmatprep.subr.mxu0 0.0
        %3096 = vmatpush2.msra.mxu0 0.0
        %3097 = vmatprep.mubr.f32.mxu0 0.0
        %3098 = vmatmul.mubr.f32.gmra.mxu0 %v3031
        %v3099 = vpop.f32.mrf.mxu0
        %v3100 = vadd.f32 0.0, %v3099
        %v3101 = vpop.f32.mrf.mxu0
        %v3102 = vadd.f32 0.0, %v3101
        %3103 = vdwg.mxu0
        %v3104 = vadd.f32 %v3007, %v3100
        %v3105 = vadd.f32 %v3008, %v3102
        %v3106 = vld [vmem:[%s14] sm:$0x3]
        %v3108 = vlaneseq
        %v3109 = vshrl.u32 %v3108, 7
        %v3110 = vsub.s32 0, %v3109
        %v3111 = vrot.slane %v3106, %v3110
        %v3112 = vlaneseq
        %v3113 = vshrl.u32 %v3112, 7
        %v3114 = vsub.s32 1, %v3113
        %v3115 = vrot.slane %v3106, %v3114
        %v3118 = vadd.f32 %v3104, %v3111
        %v3119 = vadd.f32 %v3105, %v3115
        %v3120 = vmax.f32 %v3118, 0.0
        %v3121 = vmax.f32 %v3119, 0.0
        %v3122 = vld [vmem:[%s15] sm:$0xff]
        %v3123 = vld [vmem:[%s15 + $0x8] sm:$0xff]
        %v3124 = vld [vmem:[%s15 + $0x10] sm:$0xff]
        %v3125 = vld [vmem:[%s15 + $0x18] sm:$0xff]
        %v3126 = vld [vmem:[%s15 + $0x20] sm:$0xff]
        %v3127 = vld [vmem:[%s15 + $0x28] sm:$0xff]
        %v3128 = vld [vmem:[%s15 + $0x30] sm:$0xff]
        %v3129 = vld [vmem:[%s15 + $0x38] sm:$0xff]
        %v3130 = vld [vmem:[%s15 + $0x40] sm:$0xff]
        %v3131 = vld [vmem:[%s15 + $0x48] sm:$0xff]
        %v3132 = vld [vmem:[%s15 + $0x50] sm:$0xff]
        %v3133 = vld [vmem:[%s15 + $0x58] sm:$0xff]
        %v3134 = vld [vmem:[%s15 + $0x60] sm:$0xff]
        %v3135 = vld [vmem:[%s15 + $0x68] sm:$0xff]
        %v3136 = vld [vmem:[%s15 + $0x70] sm:$0xff]
        %v3137 = vld [vmem:[%s15 + $0x78] sm:$0xff]
        %v3138 = vld [vmem:[%s15 + $0x80] sm:$0xff]
        %v3139 = vld [vmem:[%s15 + $0x88] sm:$0xff]
        %v3140 = vld [vmem:[%s15 + $0x90] sm:$0xff]
        %v3141 = vld [vmem:[%s15 + $0x98] sm:$0xff]
        %v3142 = vld [vmem:[%s15 + $0xa0] sm:$0xff]
        %v3143 = vld [vmem:[%s15 + $0xa8] sm:$0xff]
        %v3144 = vld [vmem:[%s15 + $0xb0] sm:$0xff]
        %v3145 = vld [vmem:[%s15 + $0xb8] sm:$0xff]
        %v3146 = vld [vmem:[%s15 + $0xc0] sm:$0xff]
        %v3147 = vld [vmem:[%s15 + $0xc8] sm:$0xff]
        %v3148 = vld [vmem:[%s15 + $0xd0] sm:$0xff]
        %v3149 = vld [vmem:[%s15 + $0xd8] sm:$0xff]
        %v3150 = vld [vmem:[%s15 + $0xe0] sm:$0xff]
        %v3151 = vld [vmem:[%s15 + $0xe8] sm:$0xff]
        %v3152 = vld [vmem:[%s15 + $0xf0] sm:$0xff]
        %v3153 = vld [vmem:[%s15 + $0xf8] sm:$0xff]
        %v3154 = vld [vmem:[%s15 + $0x100] sm:$0xff]
        %v3155 = vld [vmem:[%s15 + $0x108] sm:$0xff]
        %v3156 = vld [vmem:[%s15 + $0x110] sm:$0xff]
        %v3157 = vld [vmem:[%s15 + $0x118] sm:$0xff]
        %v3158 = vld [vmem:[%s15 + $0x120] sm:$0xff]
        %v3159 = vld [vmem:[%s15 + $0x128] sm:$0xff]
        %v3160 = vld [vmem:[%s15 + $0x130] sm:$0xff]
        %v3161 = vld [vmem:[%s15 + $0x138] sm:$0xff]
        %v3162 = vld [vmem:[%s15 + $0x140] sm:$0xff]
        %v3163 = vld [vmem:[%s15 + $0x148] sm:$0xff]
        %v3164 = vld [vmem:[%s15 + $0x150] sm:$0xff]
        %v3165 = vld [vmem:[%s15 + $0x158] sm:$0xff]
        %v3166 = vld [vmem:[%s15 + $0x160] sm:$0xff]
        %v3167 = vld [vmem:[%s15 + $0x168] sm:$0xff]
        %v3168 = vld [vmem:[%s15 + $0x170] sm:$0xff]
        %v3169 = vld [vmem:[%s15 + $0x178] sm:$0xff]
        %v3170 = vld [vmem:[%s15 + $0x180] sm:$0xff]
        %v3171 = vld [vmem:[%s15 + $0x188] sm:$0xff]
        %v3172 = vld [vmem:[%s15 + $0x190] sm:$0xff]
        %v3173 = vld [vmem:[%s15 + $0x198] sm:$0xff]
        %v3174 = vld [vmem:[%s15 + $0x1a0] sm:$0xff]
        %v3175 = vld [vmem:[%s15 + $0x1a8] sm:$0xff]
        %v3176 = vld [vmem:[%s15 + $0x1b0] sm:$0xff]
        %v3177 = vld [vmem:[%s15 + $0x1b8] sm:$0xff]
        %v3178 = vld [vmem:[%s15 + $0x1c0] sm:$0xff]
        %v3179 = vld [vmem:[%s15 + $0x1c8] sm:$0xff]
        %v3180 = vld [vmem:[%s15 + $0x1d0] sm:$0xff]
        %v3181 = vld [vmem:[%s15 + $0x1d8] sm:$0xff]
        %v3182 = vld [vmem:[%s15 + $0x1e0] sm:$0xff]
        %v3183 = vld [vmem:[%s15 + $0x1e8] sm:$0xff]
        %v3184 = vld [vmem:[%s15 + $0x1f0] sm:$0x3]
        %v3185 = vld [vmem:[%s15 + $0x1f8] sm:$0x3]
        %v3186 = vld [vmem:[%s16] sm:$0x3]
        %v3188 = vlaneseq
        %v3189 = vshrl.u32 %v3188, 7
        %v3190 = vsub.s32 0, %v3189
        %v3191 = vrot.slane %v3186, %v3190
        %v3192 = vlaneseq
        %v3193 = vshrl.u32 %v3192, 7
        %v3194 = vsub.s32 1, %v3193
        %v3195 = vrot.slane %v3186, %v3194
        %vm3198 = vcmask 998400
        %v3200 = vsel %vm3198, %v3121, 0
        %v3203 = vsel %vm2285, %v3184, 0
        %v3206 = vsel %vm2285, %v3185, 0
        %3208 = vmatprep.subr.mxu0 %v3153
        %3209 = vmatpush1.msra.mxu0 %v3152
        %3210 = vmatprep.subr.mxu0 %v3151
        %3211 = vmatpush1.msra.mxu0 %v3150
        %3212 = vmatprep.subr.mxu0 %v3149
        %3213 = vmatpush1.msra.mxu0 %v3148
        %3214 = vmatprep.subr.mxu0 %v3147
        %3215 = vmatpush1.msra.mxu0 %v3146
        %3216 = vmatprep.subr.mxu0 %v3145
        %3217 = vmatpush1.msra.mxu0 %v3144
        %3218 = vmatprep.subr.mxu0 %v3143
        %3219 = vmatpush1.msra.mxu0 %v3142
        %3220 = vmatprep.subr.mxu0 %v3141
        %3221 = vmatpush1.msra.mxu0 %v3140
        %3222 = vmatprep.subr.mxu0 %v3139
        %3223 = vmatpush1.msra.mxu0 %v3138
        %3224 = vmatprep.subr.mxu0 %v3137
        %3225 = vmatpush1.msra.mxu0 %v3136
        %3226 = vmatprep.subr.mxu0 %v3135
        %3227 = vmatpush1.msra.mxu0 %v3134
        %3228 = vmatprep.subr.mxu0 %v3133
        %3229 = vmatpush1.msra.mxu0 %v3132
        %3230 = vmatprep.subr.mxu0 %v3131
        %3231 = vmatpush1.msra.mxu0 %v3130
        %3232 = vmatprep.subr.mxu0 %v3129
        %3233 = vmatpush1.msra.mxu0 %v3128
        %3234 = vmatprep.subr.mxu0 %v3127
        %3235 = vmatpush1.msra.mxu0 %v3126
        %3236 = vmatprep.subr.mxu0 %v3125
        %3237 = vmatpush1.msra.mxu0 %v3124
        %3238 = vmatprep.subr.mxu0 %v3123
        %3239 = vmatpush1.msra.mxu0 %v3122
        %3240 = vmatprep.subr.mxu0 %v3206
        %3241 = vmatpush2.msra.mxu0 %v3203
        %3242 = vmatprep.subr.mxu0 %v3183
        %3243 = vmatpush2.msra.mxu0 %v3182
        %3244 = vmatprep.subr.mxu0 %v3181
        %3245 = vmatpush2.msra.mxu0 %v3180
        %3246 = vmatprep.subr.mxu0 %v3179
        %3247 = vmatpush2.msra.mxu0 %v3178
        %3248 = vmatprep.subr.mxu0 %v3177
        %3249 = vmatpush2.msra.mxu0 %v3176
        %3250 = vmatprep.subr.mxu0 %v3175
        %3251 = vmatpush2.msra.mxu0 %v3174
        %3252 = vmatprep.subr.mxu0 %v3173
        %3253 = vmatpush2.msra.mxu0 %v3172
        %3254 = vmatprep.subr.mxu0 %v3171
        %3255 = vmatpush2.msra.mxu0 %v3170
        %3256 = vmatprep.subr.mxu0 %v3169
        %3257 = vmatpush2.msra.mxu0 %v3168
        %3258 = vmatprep.subr.mxu0 %v3167
        %3259 = vmatpush2.msra.mxu0 %v3166
        %3260 = vmatprep.subr.mxu0 %v3165
        %3261 = vmatpush2.msra.mxu0 %v3164
        %3262 = vmatprep.subr.mxu0 %v3163
        %3263 = vmatpush2.msra.mxu0 %v3162
        %3264 = vmatprep.subr.mxu0 %v3161
        %3265 = vmatpush2.msra.mxu0 %v3160
        %3266 = vmatprep.subr.mxu0 %v3159
        %3267 = vmatpush2.msra.mxu0 %v3158
        %3268 = vmatprep.subr.mxu0 %v3157
        %3269 = vmatpush2.msra.mxu0 %v3156
        %3270 = vmatprep.subr.mxu0 %v3155
        %3271 = vmatpush2.msra.mxu0 %v3154
        %3272 = vmatprep.mubr.f32.mxu0 %v3200
        %3273 = vmatmul.mubr.f32.gmra.mxu0 %v3120
        %v3274 = vpop.f32.mrf.mxu0
        %v3275 = vadd.f32 %v3191, %v3274
        %v3276 = vpop.f32.mrf.mxu0
        %v3277 = vadd.f32 %v3195, %v3276
        %3278 = vdwg.mxu0
        %v3279 = vmax.f32 %v3275, 0.0
        %v3280 = vmax.f32 %v3277, 0.0
        %v3281 = vld [vmem:[%s17] sm:$0xff]
        %v3282 = vld [vmem:[%s17 + $0x8] sm:$0xff]
        %v3283 = vld [vmem:[%s17 + $0x10] sm:$0xff]
        %v3284 = vld [vmem:[%s17 + $0x18] sm:$0xff]
        %v3285 = vld [vmem:[%s17 + $0x20] sm:$0xff]
        %v3286 = vld [vmem:[%s17 + $0x28] sm:$0xff]
        %v3287 = vld [vmem:[%s17 + $0x30] sm:$0xff]
        %v3288 = vld [vmem:[%s17 + $0x38] sm:$0xff]
        %v3289 = vld [vmem:[%s17 + $0x40] sm:$0xff]
        %v3290 = vld [vmem:[%s17 + $0x48] sm:$0xff]
        %v3291 = vld [vmem:[%s17 + $0x50] sm:$0xff]
        %v3292 = vld [vmem:[%s17 + $0x58] sm:$0xff]
        %v3293 = vld [vmem:[%s17 + $0x60] sm:$0xff]
        %v3294 = vld [vmem:[%s17 + $0x68] sm:$0xff]
        %v3295 = vld [vmem:[%s17 + $0x70] sm:$0xff]
        %v3296 = vld [vmem:[%s17 + $0x78] sm:$0xff]
        %v3297 = vld [vmem:[%s17 + $0x80] sm:$0xff]
        %v3298 = vld [vmem:[%s17 + $0x88] sm:$0xff]
        %v3299 = vld [vmem:[%s17 + $0x90] sm:$0xff]
        %v3300 = vld [vmem:[%s17 + $0x98] sm:$0xff]
        %v3301 = vld [vmem:[%s18] sm:$0x1]
        %v3303 = vsel %vm2460, %v3280, 0
        %3305 = vmatprep.subr.mxu0 0.0
        %3306 = vmatpush1.msra.mxu0 %v3296
        %3307 = vmatprep.subr.mxu0 0.0
        %3308 = vmatpush1.msra.mxu0 %v3295
        %3309 = vmatprep.subr.mxu0 0.0
        %3310 = vmatpush1.msra.mxu0 %v3294
        %3311 = vmatprep.subr.mxu0 0.0
        %3312 = vmatpush1.msra.mxu0 %v3293
        %3313 = vmatprep.subr.mxu0 0.0
        %3314 = vmatpush1.msra.mxu0 %v3292
        %3315 = vmatprep.subr.mxu0 0.0
        %3316 = vmatpush1.msra.mxu0 %v3291
        %3317 = vmatprep.subr.mxu0 0.0
        %3318 = vmatpush1.msra.mxu0 %v3290
        %3319 = vmatprep.subr.mxu0 0.0
        %3320 = vmatpush1.msra.mxu0 %v3289
        %3321 = vmatprep.subr.mxu0 0.0
        %3322 = vmatpush1.msra.mxu0 %v3288
        %3323 = vmatprep.subr.mxu0 0.0
        %3324 = vmatpush1.msra.mxu0 %v3287
        %3325 = vmatprep.subr.mxu0 0.0
        %3326 = vmatpush1.msra.mxu0 %v3286
        %3327 = vmatprep.subr.mxu0 0.0
        %3328 = vmatpush1.msra.mxu0 %v3285
        %3329 = vmatprep.subr.mxu0 0.0
        %3330 = vmatpush1.msra.mxu0 %v3284
        %3331 = vmatprep.subr.mxu0 0.0
        %3332 = vmatpush1.msra.mxu0 %v3283
        %3333 = vmatprep.subr.mxu0 0.0
        %3334 = vmatpush1.msra.mxu0 %v3282
        %3335 = vmatprep.subr.mxu0 0.0
        %3336 = vmatpush1.msra.mxu0 %v3281
        %3337 = vmatprep.subr.mxu0 0.0
        %3338 = vmatpush2.msra.mxu0 0.0
        %3339 = vmatprep.subr.mxu0 0.0
        %3340 = vmatpush2.msra.mxu0 0.0
        %3341 = vmatprep.subr.mxu0 0.0
        %3342 = vmatpush2.msra.mxu0 0.0
        %3343 = vmatprep.subr.mxu0 0.0
        %3344 = vmatpush2.msra.mxu0 0.0
        %3345 = vmatprep.subr.mxu0 0.0
        %3346 = vmatpush2.msra.mxu0 0.0
        %3347 = vmatprep.subr.mxu0 0.0
        %3348 = vmatpush2.msra.mxu0 0.0
        %3349 = vmatprep.subr.mxu0 0.0
        %3350 = vmatpush2.msra.mxu0 0.0
        %3351 = vmatprep.subr.mxu0 0.0
        %3352 = vmatpush2.msra.mxu0 0.0
        %3353 = vmatprep.subr.mxu0 0.0
        %3354 = vmatpush2.msra.mxu0 0.0
        %3355 = vmatprep.subr.mxu0 0.0
        %3356 = vmatpush2.msra.mxu0 0.0
        %3357 = vmatprep.subr.mxu0 0.0
        %3358 = vmatpush2.msra.mxu0 0.0
        %3359 = vmatprep.subr.mxu0 0.0
        %3360 = vmatpush2.msra.mxu0 0.0
        %3361 = vmatprep.subr.mxu0 0.0
        %3362 = vmatpush2.msra.mxu0 %v3300
        %3363 = vmatprep.subr.mxu0 0.0
        %3364 = vmatpush2.msra.mxu0 %v3299
        %3365 = vmatprep.subr.mxu0 0.0
        %3366 = vmatpush2.msra.mxu0 %v3298
        %3367 = vmatprep.subr.mxu0 0.0
        %3368 = vmatpush2.msra.mxu0 %v3297
        %3369 = vmatprep.mubr.f32.mxu0 %v3303
        %3370 = vmatmul.mubr.f32.gmra.mxu0 %v3279
        %v3371 = vpop.f32.mrf.mxu0
        %v3372 = vadd.f32 %v3301, %v3371
        %v3373 = vpop.f32.mrf.mxu0
        %3374 = vdwg.mxu0
        %vm3375 = vcmask 811008
        %3376 = vst.msk [vmem:[%s594] sm:$0x1] %vm3375, %v3372
        %s3377 = sand.u32 %s445, 1
        %s3378 = scalar_lea.sflag [#allocation3], %s3377
        %s3379 = sand.u32 %s445, 1
        %s3380 = scalar_lea.vmem [#allocation2], %s3379
        // Predicated region
        $region97: #{net_forward.1} parent=95 // pred_check
          %p3381 = pneg %p455
        $region98: #{net_forward.1} parent=95 // pred_check_branch
          %3383 = sbr.rel (%p3381) target = $region100
        $region99: #{net_forward.1} parent=95 // pred_region
          %s3385 = ssub.s32 16, 16
          %3386 = vsyncadd %s3378, %s3385
          %s3387 = smul.addr %s33, 16
          %s3388 = scalar_lea.hbm %s19, %s3387
          %s3390 = sshll.u32 %s3380, 4
          %s3391 = int_to_ptr.vmem [resolvable:$true] %s3390
          %3393 = dma.vmem_to_hbm [thread:$0]  %s3391, 16, %s3388, %s3378
        $region100: #{net_forward.1} parent=95 // pred_fallthru
          _
      $region96: #{net_forward.1} parent=5 // pred_fallthru
        _
      %p3394 = scmp.le.s32.totalorder 2, %s28
      // Predicated region
      $region101: #{net_forward.1} parent=5 // pred_check
        %p3395 = pneg %p3394
      $region102: #{net_forward.1} parent=5 // pred_check_branch
        %3397 = sbr.rel (%p3395) target = $region104
      $region103: #{net_forward.1} parent=5 // pred_region
        %s3398 = ssub.s32 %s28, 2
        // Predicated region
        $region105: #{net_forward.1} parent=103 // pred_check
          %p3399 = pneg %p461
        $region106: #{net_forward.1} parent=103 // pred_check_branch
          %3401 = sbr.rel (%p3399) target = $region108
        $region107: #{net_forward.1} parent=103 // pred_region
          %s3402 = sand.u32 %s446, 1
          %s3403 = scalar_lea.sflag [#allocation3], %s3402
          %s3404 = sand.u32 %s446, 1
          %s3405 = scalar_lea.vmem [#allocation2], %s3404
          %3406 = dma.done %s3403, 16
        $region108: #{net_forward.1} parent=103 // pred_fallthru
          _
      $region104: #{net_forward.1} parent=5 // pred_fallthru
        _
    $region6: #{net_forward.1} parent=1 // loop_footer
      %s32 = sadd.s32 1, %s28
    $region7: #{net_forward.1} parent=1 // loop_footer_branch
      %27 = sbr.rel target = $region3
    $region8: #{net_forward.1} parent=1 // loop_exit
      _
    %3407 = vsyncpa [#allocation3], 1
    %s3408 = scalar_lea.sflag [#allocation3], 1
    %3409 = vsyncpa %s3408, 1

</llo_original>
